<compile_context>
chip_gen: v7x
topology: tpu7x:2x2x1
jax: 0.10.0
libtpu: 0.0.40
codegen_flags: <defaults>
</compile_context>

<pallas_src>
import jax
import jax.numpy as jnp
from jax.experimental import pallas as pl
from jax.experimental.pallas import tpu as pltpu


def _conv1x1_kernel(x_ref, w_ref, o_ref):
    # x_ref: (Cin, tm) activations, w_ref: (Cout, Cin) resident weights
    # -> o_ref: (Cout, tm).  bf16 (or f32) operands, f32 MXU accumulation.
    o_ref[...] = jnp.dot(
        w_ref[...], x_ref[...], preferred_element_type=jnp.float32
    ).astype(o_ref.dtype)


def _pick_m_tile(m, cin, itemsize, *, target=256, vmem_budget=8 << 20):
    """Spatial (lane) tile size.

    - If M is small, take the full dim (a full-extent block satisfies the
      (8,128) layout rule even when M is not a 128-multiple).
    - Otherwise use a 128-aligned tile (~target lanes) so X streams and
      pipelines behind the MXU, capped so the double-buffered X block
      (2 * Cin * tm * itemsize) stays well inside every chip's scoped VMEM.
    """
    if m <= target:
        return m
    cap = max(128, (vmem_budget // (2 * cin * itemsize)) // 128 * 128)
    return min(target, cap)


def conv2d_1x1(x_nchw, weight, *, use_bf16=True):
    """1x1 conv, stride 1, no bias.

    x_nchw: (N, Cin, H, W), weight: (Cout, Cin, 1, 1).  Output is f32 NCHW.
    use_bf16=True rounds the MXU operands to bf16 (f32 accumulation) -- the
    documented speed/numerics tradeoff; use_bf16=False is bit-faithful f32.
    """
    N, Cin, H, W = x_nchw.shape
    Cout = weight.shape[0]
    M = H * W

    # Zero-copy reshapes only -- no transposes.
    x_km = x_nchw.reshape(N, Cin, M)      # per-batch (K, M) operand
    w_mat = weight.reshape(Cout, Cin)     # (Cout, K) operand

    if use_bf16:
        x_km = x_km.astype(jnp.bfloat16)
        w_mat = w_mat.astype(jnp.bfloat16)
    itemsize = x_km.dtype.itemsize

    # Full Cout tile: W block (Cout*Cin*itemsize, 0.5 MiB bf16 here) is
    # fetched once and held resident (its block index never changes).
    # TODO(synk): add Cout/Cin tiling (+ f32 accumulator scratch) for models
    # where Cout*Cin no longer fits VMEM; this module is fixed at 256x1024.
    tm = _pick_m_tile(M, Cin, itemsize)
    grid = (N, pl.cdiv(M, tm))

    cost = pl.CostEstimate(
        flops=2 * N * M * Cin * Cout,
        transcendentals=0,
        bytes_accessed=(x_km.size * itemsize
                        + w_mat.size * itemsize
                        + N * Cout * M * x_nchw.dtype.itemsize),
    )

    out_km = pl.pallas_call(
        _conv1x1_kernel,
        out_shape=jax.ShapeDtypeStruct((N, Cout, M), jnp.float32),
        grid_spec=pltpu.PrefetchScalarGridSpec(
            num_scalar_prefetch=0,
            grid=grid,
            in_specs=[
                # x: batch dim squeezed; block streams along the M axis.
                pl.BlockSpec((None, Cin, tm), lambda n, mi: (n, 0, mi)),
                # w: constant block index -> DMA'd once, resident in VMEM.
                pl.BlockSpec((Cout, Cin), lambda n, mi: (0, 0)),
            ],
            out_specs=pl.BlockSpec((None, Cout, tm), lambda n, mi: (n, 0, mi)),
        ),
        compiler_params=pltpu.CompilerParams(
            # M axis is the parallel one: v7x's two TensorCores split the
            # dominant activation read; only the small W block is duplicated.
            dimension_semantics=("parallel", "parallel"),
        ),
        cost_estimate=cost,
    )(x_km, w_mat)

    # Zero-copy reshape back to NCHW.
    return out_km.reshape(N, Cout, H, W)


if __name__ == "__main__":
    # Shapes from the PyTorch module: x92 = randn([1, 1024, 28, 28]),
    # Conv2d(1024, 256, kernel_size=1, bias=False) -> output [1, 256, 28, 28].
    key = jax.random.PRNGKey(0)
    kx, kw = jax.random.split(key)

    N, Cin, H, W = 1, 1024, 28, 28
    Cout = 256

    x = jax.random.normal(kx, (N, Cin, H, W), dtype=jnp.float32)
    # Deterministic weight init (kaiming-uniform-like bound, fixed seed).
    bound = (1.0 / Cin) ** 0.5
    weight = jax.random.uniform(
        kw, (Cout, Cin, 1, 1), dtype=jnp.float32, minval=-bound, maxval=bound
    )

    w_mat = weight.reshape(Cout, Cin)
    ref_f32 = jnp.einsum("nchw,oc->nohw", x, w_mat)

    # 1) Bit-faithful f32 path: exact module semantics.
    y_f32 = jax.block_until_ready(conv2d_1x1(x, weight, use_bf16=False))
    assert y_f32.shape == (N, Cout, H, W), y_f32.shape
    assert jnp.allclose(y_f32, ref_f32, atol=1e-4, rtol=1e-4), "f32 path mismatch"

    # 2) Default bf16-fed MXU path: compare against a reference built from the
    #    same bf16-rounded operands (f32 accumulation) so the check isolates
    #    kernel correctness from the documented dtype tradeoff, plus a loose
    #    sanity check against the full-precision reference.
    y_bf16 = jax.block_until_ready(conv2d_1x1(x, weight, use_bf16=True))
    ref_bf16 = jnp.einsum(
        "nchw,oc->nohw",
        x.astype(jnp.bfloat16).astype(jnp.float32),
        w_mat.astype(jnp.bfloat16).astype(jnp.float32),
    )
    assert y_bf16.shape == (N, Cout, H, W), y_bf16.shape
    assert jnp.allclose(y_bf16, ref_bf16, atol=2e-3, rtol=2e-3), "bf16 path mismatch"
    assert jnp.allclose(y_bf16, ref_f32, atol=5e-2, rtol=5e-2), "bf16 path diverged"

    print("KERNEL_OK")
</pallas_src>

<mosaic_0001>
module attributes {stable_mosaic.version = 11 : i64} {
  func.func @_conv1x1_kernel(%arg0: i32, %arg1: i32, %arg2: memref<1x1024x256xf32, #tpu.memory_space<vmem>>, %arg3: memref<256x1024xf32, #tpu.memory_space<vmem>>, %arg4: memref<1x256x256xf32, #tpu.memory_space<vmem>>) attributes {dimension_semantics = [#tpu.dimension_semantics<parallel>, #tpu.dimension_semantics<parallel>], iteration_bounds = array<i64: 1, 4>, scalar_prefetch = 0 : i64, scratch_operands = 0 : i64, tpu.core_type = #tpu.core_type<tc>, window_params = [{transform_indices = @transform_0, window_bounds = array<i64: 1, 1024, 256>}, {pipeline_mode = #tpu.pipeline_mode<synchronous>, transform_indices = @transform_1, window_bounds = array<i64: 256, 1024>}, {transform_indices = @transform_2, window_bounds = array<i64: 1, 256, 256>}]} {
    %c0 = arith.constant 0 : index
    %c0_0 = arith.constant 0 : index
    %0 = vector.load %arg3[%c0, %c0_0] : memref<256x1024xf32, #tpu.memory_space<vmem>>, vector<256x1024xf32>
    %c0_1 = arith.constant 0 : index
    %c0_2 = arith.constant 0 : index
    %c0_3 = arith.constant 0 : index
    %1 = vector.load %arg2[%c0_1, %c0_2, %c0_3] : memref<1x1024x256xf32, #tpu.memory_space<vmem>>, vector<1x1024x256xf32>
    %2 = vector.shape_cast %1 : vector<1x1024x256xf32> to vector<1024x256xf32>
    %cst = arith.constant dense<0.000000e+00> : vector<256x256xf32>
    %3 = tpu.matmul %0, %2, %cst {dimension_numbers = #tpu.dot_dimension_numbers<[1], [0], [0], [1], [0, 0, 1, 1], [], []>} : vector<256x1024xf32>, vector<1024x256xf32>, vector<256x256xf32> -> vector<256x256xf32>
    %c0_4 = arith.constant 0 : index
    %c0_5 = arith.constant 0 : index
    %c0_6 = arith.constant 0 : index
    %4 = vector.load %arg4[%c0_4, %c0_5, %c0_6] : memref<1x256x256xf32, #tpu.memory_space<vmem>>, vector<1x256x256xf32>
    %5 = vector.shape_cast %4 : vector<1x256x256xf32> to vector<256x256xf32>
    %6 = vector.shape_cast %3 : vector<256x256xf32> to vector<1x256x256xf32>
    tpu.vector_store %arg4[%c0_4, %c0_5, %c0_6], %6 {strides = array<i32>} : memref<1x256x256xf32, #tpu.memory_space<vmem>>, vector<1x256x256xf32>,
    return
  }
  func.func @transform_0(%arg0: i32, %arg1: i32) -> (i32, i32, i32) {
    %c0_i32 = arith.constant 0 : i32
    %c0_i32_0 = arith.constant 0 : i32
    return %arg0, %c0_i32, %arg1 : i32, i32, i32
  }
  func.func @transform_1(%arg0: i32, %arg1: i32) -> (i32, i32) {
    %c0_i32 = arith.constant 0 : i32
    %c0_i32_0 = arith.constant 0 : i32
    %c0_i32_1 = arith.constant 0 : i32
    return %c0_i32, %c0_i32_0 : i32, i32
  }
  func.func @transform_2(%arg0: i32, %arg1: i32) -> (i32, i32, i32) {
    %c0_i32 = arith.constant 0 : i32
    %c0_i32_0 = arith.constant 0 : i32
    return %arg0, %c0_i32, %arg1 : i32, i32, i32
  }
}

</mosaic_0001>

<llo_original>
// kernel: tpu_custom_call.1
$region0: #{tpu_custom_call.1}
  #allocation0 [shape = 'u32[]', space=smem, size = 0x4, offset = 0x4, fixed_abs, tag = 'smem constant byte address 0x4 - core index']
  #allocation1 [shape = 'u32[144,128]{1,0:T(1,128)}', space=vmem, size = 0x12000, scoped, tag = 'internal scratch']
  %s0 = inlined_call_operand.vmem [shape: f32[1,1024,784], index: 0, kind: input, shape index: {}]
  %s1 = inlined_call_operand.vmem [shape: f32[256,1024], index: 1, kind: input, shape index: {}]
  %s2 = inlined_call_operand.vmem [shape: f32[1,256,784], index: 2, kind: output, shape index: {}]
  %s3 = sld [smem:[#allocation0]]
  $region155: #{tpu_custom_call.1} parent=0
    _
  %s5 = ssub.s32 1, %s3
  %s6 = scalar_select 0, %s5, %s3
  $region1: #{tpu_custom_call.1} parent=0
    #allocation2 [shape = 'u8[2097152]{0}', space=vmem, size = 0x200000, scoped, tag = 'input window, operand 0']
    #allocation3 [shape = 'u8[524288]{0}', space=vmem, size = 0x80000, scoped, tag = 'output window, operand 0']
    loop: start=0, step=1, limit=6
    $region2: #{tpu_custom_call.1} parent=1 // loop_pre_header
      _
    $region3: #{tpu_custom_call.1} parent=1 // loop_header
      %s8 = sphi 0, %s12
      %p9 = scmp.ge.s32.totalorder %s8, 6
      %s15 = sphi 0, %s27
      %s16 = sphi 0, %s23
      %s17 = sphi 0, %s15
      %s18 = sphi 0, %s16
      %s19 = sphi 0, %s17
      %s20 = sphi 0, %s18
      %s32 = sphi 0, %s34
      %s35 = sphi 0, %s32
      %s36 = sphi 0, %s35
      %s52 = sphi 0, %s36
      %s56 = sphi 0, %s56
      %s58 = sphi 0, %s56
      %s59 = sphi 0, %s58
      %s73 = sphi 0, %s59
      %s81 = sphi 0, %s83
      %s84 = sphi 0, %s81
      %s85 = sphi 0, %s84
      %s101 = sphi 0, %s85
    $region4: #{tpu_custom_call.1} parent=1 // loop_header_branch
      %11 = sbr.rel (%p9) target = $region8
    $region5: #{tpu_custom_call.1} parent=1 // loop_body
      %s13 = ssub.s32 %s8, 1
      %s14 = ssub.s32 %s8, 2
      %s21 = sadd.s32 1, %s16
      %p22 = scmp.ge.s32.totalorder %s21, 4
      %s23 = scalar_select %p22, 0, %s21
      %s24 = sadd.s32 1, %s15
      %s25 = scalar_select %p22, %s24, %s15
      %p26 = scmp.ge.s32.totalorder %s25, 1
      %s27 = scalar_select %p26, 0, %s25
      %s28 = ssub.s32 %s15, %s27
      %s29 = ssub.s32 %s16, %s23
      %s30 = sor.u32 %s28, %s29
      %p31 = scmp.eq.s32.totalorder %s30, 0
      %s33 = sadd.s32 %s32, 1
      %s34 = scalar_select %p31, %s32, %s33
      %p37 = pneg %p31
      %p38 = scmp.eq.s32.totalorder %s8, 3
      %p39 = por %p37, %p38
      %p40 = scmp.ne.s32.totalorder %s32, %s35
      %p41 = scmp.eq.s32.totalorder %s8, 0
      %p42 = por %p40, %p41
      %p43 = scmp.ne.s32.totalorder %s32, %s35
      %p44 = scmp.eq.s32.totalorder %s13, 3
      %p45 = por %p43, %p44
      %p46 = scmp.ne.s32.totalorder %s35, %s36
      %p47 = scmp.eq.s32.totalorder %s13, 0
      %p48 = por %p46, %p47
      %p49 = scmp.ne.s32.totalorder %s35, %s36
      %p50 = scmp.eq.s32.totalorder %s14, 3
      %p51 = por %p49, %p50
      %p53 = scmp.ne.s32.totalorder %s36, %s52
      %p54 = scmp.eq.s32.totalorder %s14, 0
      %p55 = por %p53, %p54
      %s57 = sadd.s32 %s56, 1
      %p60 = scmp.eq.s32.totalorder %s8, 3
      %p61 = scmp.ne.s32.totalorder %s56, %s58
      %p62 = scmp.eq.s32.totalorder %s8, 0
      %p63 = por %p61, %p62
      %p64 = scmp.ne.s32.totalorder %s56, %s58
      %p65 = scmp.eq.s32.totalorder %s13, 3
      %p66 = por %p64, %p65
      %p67 = scmp.ne.s32.totalorder %s58, %s59
      %p68 = scmp.eq.s32.totalorder %s13, 0
      %p69 = por %p67, %p68
      %p70 = scmp.ne.s32.totalorder %s58, %s59
      %p71 = scmp.eq.s32.totalorder %s14, 3
      %p72 = por %p70, %p71
      %p74 = scmp.ne.s32.totalorder %s59, %s73
      %p75 = scmp.eq.s32.totalorder %s14, 0
      %p76 = por %p74, %p75
      %s77 = ssub.s32 %s15, %s27
      %s78 = ssub.s32 %s16, %s23
      %s79 = sor.u32 %s77, %s78
      %p80 = scmp.eq.s32.totalorder %s79, 0
      %s82 = sadd.s32 %s81, 1
      %s83 = scalar_select %p80, %s81, %s82
      %p86 = pneg %p80
      %p87 = scmp.eq.s32.totalorder %s8, 3
      %p88 = por %p86, %p87
      %p89 = scmp.ne.s32.totalorder %s81, %s84
      %p90 = scmp.eq.s32.totalorder %s8, 0
      %p91 = por %p89, %p90
      %p92 = scmp.ne.s32.totalorder %s81, %s84
      %p93 = scmp.eq.s32.totalorder %s13, 3
      %p94 = por %p92, %p93
      %p95 = scmp.ne.s32.totalorder %s84, %s85
      %p96 = scmp.eq.s32.totalorder %s13, 0
      %p97 = por %p95, %p96
      %p98 = scmp.ne.s32.totalorder %s84, %s85
      %p99 = scmp.eq.s32.totalorder %s14, 3
      %p100 = por %p98, %p99
      %p102 = scmp.ne.s32.totalorder %s85, %s101
      %p103 = scmp.eq.s32.totalorder %s14, 0
      %p104 = por %p102, %p103
      %p105 = scmp.le.s32.totalorder 1, %s8
      %p106 = scmp.lt.s32.totalorder %s8, 5
      %p107 = pnand %p105, %p106
      %p108 = pneg %p107
      // Predicated region
      $region9: #{tpu_custom_call.1} parent=5 // pred_check
        _
      $region10: #{tpu_custom_call.1} parent=5 // pred_check_branch
        %110 = sbr.rel (%p107) target = $region12
      $region11: #{tpu_custom_call.1} parent=5 // pred_region
        %s111 = ssub.s32 %s8, 1
        // Predicated region
        $region13: #{tpu_custom_call.1} parent=11 // pred_check
          %p112 = pneg %p69
        $region14: #{tpu_custom_call.1} parent=11 // pred_check_branch
          %114 = sbr.rel (%p112) target = $region16
        $region15: #{tpu_custom_call.1} parent=11 // pred_region
          _
        $region16: #{tpu_custom_call.1} parent=11 // pred_fallthru
          _
      $region12: #{tpu_custom_call.1} parent=5 // pred_fallthru
        _
      %p115 = scmp.lt.s32.totalorder %s8, 4
      // Predicated region
      $region17: #{tpu_custom_call.1} parent=5 // pred_check
        %p116 = pneg %p115
      $region18: #{tpu_custom_call.1} parent=5 // pred_check_branch
        %118 = sbr.rel (%p116) target = $region20
      $region19: #{tpu_custom_call.1} parent=5 // pred_region
        // Predicated region
        $region21: #{tpu_custom_call.1} parent=19 // pred_check
          %p119 = pneg %p42
        $region22: #{tpu_custom_call.1} parent=19 // pred_check_branch
          %121 = sbr.rel (%p119) target = $region24
        $region23: #{tpu_custom_call.1} parent=19 // pred_region
          %s122 = sand.u32 %s32, 1
          %s123 = sand.u32 %s32, 1
          %s124 = smul.addr %s123, 2048
          %s125 = scalar_lea.vmem [#allocation2], %s124
          %s126 = smul.u32 2, %s16
          %s127 = ssub.s32 7, %s126
          %p128 = scmp.lt.s32.totalorder %s127, 2
          %s129 = scalar_select %p128, %s127, 2
          %s130 = smul.u32 16384, %s129
          %p131 = scmp.ne.s32.totalorder 0, %s130
          %s132 = smul.addr %s15, 896
          %s133 = sadd.s32 %s126, %s132
          %s134 = smul.addr %s133, 8
          %s135 = scalar_lea.vmem %s0, %s134
          %s136 = smul.u32 %s129, 8
          // Predicated region
          $region25: #{tpu_custom_call.1} parent=23 // pred_check
            %p137 = pneg %p131
          $region26: #{tpu_custom_call.1} parent=23 // pred_check_branch
            %139 = sbr.rel (%p137) target = $region28
          $region27: #{tpu_custom_call.1} parent=23 // pred_region
            %p140 = scmp.lt.u32.totalorder %s136, 8
            %p141 = pneg %p140
            // Predicated region
            $region29: #{tpu_custom_call.1} parent=27 // pred_check
              _
            $region30: #{tpu_custom_call.1} parent=27 // pred_check_branch
              %143 = sbr.rel (%p140) target = $region32
            $region31: #{tpu_custom_call.1} parent=27 // pred_region
              %s412 = sand.u32 %s136, 7
              %p413 = scmp.eq.s32.totalorder %s412, 0
              // Predicated region
              $region44: #{tpu_custom_call.1} parent=31 // pred_check
                %p414 = pneg %p413
              $region45: #{tpu_custom_call.1} parent=31 // pred_check_branch
                %416 = sbr.rel (%p414) target = $region47
              $region46: #{tpu_custom_call.1} parent=31 // pred_region
                %s417 = sshrl.u32 %s136, 3
                // While loop
                $region48: #{tpu_custom_call.1} parent=46 // loop_pre_header
                  _
                $region49: #{tpu_custom_call.1} parent=46 // loop_header
                  %s421 = sphi 0, %s423
                  %p422 = scmp.ge.s32.totalorder %s421, %s417
                  %s426 = sphi 0, %s687
                  %s427 = sphi %s135, %s690
                  %s428 = sphi %s125, %s691
                $region50: #{tpu_custom_call.1} parent=46 // loop_header_branch
                  %425 = sbr.rel (%p422) target = $region54
                $region51: #{tpu_custom_call.1} parent=46 // loop_body
                  %v429 = vld [vmem:[%s427] sm:$0xff]
                  %430 = vst [vmem:[%s428] sm:$0xff] %v429
                  %v431 = vld [vmem:[%s427 + $0x38] sm:$0xff]
                  %432 = vst [vmem:[%s428 + $0x10] sm:$0xff] %v431
                  %v433 = vld [vmem:[%s427 + $0x70] sm:$0xff]
                  %434 = vst [vmem:[%s428 + $0x20] sm:$0xff] %v433
                  %v435 = vld [vmem:[%s427 + $0xa8] sm:$0xff]
                  %436 = vst [vmem:[%s428 + $0x30] sm:$0xff] %v435
                  %v437 = vld [vmem:[%s427 + $0xe0] sm:$0xff]
                  %438 = vst [vmem:[%s428 + $0x40] sm:$0xff] %v437
                  %v439 = vld [vmem:[%s427 + $0x118] sm:$0xff]
                  %440 = vst [vmem:[%s428 + $0x50] sm:$0xff] %v439
                  %v441 = vld [vmem:[%s427 + $0x150] sm:$0xff]
                  %442 = vst [vmem:[%s428 + $0x60] sm:$0xff] %v441
                  %v443 = vld [vmem:[%s427 + $0x188] sm:$0xff]
                  %444 = vst [vmem:[%s428 + $0x70] sm:$0xff] %v443
                  %v445 = vld [vmem:[%s427 + $0x1c0] sm:$0xff]
                  %446 = vst [vmem:[%s428 + $0x80] sm:$0xff] %v445
                  %v447 = vld [vmem:[%s427 + $0x1f8] sm:$0xff]
                  %448 = vst [vmem:[%s428 + $0x90] sm:$0xff] %v447
                  %v449 = vld [vmem:[%s427 + $0x230] sm:$0xff]
                  %450 = vst [vmem:[%s428 + $0xa0] sm:$0xff] %v449
                  %v451 = vld [vmem:[%s427 + $0x268] sm:$0xff]
                  %452 = vst [vmem:[%s428 + $0xb0] sm:$0xff] %v451
                  %v453 = vld [vmem:[%s427 + $0x2a0] sm:$0xff]
                  %454 = vst [vmem:[%s428 + $0xc0] sm:$0xff] %v453
                  %v455 = vld [vmem:[%s427 + $0x2d8] sm:$0xff]
                  %456 = vst [vmem:[%s428 + $0xd0] sm:$0xff] %v455
                  %v457 = vld [vmem:[%s427 + $0x310] sm:$0xff]
                  %458 = vst [vmem:[%s428 + $0xe0] sm:$0xff] %v457
                  %v459 = vld [vmem:[%s427 + $0x348] sm:$0xff]
                  %460 = vst [vmem:[%s428 + $0xf0] sm:$0xff] %v459
                  %v461 = vld [vmem:[%s427 + $0x380] sm:$0xff]
                  %462 = vst [vmem:[%s428 + $0x100] sm:$0xff] %v461
                  %v463 = vld [vmem:[%s427 + $0x3b8] sm:$0xff]
                  %464 = vst [vmem:[%s428 + $0x110] sm:$0xff] %v463
                  %v465 = vld [vmem:[%s427 + $0x3f0] sm:$0xff]
                  %466 = vst [vmem:[%s428 + $0x120] sm:$0xff] %v465
                  %v467 = vld [vmem:[%s427 + $0x428] sm:$0xff]
                  %468 = vst [vmem:[%s428 + $0x130] sm:$0xff] %v467
                  %v469 = vld [vmem:[%s427 + $0x460] sm:$0xff]
                  %470 = vst [vmem:[%s428 + $0x140] sm:$0xff] %v469
                  %v471 = vld [vmem:[%s427 + $0x498] sm:$0xff]
                  %472 = vst [vmem:[%s428 + $0x150] sm:$0xff] %v471
                  %v473 = vld [vmem:[%s427 + $0x4d0] sm:$0xff]
                  %474 = vst [vmem:[%s428 + $0x160] sm:$0xff] %v473
                  %v475 = vld [vmem:[%s427 + $0x508] sm:$0xff]
                  %476 = vst [vmem:[%s428 + $0x170] sm:$0xff] %v475
                  %v477 = vld [vmem:[%s427 + $0x540] sm:$0xff]
                  %478 = vst [vmem:[%s428 + $0x180] sm:$0xff] %v477
                  %v479 = vld [vmem:[%s427 + $0x578] sm:$0xff]
                  %480 = vst [vmem:[%s428 + $0x190] sm:$0xff] %v479
                  %v481 = vld [vmem:[%s427 + $0x5b0] sm:$0xff]
                  %482 = vst [vmem:[%s428 + $0x1a0] sm:$0xff] %v481
                  %v483 = vld [vmem:[%s427 + $0x5e8] sm:$0xff]
                  %484 = vst [vmem:[%s428 + $0x1b0] sm:$0xff] %v483
                  %v485 = vld [vmem:[%s427 + $0x620] sm:$0xff]
                  %486 = vst [vmem:[%s428 + $0x1c0] sm:$0xff] %v485
                  %v487 = vld [vmem:[%s427 + $0x658] sm:$0xff]
                  %488 = vst [vmem:[%s428 + $0x1d0] sm:$0xff] %v487
                  %v489 = vld [vmem:[%s427 + $0x690] sm:$0xff]
                  %490 = vst [vmem:[%s428 + $0x1e0] sm:$0xff] %v489
                  %v491 = vld [vmem:[%s427 + $0x6c8] sm:$0xff]
                  %492 = vst [vmem:[%s428 + $0x1f0] sm:$0xff] %v491
                  %v493 = vld [vmem:[%s427 + $0x700] sm:$0xff]
                  %494 = vst [vmem:[%s428 + $0x200] sm:$0xff] %v493
                  %v495 = vld [vmem:[%s427 + $0x738] sm:$0xff]
                  %496 = vst [vmem:[%s428 + $0x210] sm:$0xff] %v495
                  %v497 = vld [vmem:[%s427 + $0x770] sm:$0xff]
                  %498 = vst [vmem:[%s428 + $0x220] sm:$0xff] %v497
                  %v499 = vld [vmem:[%s427 + $0x7a8] sm:$0xff]
                  %500 = vst [vmem:[%s428 + $0x230] sm:$0xff] %v499
                  %v501 = vld [vmem:[%s427 + $0x7e0] sm:$0xff]
                  %502 = vst [vmem:[%s428 + $0x240] sm:$0xff] %v501
                  %v503 = vld [vmem:[%s427 + $0x818] sm:$0xff]
                  %504 = vst [vmem:[%s428 + $0x250] sm:$0xff] %v503
                  %v505 = vld [vmem:[%s427 + $0x850] sm:$0xff]
                  %506 = vst [vmem:[%s428 + $0x260] sm:$0xff] %v505
                  %v507 = vld [vmem:[%s427 + $0x888] sm:$0xff]
                  %508 = vst [vmem:[%s428 + $0x270] sm:$0xff] %v507
                  %v509 = vld [vmem:[%s427 + $0x8c0] sm:$0xff]
                  %510 = vst [vmem:[%s428 + $0x280] sm:$0xff] %v509
                  %v511 = vld [vmem:[%s427 + $0x8f8] sm:$0xff]
                  %512 = vst [vmem:[%s428 + $0x290] sm:$0xff] %v511
                  %v513 = vld [vmem:[%s427 + $0x930] sm:$0xff]
                  %514 = vst [vmem:[%s428 + $0x2a0] sm:$0xff] %v513
                  %v515 = vld [vmem:[%s427 + $0x968] sm:$0xff]
                  %516 = vst [vmem:[%s428 + $0x2b0] sm:$0xff] %v515
                  %v517 = vld [vmem:[%s427 + $0x9a0] sm:$0xff]
                  %518 = vst [vmem:[%s428 + $0x2c0] sm:$0xff] %v517
                  %v519 = vld [vmem:[%s427 + $0x9d8] sm:$0xff]
                  %520 = vst [vmem:[%s428 + $0x2d0] sm:$0xff] %v519
                  %v521 = vld [vmem:[%s427 + $0xa10] sm:$0xff]
                  %522 = vst [vmem:[%s428 + $0x2e0] sm:$0xff] %v521
                  %v523 = vld [vmem:[%s427 + $0xa48] sm:$0xff]
                  %524 = vst [vmem:[%s428 + $0x2f0] sm:$0xff] %v523
                  %v525 = vld [vmem:[%s427 + $0xa80] sm:$0xff]
                  %526 = vst [vmem:[%s428 + $0x300] sm:$0xff] %v525
                  %v527 = vld [vmem:[%s427 + $0xab8] sm:$0xff]
                  %528 = vst [vmem:[%s428 + $0x310] sm:$0xff] %v527
                  %v529 = vld [vmem:[%s427 + $0xaf0] sm:$0xff]
                  %530 = vst [vmem:[%s428 + $0x320] sm:$0xff] %v529
                  %v531 = vld [vmem:[%s427 + $0xb28] sm:$0xff]
                  %532 = vst [vmem:[%s428 + $0x330] sm:$0xff] %v531
                  %v533 = vld [vmem:[%s427 + $0xb60] sm:$0xff]
                  %534 = vst [vmem:[%s428 + $0x340] sm:$0xff] %v533
                  %v535 = vld [vmem:[%s427 + $0xb98] sm:$0xff]
                  %536 = vst [vmem:[%s428 + $0x350] sm:$0xff] %v535
                  %v537 = vld [vmem:[%s427 + $0xbd0] sm:$0xff]
                  %538 = vst [vmem:[%s428 + $0x360] sm:$0xff] %v537
                  %v539 = vld [vmem:[%s427 + $0xc08] sm:$0xff]
                  %540 = vst [vmem:[%s428 + $0x370] sm:$0xff] %v539
                  %v541 = vld [vmem:[%s427 + $0xc40] sm:$0xff]
                  %542 = vst [vmem:[%s428 + $0x380] sm:$0xff] %v541
                  %v543 = vld [vmem:[%s427 + $0xc78] sm:$0xff]
                  %544 = vst [vmem:[%s428 + $0x390] sm:$0xff] %v543
                  %v545 = vld [vmem:[%s427 + $0xcb0] sm:$0xff]
                  %546 = vst [vmem:[%s428 + $0x3a0] sm:$0xff] %v545
                  %v547 = vld [vmem:[%s427 + $0xce8] sm:$0xff]
                  %548 = vst [vmem:[%s428 + $0x3b0] sm:$0xff] %v547
                  %v549 = vld [vmem:[%s427 + $0xd20] sm:$0xff]
                  %550 = vst [vmem:[%s428 + $0x3c0] sm:$0xff] %v549
                  %v551 = vld [vmem:[%s427 + $0xd58] sm:$0xff]
                  %552 = vst [vmem:[%s428 + $0x3d0] sm:$0xff] %v551
                  %v553 = vld [vmem:[%s427 + $0xd90] sm:$0xff]
                  %554 = vst [vmem:[%s428 + $0x3e0] sm:$0xff] %v553
                  %v555 = vld [vmem:[%s427 + $0xdc8] sm:$0xff]
                  %556 = vst [vmem:[%s428 + $0x3f0] sm:$0xff] %v555
                  %v557 = vld [vmem:[%s427 + $0xe00] sm:$0xff]
                  %558 = vst [vmem:[%s428 + $0x400] sm:$0xff] %v557
                  %v559 = vld [vmem:[%s427 + $0xe38] sm:$0xff]
                  %560 = vst [vmem:[%s428 + $0x410] sm:$0xff] %v559
                  %v561 = vld [vmem:[%s427 + $0xe70] sm:$0xff]
                  %562 = vst [vmem:[%s428 + $0x420] sm:$0xff] %v561
                  %v563 = vld [vmem:[%s427 + $0xea8] sm:$0xff]
                  %564 = vst [vmem:[%s428 + $0x430] sm:$0xff] %v563
                  %v565 = vld [vmem:[%s427 + $0xee0] sm:$0xff]
                  %566 = vst [vmem:[%s428 + $0x440] sm:$0xff] %v565
                  %v567 = vld [vmem:[%s427 + $0xf18] sm:$0xff]
                  %568 = vst [vmem:[%s428 + $0x450] sm:$0xff] %v567
                  %v569 = vld [vmem:[%s427 + $0xf50] sm:$0xff]
                  %570 = vst [vmem:[%s428 + $0x460] sm:$0xff] %v569
                  %v571 = vld [vmem:[%s427 + $0xf88] sm:$0xff]
                  %572 = vst [vmem:[%s428 + $0x470] sm:$0xff] %v571
                  %v573 = vld [vmem:[%s427 + $0xfc0] sm:$0xff]
                  %574 = vst [vmem:[%s428 + $0x480] sm:$0xff] %v573
                  %v575 = vld [vmem:[%s427 + $0xff8] sm:$0xff]
                  %576 = vst [vmem:[%s428 + $0x490] sm:$0xff] %v575
                  %v577 = vld [vmem:[%s427 + $0x1030] sm:$0xff]
                  %578 = vst [vmem:[%s428 + $0x4a0] sm:$0xff] %v577
                  %v579 = vld [vmem:[%s427 + $0x1068] sm:$0xff]
                  %580 = vst [vmem:[%s428 + $0x4b0] sm:$0xff] %v579
                  %v581 = vld [vmem:[%s427 + $0x10a0] sm:$0xff]
                  %582 = vst [vmem:[%s428 + $0x4c0] sm:$0xff] %v581
                  %v583 = vld [vmem:[%s427 + $0x10d8] sm:$0xff]
                  %584 = vst [vmem:[%s428 + $0x4d0] sm:$0xff] %v583
                  %v585 = vld [vmem:[%s427 + $0x1110] sm:$0xff]
                  %586 = vst [vmem:[%s428 + $0x4e0] sm:$0xff] %v585
                  %v587 = vld [vmem:[%s427 + $0x1148] sm:$0xff]
                  %588 = vst [vmem:[%s428 + $0x4f0] sm:$0xff] %v587
                  %v589 = vld [vmem:[%s427 + $0x1180] sm:$0xff]
                  %590 = vst [vmem:[%s428 + $0x500] sm:$0xff] %v589
                  %v591 = vld [vmem:[%s427 + $0x11b8] sm:$0xff]
                  %592 = vst [vmem:[%s428 + $0x510] sm:$0xff] %v591
                  %v593 = vld [vmem:[%s427 + $0x11f0] sm:$0xff]
                  %594 = vst [vmem:[%s428 + $0x520] sm:$0xff] %v593
                  %v595 = vld [vmem:[%s427 + $0x1228] sm:$0xff]
                  %596 = vst [vmem:[%s428 + $0x530] sm:$0xff] %v595
                  %v597 = vld [vmem:[%s427 + $0x1260] sm:$0xff]
                  %598 = vst [vmem:[%s428 + $0x540] sm:$0xff] %v597
                  %v599 = vld [vmem:[%s427 + $0x1298] sm:$0xff]
                  %600 = vst [vmem:[%s428 + $0x550] sm:$0xff] %v599
                  %v601 = vld [vmem:[%s427 + $0x12d0] sm:$0xff]
                  %602 = vst [vmem:[%s428 + $0x560] sm:$0xff] %v601
                  %v603 = vld [vmem:[%s427 + $0x1308] sm:$0xff]
                  %604 = vst [vmem:[%s428 + $0x570] sm:$0xff] %v603
                  %v605 = vld [vmem:[%s427 + $0x1340] sm:$0xff]
                  %606 = vst [vmem:[%s428 + $0x580] sm:$0xff] %v605
                  %v607 = vld [vmem:[%s427 + $0x1378] sm:$0xff]
                  %608 = vst [vmem:[%s428 + $0x590] sm:$0xff] %v607
                  %v609 = vld [vmem:[%s427 + $0x13b0] sm:$0xff]
                  %610 = vst [vmem:[%s428 + $0x5a0] sm:$0xff] %v609
                  %v611 = vld [vmem:[%s427 + $0x13e8] sm:$0xff]
                  %612 = vst [vmem:[%s428 + $0x5b0] sm:$0xff] %v611
                  %v613 = vld [vmem:[%s427 + $0x1420] sm:$0xff]
                  %614 = vst [vmem:[%s428 + $0x5c0] sm:$0xff] %v613
                  %v615 = vld [vmem:[%s427 + $0x1458] sm:$0xff]
                  %616 = vst [vmem:[%s428 + $0x5d0] sm:$0xff] %v615
                  %v617 = vld [vmem:[%s427 + $0x1490] sm:$0xff]
                  %618 = vst [vmem:[%s428 + $0x5e0] sm:$0xff] %v617
                  %v619 = vld [vmem:[%s427 + $0x14c8] sm:$0xff]
                  %620 = vst [vmem:[%s428 + $0x5f0] sm:$0xff] %v619
                  %v621 = vld [vmem:[%s427 + $0x1500] sm:$0xff]
                  %622 = vst [vmem:[%s428 + $0x600] sm:$0xff] %v621
                  %v623 = vld [vmem:[%s427 + $0x1538] sm:$0xff]
                  %624 = vst [vmem:[%s428 + $0x610] sm:$0xff] %v623
                  %v625 = vld [vmem:[%s427 + $0x1570] sm:$0xff]
                  %626 = vst [vmem:[%s428 + $0x620] sm:$0xff] %v625
                  %v627 = vld [vmem:[%s427 + $0x15a8] sm:$0xff]
                  %628 = vst [vmem:[%s428 + $0x630] sm:$0xff] %v627
                  %v629 = vld [vmem:[%s427 + $0x15e0] sm:$0xff]
                  %630 = vst [vmem:[%s428 + $0x640] sm:$0xff] %v629
                  %v631 = vld [vmem:[%s427 + $0x1618] sm:$0xff]
                  %632 = vst [vmem:[%s428 + $0x650] sm:$0xff] %v631
                  %v633 = vld [vmem:[%s427 + $0x1650] sm:$0xff]
                  %634 = vst [vmem:[%s428 + $0x660] sm:$0xff] %v633
                  %v635 = vld [vmem:[%s427 + $0x1688] sm:$0xff]
                  %636 = vst [vmem:[%s428 + $0x670] sm:$0xff] %v635
                  %v637 = vld [vmem:[%s427 + $0x16c0] sm:$0xff]
                  %638 = vst [vmem:[%s428 + $0x680] sm:$0xff] %v637
                  %v639 = vld [vmem:[%s427 + $0x16f8] sm:$0xff]
                  %640 = vst [vmem:[%s428 + $0x690] sm:$0xff] %v639
                  %v641 = vld [vmem:[%s427 + $0x1730] sm:$0xff]
                  %642 = vst [vmem:[%s428 + $0x6a0] sm:$0xff] %v641
                  %v643 = vld [vmem:[%s427 + $0x1768] sm:$0xff]
                  %644 = vst [vmem:[%s428 + $0x6b0] sm:$0xff] %v643
                  %v645 = vld [vmem:[%s427 + $0x17a0] sm:$0xff]
                  %646 = vst [vmem:[%s428 + $0x6c0] sm:$0xff] %v645
                  %v647 = vld [vmem:[%s427 + $0x17d8] sm:$0xff]
                  %648 = vst [vmem:[%s428 + $0x6d0] sm:$0xff] %v647
                  %v649 = vld [vmem:[%s427 + $0x1810] sm:$0xff]
                  %650 = vst [vmem:[%s428 + $0x6e0] sm:$0xff] %v649
                  %v651 = vld [vmem:[%s427 + $0x1848] sm:$0xff]
                  %652 = vst [vmem:[%s428 + $0x6f0] sm:$0xff] %v651
                  %v653 = vld [vmem:[%s427 + $0x1880] sm:$0xff]
                  %654 = vst [vmem:[%s428 + $0x700] sm:$0xff] %v653
                  %v655 = vld [vmem:[%s427 + $0x18b8] sm:$0xff]
                  %656 = vst [vmem:[%s428 + $0x710] sm:$0xff] %v655
                  %v657 = vld [vmem:[%s427 + $0x18f0] sm:$0xff]
                  %658 = vst [vmem:[%s428 + $0x720] sm:$0xff] %v657
                  %v659 = vld [vmem:[%s427 + $0x1928] sm:$0xff]
                  %660 = vst [vmem:[%s428 + $0x730] sm:$0xff] %v659
                  %v661 = vld [vmem:[%s427 + $0x1960] sm:$0xff]
                  %662 = vst [vmem:[%s428 + $0x740] sm:$0xff] %v661
                  %v663 = vld [vmem:[%s427 + $0x1998] sm:$0xff]
                  %664 = vst [vmem:[%s428 + $0x750] sm:$0xff] %v663
                  %v665 = vld [vmem:[%s427 + $0x19d0] sm:$0xff]
                  %666 = vst [vmem:[%s428 + $0x760] sm:$0xff] %v665
                  %v667 = vld [vmem:[%s427 + $0x1a08] sm:$0xff]
                  %668 = vst [vmem:[%s428 + $0x770] sm:$0xff] %v667
                  %v669 = vld [vmem:[%s427 + $0x1a40] sm:$0xff]
                  %670 = vst [vmem:[%s428 + $0x780] sm:$0xff] %v669
                  %v671 = vld [vmem:[%s427 + $0x1a78] sm:$0xff]
                  %672 = vst [vmem:[%s428 + $0x790] sm:$0xff] %v671
                  %v673 = vld [vmem:[%s427 + $0x1ab0] sm:$0xff]
                  %674 = vst [vmem:[%s428 + $0x7a0] sm:$0xff] %v673
                  %v675 = vld [vmem:[%s427 + $0x1ae8] sm:$0xff]
                  %676 = vst [vmem:[%s428 + $0x7b0] sm:$0xff] %v675
                  %v677 = vld [vmem:[%s427 + $0x1b20] sm:$0xff]
                  %678 = vst [vmem:[%s428 + $0x7c0] sm:$0xff] %v677
                  %v679 = vld [vmem:[%s427 + $0x1b58] sm:$0xff]
                  %680 = vst [vmem:[%s428 + $0x7d0] sm:$0xff] %v679
                  %v681 = vld [vmem:[%s427 + $0x1b90] sm:$0xff]
                  %682 = vst [vmem:[%s428 + $0x7e0] sm:$0xff] %v681
                  %v683 = vld [vmem:[%s427 + $0x1bc8] sm:$0xff]
                  %684 = vst [vmem:[%s428 + $0x7f0] sm:$0xff] %v683
                  %s685 = sadd.s32 1, %s426
                  %p686 = scmp.ge.s32.totalorder %s685, %s417
                  %s687 = scalar_select %p686, 0, %s685
                  %s688 = smul.u32 %s687, 8
                  %s689 = smul.u32 %s687, 8
                  %s690 = scalar_lea.vmem %s135, %s688
                  %s691 = scalar_lea.vmem %s125, %s689 [#allocation2]
                $region52: #{tpu_custom_call.1} parent=46 // loop_footer
                  %s423 = sadd.s32 %s421, 1
                $region53: #{tpu_custom_call.1} parent=46 // loop_footer_branch
                  %420 = sbr.rel target = $region49
                $region54: #{tpu_custom_call.1} parent=46 // loop_exit
                  _
              $region47: #{tpu_custom_call.1} parent=31 // pred_fallthru
                _
              %p692 = pneg %p413
              // Predicated region
              $region55: #{tpu_custom_call.1} parent=31 // pred_check
                _
              $region56: #{tpu_custom_call.1} parent=31 // pred_check_branch
                %694 = sbr.rel (%p413) target = $region58
              $region57: #{tpu_custom_call.1} parent=31 // pred_region
                %s695 = sand.u32 %s136, 7
                %s696 = ssub.s32 %s136, %s695
                %s697 = scalar_lea.vmem %s135, %s696
                %s698 = ssub.s32 %s136, %s695
                %s699 = scalar_lea.vmem %s125, %s698 [#allocation2]
                %s700 = sshrl.u32 %s136, 3
                // While loop
                $region59: #{tpu_custom_call.1} parent=57 // loop_pre_header
                  _
                $region60: #{tpu_custom_call.1} parent=57 // loop_header
                  %s704 = sphi 0, %s706
                  %p705 = scmp.ge.s32.totalorder %s704, %s700
                  %s709 = sphi 0, %s970
                  %s710 = sphi %s135, %s973
                  %s711 = sphi %s125, %s974
                $region61: #{tpu_custom_call.1} parent=57 // loop_header_branch
                  %708 = sbr.rel (%p705) target = $region65
                $region62: #{tpu_custom_call.1} parent=57 // loop_body
                  %v712 = vld [vmem:[%s710] sm:$0xff]
                  %713 = vst [vmem:[%s711] sm:$0xff] %v712
                  %v714 = vld [vmem:[%s710 + $0x38] sm:$0xff]
                  %715 = vst [vmem:[%s711 + $0x10] sm:$0xff] %v714
                  %v716 = vld [vmem:[%s710 + $0x70] sm:$0xff]
                  %717 = vst [vmem:[%s711 + $0x20] sm:$0xff] %v716
                  %v718 = vld [vmem:[%s710 + $0xa8] sm:$0xff]
                  %719 = vst [vmem:[%s711 + $0x30] sm:$0xff] %v718
                  %v720 = vld [vmem:[%s710 + $0xe0] sm:$0xff]
                  %721 = vst [vmem:[%s711 + $0x40] sm:$0xff] %v720
                  %v722 = vld [vmem:[%s710 + $0x118] sm:$0xff]
                  %723 = vst [vmem:[%s711 + $0x50] sm:$0xff] %v722
                  %v724 = vld [vmem:[%s710 + $0x150] sm:$0xff]
                  %725 = vst [vmem:[%s711 + $0x60] sm:$0xff] %v724
                  %v726 = vld [vmem:[%s710 + $0x188] sm:$0xff]
                  %727 = vst [vmem:[%s711 + $0x70] sm:$0xff] %v726
                  %v728 = vld [vmem:[%s710 + $0x1c0] sm:$0xff]
                  %729 = vst [vmem:[%s711 + $0x80] sm:$0xff] %v728
                  %v730 = vld [vmem:[%s710 + $0x1f8] sm:$0xff]
                  %731 = vst [vmem:[%s711 + $0x90] sm:$0xff] %v730
                  %v732 = vld [vmem:[%s710 + $0x230] sm:$0xff]
                  %733 = vst [vmem:[%s711 + $0xa0] sm:$0xff] %v732
                  %v734 = vld [vmem:[%s710 + $0x268] sm:$0xff]
                  %735 = vst [vmem:[%s711 + $0xb0] sm:$0xff] %v734
                  %v736 = vld [vmem:[%s710 + $0x2a0] sm:$0xff]
                  %737 = vst [vmem:[%s711 + $0xc0] sm:$0xff] %v736
                  %v738 = vld [vmem:[%s710 + $0x2d8] sm:$0xff]
                  %739 = vst [vmem:[%s711 + $0xd0] sm:$0xff] %v738
                  %v740 = vld [vmem:[%s710 + $0x310] sm:$0xff]
                  %741 = vst [vmem:[%s711 + $0xe0] sm:$0xff] %v740
                  %v742 = vld [vmem:[%s710 + $0x348] sm:$0xff]
                  %743 = vst [vmem:[%s711 + $0xf0] sm:$0xff] %v742
                  %v744 = vld [vmem:[%s710 + $0x380] sm:$0xff]
                  %745 = vst [vmem:[%s711 + $0x100] sm:$0xff] %v744
                  %v746 = vld [vmem:[%s710 + $0x3b8] sm:$0xff]
                  %747 = vst [vmem:[%s711 + $0x110] sm:$0xff] %v746
                  %v748 = vld [vmem:[%s710 + $0x3f0] sm:$0xff]
                  %749 = vst [vmem:[%s711 + $0x120] sm:$0xff] %v748
                  %v750 = vld [vmem:[%s710 + $0x428] sm:$0xff]
                  %751 = vst [vmem:[%s711 + $0x130] sm:$0xff] %v750
                  %v752 = vld [vmem:[%s710 + $0x460] sm:$0xff]
                  %753 = vst [vmem:[%s711 + $0x140] sm:$0xff] %v752
                  %v754 = vld [vmem:[%s710 + $0x498] sm:$0xff]
                  %755 = vst [vmem:[%s711 + $0x150] sm:$0xff] %v754
                  %v756 = vld [vmem:[%s710 + $0x4d0] sm:$0xff]
                  %757 = vst [vmem:[%s711 + $0x160] sm:$0xff] %v756
                  %v758 = vld [vmem:[%s710 + $0x508] sm:$0xff]
                  %759 = vst [vmem:[%s711 + $0x170] sm:$0xff] %v758
                  %v760 = vld [vmem:[%s710 + $0x540] sm:$0xff]
                  %761 = vst [vmem:[%s711 + $0x180] sm:$0xff] %v760
                  %v762 = vld [vmem:[%s710 + $0x578] sm:$0xff]
                  %763 = vst [vmem:[%s711 + $0x190] sm:$0xff] %v762
                  %v764 = vld [vmem:[%s710 + $0x5b0] sm:$0xff]
                  %765 = vst [vmem:[%s711 + $0x1a0] sm:$0xff] %v764
                  %v766 = vld [vmem:[%s710 + $0x5e8] sm:$0xff]
                  %767 = vst [vmem:[%s711 + $0x1b0] sm:$0xff] %v766
                  %v768 = vld [vmem:[%s710 + $0x620] sm:$0xff]
                  %769 = vst [vmem:[%s711 + $0x1c0] sm:$0xff] %v768
                  %v770 = vld [vmem:[%s710 + $0x658] sm:$0xff]
                  %771 = vst [vmem:[%s711 + $0x1d0] sm:$0xff] %v770
                  %v772 = vld [vmem:[%s710 + $0x690] sm:$0xff]
                  %773 = vst [vmem:[%s711 + $0x1e0] sm:$0xff] %v772
                  %v774 = vld [vmem:[%s710 + $0x6c8] sm:$0xff]
                  %775 = vst [vmem:[%s711 + $0x1f0] sm:$0xff] %v774
                  %v776 = vld [vmem:[%s710 + $0x700] sm:$0xff]
                  %777 = vst [vmem:[%s711 + $0x200] sm:$0xff] %v776
                  %v778 = vld [vmem:[%s710 + $0x738] sm:$0xff]
                  %779 = vst [vmem:[%s711 + $0x210] sm:$0xff] %v778
                  %v780 = vld [vmem:[%s710 + $0x770] sm:$0xff]
                  %781 = vst [vmem:[%s711 + $0x220] sm:$0xff] %v780
                  %v782 = vld [vmem:[%s710 + $0x7a8] sm:$0xff]
                  %783 = vst [vmem:[%s711 + $0x230] sm:$0xff] %v782
                  %v784 = vld [vmem:[%s710 + $0x7e0] sm:$0xff]
                  %785 = vst [vmem:[%s711 + $0x240] sm:$0xff] %v784
                  %v786 = vld [vmem:[%s710 + $0x818] sm:$0xff]
                  %787 = vst [vmem:[%s711 + $0x250] sm:$0xff] %v786
                  %v788 = vld [vmem:[%s710 + $0x850] sm:$0xff]
                  %789 = vst [vmem:[%s711 + $0x260] sm:$0xff] %v788
                  %v790 = vld [vmem:[%s710 + $0x888] sm:$0xff]
                  %791 = vst [vmem:[%s711 + $0x270] sm:$0xff] %v790
                  %v792 = vld [vmem:[%s710 + $0x8c0] sm:$0xff]
                  %793 = vst [vmem:[%s711 + $0x280] sm:$0xff] %v792
                  %v794 = vld [vmem:[%s710 + $0x8f8] sm:$0xff]
                  %795 = vst [vmem:[%s711 + $0x290] sm:$0xff] %v794
                  %v796 = vld [vmem:[%s710 + $0x930] sm:$0xff]
                  %797 = vst [vmem:[%s711 + $0x2a0] sm:$0xff] %v796
                  %v798 = vld [vmem:[%s710 + $0x968] sm:$0xff]
                  %799 = vst [vmem:[%s711 + $0x2b0] sm:$0xff] %v798
                  %v800 = vld [vmem:[%s710 + $0x9a0] sm:$0xff]
                  %801 = vst [vmem:[%s711 + $0x2c0] sm:$0xff] %v800
                  %v802 = vld [vmem:[%s710 + $0x9d8] sm:$0xff]
                  %803 = vst [vmem:[%s711 + $0x2d0] sm:$0xff] %v802
                  %v804 = vld [vmem:[%s710 + $0xa10] sm:$0xff]
                  %805 = vst [vmem:[%s711 + $0x2e0] sm:$0xff] %v804
                  %v806 = vld [vmem:[%s710 + $0xa48] sm:$0xff]
                  %807 = vst [vmem:[%s711 + $0x2f0] sm:$0xff] %v806
                  %v808 = vld [vmem:[%s710 + $0xa80] sm:$0xff]
                  %809 = vst [vmem:[%s711 + $0x300] sm:$0xff] %v808
                  %v810 = vld [vmem:[%s710 + $0xab8] sm:$0xff]
                  %811 = vst [vmem:[%s711 + $0x310] sm:$0xff] %v810
                  %v812 = vld [vmem:[%s710 + $0xaf0] sm:$0xff]
                  %813 = vst [vmem:[%s711 + $0x320] sm:$0xff] %v812
                  %v814 = vld [vmem:[%s710 + $0xb28] sm:$0xff]
                  %815 = vst [vmem:[%s711 + $0x330] sm:$0xff] %v814
                  %v816 = vld [vmem:[%s710 + $0xb60] sm:$0xff]
                  %817 = vst [vmem:[%s711 + $0x340] sm:$0xff] %v816
                  %v818 = vld [vmem:[%s710 + $0xb98] sm:$0xff]
                  %819 = vst [vmem:[%s711 + $0x350] sm:$0xff] %v818
                  %v820 = vld [vmem:[%s710 + $0xbd0] sm:$0xff]
                  %821 = vst [vmem:[%s711 + $0x360] sm:$0xff] %v820
                  %v822 = vld [vmem:[%s710 + $0xc08] sm:$0xff]
                  %823 = vst [vmem:[%s711 + $0x370] sm:$0xff] %v822
                  %v824 = vld [vmem:[%s710 + $0xc40] sm:$0xff]
                  %825 = vst [vmem:[%s711 + $0x380] sm:$0xff] %v824
                  %v826 = vld [vmem:[%s710 + $0xc78] sm:$0xff]
                  %827 = vst [vmem:[%s711 + $0x390] sm:$0xff] %v826
                  %v828 = vld [vmem:[%s710 + $0xcb0] sm:$0xff]
                  %829 = vst [vmem:[%s711 + $0x3a0] sm:$0xff] %v828
                  %v830 = vld [vmem:[%s710 + $0xce8] sm:$0xff]
                  %831 = vst [vmem:[%s711 + $0x3b0] sm:$0xff] %v830
                  %v832 = vld [vmem:[%s710 + $0xd20] sm:$0xff]
                  %833 = vst [vmem:[%s711 + $0x3c0] sm:$0xff] %v832
                  %v834 = vld [vmem:[%s710 + $0xd58] sm:$0xff]
                  %835 = vst [vmem:[%s711 + $0x3d0] sm:$0xff] %v834
                  %v836 = vld [vmem:[%s710 + $0xd90] sm:$0xff]
                  %837 = vst [vmem:[%s711 + $0x3e0] sm:$0xff] %v836
                  %v838 = vld [vmem:[%s710 + $0xdc8] sm:$0xff]
                  %839 = vst [vmem:[%s711 + $0x3f0] sm:$0xff] %v838
                  %v840 = vld [vmem:[%s710 + $0xe00] sm:$0xff]
                  %841 = vst [vmem:[%s711 + $0x400] sm:$0xff] %v840
                  %v842 = vld [vmem:[%s710 + $0xe38] sm:$0xff]
                  %843 = vst [vmem:[%s711 + $0x410] sm:$0xff] %v842
                  %v844 = vld [vmem:[%s710 + $0xe70] sm:$0xff]
                  %845 = vst [vmem:[%s711 + $0x420] sm:$0xff] %v844
                  %v846 = vld [vmem:[%s710 + $0xea8] sm:$0xff]
                  %847 = vst [vmem:[%s711 + $0x430] sm:$0xff] %v846
                  %v848 = vld [vmem:[%s710 + $0xee0] sm:$0xff]
                  %849 = vst [vmem:[%s711 + $0x440] sm:$0xff] %v848
                  %v850 = vld [vmem:[%s710 + $0xf18] sm:$0xff]
                  %851 = vst [vmem:[%s711 + $0x450] sm:$0xff] %v850
                  %v852 = vld [vmem:[%s710 + $0xf50] sm:$0xff]
                  %853 = vst [vmem:[%s711 + $0x460] sm:$0xff] %v852
                  %v854 = vld [vmem:[%s710 + $0xf88] sm:$0xff]
                  %855 = vst [vmem:[%s711 + $0x470] sm:$0xff] %v854
                  %v856 = vld [vmem:[%s710 + $0xfc0] sm:$0xff]
                  %857 = vst [vmem:[%s711 + $0x480] sm:$0xff] %v856
                  %v858 = vld [vmem:[%s710 + $0xff8] sm:$0xff]
                  %859 = vst [vmem:[%s711 + $0x490] sm:$0xff] %v858
                  %v860 = vld [vmem:[%s710 + $0x1030] sm:$0xff]
                  %861 = vst [vmem:[%s711 + $0x4a0] sm:$0xff] %v860
                  %v862 = vld [vmem:[%s710 + $0x1068] sm:$0xff]
                  %863 = vst [vmem:[%s711 + $0x4b0] sm:$0xff] %v862
                  %v864 = vld [vmem:[%s710 + $0x10a0] sm:$0xff]
                  %865 = vst [vmem:[%s711 + $0x4c0] sm:$0xff] %v864
                  %v866 = vld [vmem:[%s710 + $0x10d8] sm:$0xff]
                  %867 = vst [vmem:[%s711 + $0x4d0] sm:$0xff] %v866
                  %v868 = vld [vmem:[%s710 + $0x1110] sm:$0xff]
                  %869 = vst [vmem:[%s711 + $0x4e0] sm:$0xff] %v868
                  %v870 = vld [vmem:[%s710 + $0x1148] sm:$0xff]
                  %871 = vst [vmem:[%s711 + $0x4f0] sm:$0xff] %v870
                  %v872 = vld [vmem:[%s710 + $0x1180] sm:$0xff]
                  %873 = vst [vmem:[%s711 + $0x500] sm:$0xff] %v872
                  %v874 = vld [vmem:[%s710 + $0x11b8] sm:$0xff]
                  %875 = vst [vmem:[%s711 + $0x510] sm:$0xff] %v874
                  %v876 = vld [vmem:[%s710 + $0x11f0] sm:$0xff]
                  %877 = vst [vmem:[%s711 + $0x520] sm:$0xff] %v876
                  %v878 = vld [vmem:[%s710 + $0x1228] sm:$0xff]
                  %879 = vst [vmem:[%s711 + $0x530] sm:$0xff] %v878
                  %v880 = vld [vmem:[%s710 + $0x1260] sm:$0xff]
                  %881 = vst [vmem:[%s711 + $0x540] sm:$0xff] %v880
                  %v882 = vld [vmem:[%s710 + $0x1298] sm:$0xff]
                  %883 = vst [vmem:[%s711 + $0x550] sm:$0xff] %v882
                  %v884 = vld [vmem:[%s710 + $0x12d0] sm:$0xff]
                  %885 = vst [vmem:[%s711 + $0x560] sm:$0xff] %v884
                  %v886 = vld [vmem:[%s710 + $0x1308] sm:$0xff]
                  %887 = vst [vmem:[%s711 + $0x570] sm:$0xff] %v886
                  %v888 = vld [vmem:[%s710 + $0x1340] sm:$0xff]
                  %889 = vst [vmem:[%s711 + $0x580] sm:$0xff] %v888
                  %v890 = vld [vmem:[%s710 + $0x1378] sm:$0xff]
                  %891 = vst [vmem:[%s711 + $0x590] sm:$0xff] %v890
                  %v892 = vld [vmem:[%s710 + $0x13b0] sm:$0xff]
                  %893 = vst [vmem:[%s711 + $0x5a0] sm:$0xff] %v892
                  %v894 = vld [vmem:[%s710 + $0x13e8] sm:$0xff]
                  %895 = vst [vmem:[%s711 + $0x5b0] sm:$0xff] %v894
                  %v896 = vld [vmem:[%s710 + $0x1420] sm:$0xff]
                  %897 = vst [vmem:[%s711 + $0x5c0] sm:$0xff] %v896
                  %v898 = vld [vmem:[%s710 + $0x1458] sm:$0xff]
                  %899 = vst [vmem:[%s711 + $0x5d0] sm:$0xff] %v898
                  %v900 = vld [vmem:[%s710 + $0x1490] sm:$0xff]
                  %901 = vst [vmem:[%s711 + $0x5e0] sm:$0xff] %v900
                  %v902 = vld [vmem:[%s710 + $0x14c8] sm:$0xff]
                  %903 = vst [vmem:[%s711 + $0x5f0] sm:$0xff] %v902
                  %v904 = vld [vmem:[%s710 + $0x1500] sm:$0xff]
                  %905 = vst [vmem:[%s711 + $0x600] sm:$0xff] %v904
                  %v906 = vld [vmem:[%s710 + $0x1538] sm:$0xff]
                  %907 = vst [vmem:[%s711 + $0x610] sm:$0xff] %v906
                  %v908 = vld [vmem:[%s710 + $0x1570] sm:$0xff]
                  %909 = vst [vmem:[%s711 + $0x620] sm:$0xff] %v908
                  %v910 = vld [vmem:[%s710 + $0x15a8] sm:$0xff]
                  %911 = vst [vmem:[%s711 + $0x630] sm:$0xff] %v910
                  %v912 = vld [vmem:[%s710 + $0x15e0] sm:$0xff]
                  %913 = vst [vmem:[%s711 + $0x640] sm:$0xff] %v912
                  %v914 = vld [vmem:[%s710 + $0x1618] sm:$0xff]
                  %915 = vst [vmem:[%s711 + $0x650] sm:$0xff] %v914
                  %v916 = vld [vmem:[%s710 + $0x1650] sm:$0xff]
                  %917 = vst [vmem:[%s711 + $0x660] sm:$0xff] %v916
                  %v918 = vld [vmem:[%s710 + $0x1688] sm:$0xff]
                  %919 = vst [vmem:[%s711 + $0x670] sm:$0xff] %v918
                  %v920 = vld [vmem:[%s710 + $0x16c0] sm:$0xff]
                  %921 = vst [vmem:[%s711 + $0x680] sm:$0xff] %v920
                  %v922 = vld [vmem:[%s710 + $0x16f8] sm:$0xff]
                  %923 = vst [vmem:[%s711 + $0x690] sm:$0xff] %v922
                  %v924 = vld [vmem:[%s710 + $0x1730] sm:$0xff]
                  %925 = vst [vmem:[%s711 + $0x6a0] sm:$0xff] %v924
                  %v926 = vld [vmem:[%s710 + $0x1768] sm:$0xff]
                  %927 = vst [vmem:[%s711 + $0x6b0] sm:$0xff] %v926
                  %v928 = vld [vmem:[%s710 + $0x17a0] sm:$0xff]
                  %929 = vst [vmem:[%s711 + $0x6c0] sm:$0xff] %v928
                  %v930 = vld [vmem:[%s710 + $0x17d8] sm:$0xff]
                  %931 = vst [vmem:[%s711 + $0x6d0] sm:$0xff] %v930
                  %v932 = vld [vmem:[%s710 + $0x1810] sm:$0xff]
                  %933 = vst [vmem:[%s711 + $0x6e0] sm:$0xff] %v932
                  %v934 = vld [vmem:[%s710 + $0x1848] sm:$0xff]
                  %935 = vst [vmem:[%s711 + $0x6f0] sm:$0xff] %v934
                  %v936 = vld [vmem:[%s710 + $0x1880] sm:$0xff]
                  %937 = vst [vmem:[%s711 + $0x700] sm:$0xff] %v936
                  %v938 = vld [vmem:[%s710 + $0x18b8] sm:$0xff]
                  %939 = vst [vmem:[%s711 + $0x710] sm:$0xff] %v938
                  %v940 = vld [vmem:[%s710 + $0x18f0] sm:$0xff]
                  %941 = vst [vmem:[%s711 + $0x720] sm:$0xff] %v940
                  %v942 = vld [vmem:[%s710 + $0x1928] sm:$0xff]
                  %943 = vst [vmem:[%s711 + $0x730] sm:$0xff] %v942
                  %v944 = vld [vmem:[%s710 + $0x1960] sm:$0xff]
                  %945 = vst [vmem:[%s711 + $0x740] sm:$0xff] %v944
                  %v946 = vld [vmem:[%s710 + $0x1998] sm:$0xff]
                  %947 = vst [vmem:[%s711 + $0x750] sm:$0xff] %v946
                  %v948 = vld [vmem:[%s710 + $0x19d0] sm:$0xff]
                  %949 = vst [vmem:[%s711 + $0x760] sm:$0xff] %v948
                  %v950 = vld [vmem:[%s710 + $0x1a08] sm:$0xff]
                  %951 = vst [vmem:[%s711 + $0x770] sm:$0xff] %v950
                  %v952 = vld [vmem:[%s710 + $0x1a40] sm:$0xff]
                  %953 = vst [vmem:[%s711 + $0x780] sm:$0xff] %v952
                  %v954 = vld [vmem:[%s710 + $0x1a78] sm:$0xff]
                  %955 = vst [vmem:[%s711 + $0x790] sm:$0xff] %v954
                  %v956 = vld [vmem:[%s710 + $0x1ab0] sm:$0xff]
                  %957 = vst [vmem:[%s711 + $0x7a0] sm:$0xff] %v956
                  %v958 = vld [vmem:[%s710 + $0x1ae8] sm:$0xff]
                  %959 = vst [vmem:[%s711 + $0x7b0] sm:$0xff] %v958
                  %v960 = vld [vmem:[%s710 + $0x1b20] sm:$0xff]
                  %961 = vst [vmem:[%s711 + $0x7c0] sm:$0xff] %v960
                  %v962 = vld [vmem:[%s710 + $0x1b58] sm:$0xff]
                  %963 = vst [vmem:[%s711 + $0x7d0] sm:$0xff] %v962
                  %v964 = vld [vmem:[%s710 + $0x1b90] sm:$0xff]
                  %965 = vst [vmem:[%s711 + $0x7e0] sm:$0xff] %v964
                  %v966 = vld [vmem:[%s710 + $0x1bc8] sm:$0xff]
                  %967 = vst [vmem:[%s711 + $0x7f0] sm:$0xff] %v966
                  %s968 = sadd.s32 1, %s709
                  %p969 = scmp.ge.s32.totalorder %s968, %s700
                  %s970 = scalar_select %p969, 0, %s968
                  %s971 = smul.u32 %s970, 8
                  %s972 = smul.u32 %s970, 8
                  %s973 = scalar_lea.vmem %s135, %s971
                  %s974 = scalar_lea.vmem %s125, %s972 [#allocation2]
                $region63: #{tpu_custom_call.1} parent=57 // loop_footer
                  %s706 = sadd.s32 %s704, 1
                $region64: #{tpu_custom_call.1} parent=57 // loop_footer_branch
                  %703 = sbr.rel target = $region60
                $region65: #{tpu_custom_call.1} parent=57 // loop_exit
                  _
                %s975 = sshllo.u32 0, %s695
                loop: start=0, step=1, limit=1
                $region66: #{tpu_custom_call.1} parent=57 // loop_pre_header
                  _
                $region67: #{tpu_custom_call.1} parent=57 // loop_header
                  %s977 = sphi 0, %s981
                  %p978 = scmp.ge.s32.totalorder %s977, 1
                  %s982 = sphi %s697, %s697
                  %s983 = sphi %s699, %s699
                $region68: #{tpu_custom_call.1} parent=57 // loop_header_branch
                  %980 = sbr.rel (%p978) target = $region72
                $region69: #{tpu_custom_call.1} parent=57 // loop_body
                  %v984 = vld [vmem:[%s982] sm:%s975]
                  %985 = vst [vmem:[%s983] sm:%s975] %v984
                  %v986 = vld [vmem:[%s982 + $0x38] sm:%s975]
                  %987 = vst [vmem:[%s983 + $0x10] sm:%s975] %v986
                  %v988 = vld [vmem:[%s982 + $0x70] sm:%s975]
                  %989 = vst [vmem:[%s983 + $0x20] sm:%s975] %v988
                  %v990 = vld [vmem:[%s982 + $0xa8] sm:%s975]
                  %991 = vst [vmem:[%s983 + $0x30] sm:%s975] %v990
                  %v992 = vld [vmem:[%s982 + $0xe0] sm:%s975]
                  %993 = vst [vmem:[%s983 + $0x40] sm:%s975] %v992
                  %v994 = vld [vmem:[%s982 + $0x118] sm:%s975]
                  %995 = vst [vmem:[%s983 + $0x50] sm:%s975] %v994
                  %v996 = vld [vmem:[%s982 + $0x150] sm:%s975]
                  %997 = vst [vmem:[%s983 + $0x60] sm:%s975] %v996
                  %v998 = vld [vmem:[%s982 + $0x188] sm:%s975]
                  %999 = vst [vmem:[%s983 + $0x70] sm:%s975] %v998
                  %v1000 = vld [vmem:[%s982 + $0x1c0] sm:%s975]
                  %1001 = vst [vmem:[%s983 + $0x80] sm:%s975] %v1000
                  %v1002 = vld [vmem:[%s982 + $0x1f8] sm:%s975]
                  %1003 = vst [vmem:[%s983 + $0x90] sm:%s975] %v1002
                  %v1004 = vld [vmem:[%s982 + $0x230] sm:%s975]
                  %1005 = vst [vmem:[%s983 + $0xa0] sm:%s975] %v1004
                  %v1006 = vld [vmem:[%s982 + $0x268] sm:%s975]
                  %1007 = vst [vmem:[%s983 + $0xb0] sm:%s975] %v1006
                  %v1008 = vld [vmem:[%s982 + $0x2a0] sm:%s975]
                  %1009 = vst [vmem:[%s983 + $0xc0] sm:%s975] %v1008
                  %v1010 = vld [vmem:[%s982 + $0x2d8] sm:%s975]
                  %1011 = vst [vmem:[%s983 + $0xd0] sm:%s975] %v1010
                  %v1012 = vld [vmem:[%s982 + $0x310] sm:%s975]
                  %1013 = vst [vmem:[%s983 + $0xe0] sm:%s975] %v1012
                  %v1014 = vld [vmem:[%s982 + $0x348] sm:%s975]
                  %1015 = vst [vmem:[%s983 + $0xf0] sm:%s975] %v1014
                  %v1016 = vld [vmem:[%s982 + $0x380] sm:%s975]
                  %1017 = vst [vmem:[%s983 + $0x100] sm:%s975] %v1016
                  %v1018 = vld [vmem:[%s982 + $0x3b8] sm:%s975]
                  %1019 = vst [vmem:[%s983 + $0x110] sm:%s975] %v1018
                  %v1020 = vld [vmem:[%s982 + $0x3f0] sm:%s975]
                  %1021 = vst [vmem:[%s983 + $0x120] sm:%s975] %v1020
                  %v1022 = vld [vmem:[%s982 + $0x428] sm:%s975]
                  %1023 = vst [vmem:[%s983 + $0x130] sm:%s975] %v1022
                  %v1024 = vld [vmem:[%s982 + $0x460] sm:%s975]
                  %1025 = vst [vmem:[%s983 + $0x140] sm:%s975] %v1024
                  %v1026 = vld [vmem:[%s982 + $0x498] sm:%s975]
                  %1027 = vst [vmem:[%s983 + $0x150] sm:%s975] %v1026
                  %v1028 = vld [vmem:[%s982 + $0x4d0] sm:%s975]
                  %1029 = vst [vmem:[%s983 + $0x160] sm:%s975] %v1028
                  %v1030 = vld [vmem:[%s982 + $0x508] sm:%s975]
                  %1031 = vst [vmem:[%s983 + $0x170] sm:%s975] %v1030
                  %v1032 = vld [vmem:[%s982 + $0x540] sm:%s975]
                  %1033 = vst [vmem:[%s983 + $0x180] sm:%s975] %v1032
                  %v1034 = vld [vmem:[%s982 + $0x578] sm:%s975]
                  %1035 = vst [vmem:[%s983 + $0x190] sm:%s975] %v1034
                  %v1036 = vld [vmem:[%s982 + $0x5b0] sm:%s975]
                  %1037 = vst [vmem:[%s983 + $0x1a0] sm:%s975] %v1036
                  %v1038 = vld [vmem:[%s982 + $0x5e8] sm:%s975]
                  %1039 = vst [vmem:[%s983 + $0x1b0] sm:%s975] %v1038
                  %v1040 = vld [vmem:[%s982 + $0x620] sm:%s975]
                  %1041 = vst [vmem:[%s983 + $0x1c0] sm:%s975] %v1040
                  %v1042 = vld [vmem:[%s982 + $0x658] sm:%s975]
                  %1043 = vst [vmem:[%s983 + $0x1d0] sm:%s975] %v1042
                  %v1044 = vld [vmem:[%s982 + $0x690] sm:%s975]
                  %1045 = vst [vmem:[%s983 + $0x1e0] sm:%s975] %v1044
                  %v1046 = vld [vmem:[%s982 + $0x6c8] sm:%s975]
                  %1047 = vst [vmem:[%s983 + $0x1f0] sm:%s975] %v1046
                  %v1048 = vld [vmem:[%s982 + $0x700] sm:%s975]
                  %1049 = vst [vmem:[%s983 + $0x200] sm:%s975] %v1048
                  %v1050 = vld [vmem:[%s982 + $0x738] sm:%s975]
                  %1051 = vst [vmem:[%s983 + $0x210] sm:%s975] %v1050
                  %v1052 = vld [vmem:[%s982 + $0x770] sm:%s975]
                  %1053 = vst [vmem:[%s983 + $0x220] sm:%s975] %v1052
                  %v1054 = vld [vmem:[%s982 + $0x7a8] sm:%s975]
                  %1055 = vst [vmem:[%s983 + $0x230] sm:%s975] %v1054
                  %v1056 = vld [vmem:[%s982 + $0x7e0] sm:%s975]
                  %1057 = vst [vmem:[%s983 + $0x240] sm:%s975] %v1056
                  %v1058 = vld [vmem:[%s982 + $0x818] sm:%s975]
                  %1059 = vst [vmem:[%s983 + $0x250] sm:%s975] %v1058
                  %v1060 = vld [vmem:[%s982 + $0x850] sm:%s975]
                  %1061 = vst [vmem:[%s983 + $0x260] sm:%s975] %v1060
                  %v1062 = vld [vmem:[%s982 + $0x888] sm:%s975]
                  %1063 = vst [vmem:[%s983 + $0x270] sm:%s975] %v1062
                  %v1064 = vld [vmem:[%s982 + $0x8c0] sm:%s975]
                  %1065 = vst [vmem:[%s983 + $0x280] sm:%s975] %v1064
                  %v1066 = vld [vmem:[%s982 + $0x8f8] sm:%s975]
                  %1067 = vst [vmem:[%s983 + $0x290] sm:%s975] %v1066
                  %v1068 = vld [vmem:[%s982 + $0x930] sm:%s975]
                  %1069 = vst [vmem:[%s983 + $0x2a0] sm:%s975] %v1068
                  %v1070 = vld [vmem:[%s982 + $0x968] sm:%s975]
                  %1071 = vst [vmem:[%s983 + $0x2b0] sm:%s975] %v1070
                  %v1072 = vld [vmem:[%s982 + $0x9a0] sm:%s975]
                  %1073 = vst [vmem:[%s983 + $0x2c0] sm:%s975] %v1072
                  %v1074 = vld [vmem:[%s982 + $0x9d8] sm:%s975]
                  %1075 = vst [vmem:[%s983 + $0x2d0] sm:%s975] %v1074
                  %v1076 = vld [vmem:[%s982 + $0xa10] sm:%s975]
                  %1077 = vst [vmem:[%s983 + $0x2e0] sm:%s975] %v1076
                  %v1078 = vld [vmem:[%s982 + $0xa48] sm:%s975]
                  %1079 = vst [vmem:[%s983 + $0x2f0] sm:%s975] %v1078
                  %v1080 = vld [vmem:[%s982 + $0xa80] sm:%s975]
                  %1081 = vst [vmem:[%s983 + $0x300] sm:%s975] %v1080
                  %v1082 = vld [vmem:[%s982 + $0xab8] sm:%s975]
                  %1083 = vst [vmem:[%s983 + $0x310] sm:%s975] %v1082
                  %v1084 = vld [vmem:[%s982 + $0xaf0] sm:%s975]
                  %1085 = vst [vmem:[%s983 + $0x320] sm:%s975] %v1084
                  %v1086 = vld [vmem:[%s982 + $0xb28] sm:%s975]
                  %1087 = vst [vmem:[%s983 + $0x330] sm:%s975] %v1086
                  %v1088 = vld [vmem:[%s982 + $0xb60] sm:%s975]
                  %1089 = vst [vmem:[%s983 + $0x340] sm:%s975] %v1088
                  %v1090 = vld [vmem:[%s982 + $0xb98] sm:%s975]
                  %1091 = vst [vmem:[%s983 + $0x350] sm:%s975] %v1090
                  %v1092 = vld [vmem:[%s982 + $0xbd0] sm:%s975]
                  %1093 = vst [vmem:[%s983 + $0x360] sm:%s975] %v1092
                  %v1094 = vld [vmem:[%s982 + $0xc08] sm:%s975]
                  %1095 = vst [vmem:[%s983 + $0x370] sm:%s975] %v1094
                  %v1096 = vld [vmem:[%s982 + $0xc40] sm:%s975]
                  %1097 = vst [vmem:[%s983 + $0x380] sm:%s975] %v1096
                  %v1098 = vld [vmem:[%s982 + $0xc78] sm:%s975]
                  %1099 = vst [vmem:[%s983 + $0x390] sm:%s975] %v1098
                  %v1100 = vld [vmem:[%s982 + $0xcb0] sm:%s975]
                  %1101 = vst [vmem:[%s983 + $0x3a0] sm:%s975] %v1100
                  %v1102 = vld [vmem:[%s982 + $0xce8] sm:%s975]
                  %1103 = vst [vmem:[%s983 + $0x3b0] sm:%s975] %v1102
                  %v1104 = vld [vmem:[%s982 + $0xd20] sm:%s975]
                  %1105 = vst [vmem:[%s983 + $0x3c0] sm:%s975] %v1104
                  %v1106 = vld [vmem:[%s982 + $0xd58] sm:%s975]
                  %1107 = vst [vmem:[%s983 + $0x3d0] sm:%s975] %v1106
                  %v1108 = vld [vmem:[%s982 + $0xd90] sm:%s975]
                  %1109 = vst [vmem:[%s983 + $0x3e0] sm:%s975] %v1108
                  %v1110 = vld [vmem:[%s982 + $0xdc8] sm:%s975]
                  %1111 = vst [vmem:[%s983 + $0x3f0] sm:%s975] %v1110
                  %v1112 = vld [vmem:[%s982 + $0xe00] sm:%s975]
                  %1113 = vst [vmem:[%s983 + $0x400] sm:%s975] %v1112
                  %v1114 = vld [vmem:[%s982 + $0xe38] sm:%s975]
                  %1115 = vst [vmem:[%s983 + $0x410] sm:%s975] %v1114
                  %v1116 = vld [vmem:[%s982 + $0xe70] sm:%s975]
                  %1117 = vst [vmem:[%s983 + $0x420] sm:%s975] %v1116
                  %v1118 = vld [vmem:[%s982 + $0xea8] sm:%s975]
                  %1119 = vst [vmem:[%s983 + $0x430] sm:%s975] %v1118
                  %v1120 = vld [vmem:[%s982 + $0xee0] sm:%s975]
                  %1121 = vst [vmem:[%s983 + $0x440] sm:%s975] %v1120
                  %v1122 = vld [vmem:[%s982 + $0xf18] sm:%s975]
                  %1123 = vst [vmem:[%s983 + $0x450] sm:%s975] %v1122
                  %v1124 = vld [vmem:[%s982 + $0xf50] sm:%s975]
                  %1125 = vst [vmem:[%s983 + $0x460] sm:%s975] %v1124
                  %v1126 = vld [vmem:[%s982 + $0xf88] sm:%s975]
                  %1127 = vst [vmem:[%s983 + $0x470] sm:%s975] %v1126
                  %v1128 = vld [vmem:[%s982 + $0xfc0] sm:%s975]
                  %1129 = vst [vmem:[%s983 + $0x480] sm:%s975] %v1128
                  %v1130 = vld [vmem:[%s982 + $0xff8] sm:%s975]
                  %1131 = vst [vmem:[%s983 + $0x490] sm:%s975] %v1130
                  %v1132 = vld [vmem:[%s982 + $0x1030] sm:%s975]
                  %1133 = vst [vmem:[%s983 + $0x4a0] sm:%s975] %v1132
                  %v1134 = vld [vmem:[%s982 + $0x1068] sm:%s975]
                  %1135 = vst [vmem:[%s983 + $0x4b0] sm:%s975] %v1134
                  %v1136 = vld [vmem:[%s982 + $0x10a0] sm:%s975]
                  %1137 = vst [vmem:[%s983 + $0x4c0] sm:%s975] %v1136
                  %v1138 = vld [vmem:[%s982 + $0x10d8] sm:%s975]
                  %1139 = vst [vmem:[%s983 + $0x4d0] sm:%s975] %v1138
                  %v1140 = vld [vmem:[%s982 + $0x1110] sm:%s975]
                  %1141 = vst [vmem:[%s983 + $0x4e0] sm:%s975] %v1140
                  %v1142 = vld [vmem:[%s982 + $0x1148] sm:%s975]
                  %1143 = vst [vmem:[%s983 + $0x4f0] sm:%s975] %v1142
                  %v1144 = vld [vmem:[%s982 + $0x1180] sm:%s975]
                  %1145 = vst [vmem:[%s983 + $0x500] sm:%s975] %v1144
                  %v1146 = vld [vmem:[%s982 + $0x11b8] sm:%s975]
                  %1147 = vst [vmem:[%s983 + $0x510] sm:%s975] %v1146
                  %v1148 = vld [vmem:[%s982 + $0x11f0] sm:%s975]
                  %1149 = vst [vmem:[%s983 + $0x520] sm:%s975] %v1148
                  %v1150 = vld [vmem:[%s982 + $0x1228] sm:%s975]
                  %1151 = vst [vmem:[%s983 + $0x530] sm:%s975] %v1150
                  %v1152 = vld [vmem:[%s982 + $0x1260] sm:%s975]
                  %1153 = vst [vmem:[%s983 + $0x540] sm:%s975] %v1152
                  %v1154 = vld [vmem:[%s982 + $0x1298] sm:%s975]
                  %1155 = vst [vmem:[%s983 + $0x550] sm:%s975] %v1154
                  %v1156 = vld [vmem:[%s982 + $0x12d0] sm:%s975]
                  %1157 = vst [vmem:[%s983 + $0x560] sm:%s975] %v1156
                  %v1158 = vld [vmem:[%s982 + $0x1308] sm:%s975]
                  %1159 = vst [vmem:[%s983 + $0x570] sm:%s975] %v1158
                  %v1160 = vld [vmem:[%s982 + $0x1340] sm:%s975]
                  %1161 = vst [vmem:[%s983 + $0x580] sm:%s975] %v1160
                  %v1162 = vld [vmem:[%s982 + $0x1378] sm:%s975]
                  %1163 = vst [vmem:[%s983 + $0x590] sm:%s975] %v1162
                  %v1164 = vld [vmem:[%s982 + $0x13b0] sm:%s975]
                  %1165 = vst [vmem:[%s983 + $0x5a0] sm:%s975] %v1164
                  %v1166 = vld [vmem:[%s982 + $0x13e8] sm:%s975]
                  %1167 = vst [vmem:[%s983 + $0x5b0] sm:%s975] %v1166
                  %v1168 = vld [vmem:[%s982 + $0x1420] sm:%s975]
                  %1169 = vst [vmem:[%s983 + $0x5c0] sm:%s975] %v1168
                  %v1170 = vld [vmem:[%s982 + $0x1458] sm:%s975]
                  %1171 = vst [vmem:[%s983 + $0x5d0] sm:%s975] %v1170
                  %v1172 = vld [vmem:[%s982 + $0x1490] sm:%s975]
                  %1173 = vst [vmem:[%s983 + $0x5e0] sm:%s975] %v1172
                  %v1174 = vld [vmem:[%s982 + $0x14c8] sm:%s975]
                  %1175 = vst [vmem:[%s983 + $0x5f0] sm:%s975] %v1174
                  %v1176 = vld [vmem:[%s982 + $0x1500] sm:%s975]
                  %1177 = vst [vmem:[%s983 + $0x600] sm:%s975] %v1176
                  %v1178 = vld [vmem:[%s982 + $0x1538] sm:%s975]
                  %1179 = vst [vmem:[%s983 + $0x610] sm:%s975] %v1178
                  %v1180 = vld [vmem:[%s982 + $0x1570] sm:%s975]
                  %1181 = vst [vmem:[%s983 + $0x620] sm:%s975] %v1180
                  %v1182 = vld [vmem:[%s982 + $0x15a8] sm:%s975]
                  %1183 = vst [vmem:[%s983 + $0x630] sm:%s975] %v1182
                  %v1184 = vld [vmem:[%s982 + $0x15e0] sm:%s975]
                  %1185 = vst [vmem:[%s983 + $0x640] sm:%s975] %v1184
                  %v1186 = vld [vmem:[%s982 + $0x1618] sm:%s975]
                  %1187 = vst [vmem:[%s983 + $0x650] sm:%s975] %v1186
                  %v1188 = vld [vmem:[%s982 + $0x1650] sm:%s975]
                  %1189 = vst [vmem:[%s983 + $0x660] sm:%s975] %v1188
                  %v1190 = vld [vmem:[%s982 + $0x1688] sm:%s975]
                  %1191 = vst [vmem:[%s983 + $0x670] sm:%s975] %v1190
                  %v1192 = vld [vmem:[%s982 + $0x16c0] sm:%s975]
                  %1193 = vst [vmem:[%s983 + $0x680] sm:%s975] %v1192
                  %v1194 = vld [vmem:[%s982 + $0x16f8] sm:%s975]
                  %1195 = vst [vmem:[%s983 + $0x690] sm:%s975] %v1194
                  %v1196 = vld [vmem:[%s982 + $0x1730] sm:%s975]
                  %1197 = vst [vmem:[%s983 + $0x6a0] sm:%s975] %v1196
                  %v1198 = vld [vmem:[%s982 + $0x1768] sm:%s975]
                  %1199 = vst [vmem:[%s983 + $0x6b0] sm:%s975] %v1198
                  %v1200 = vld [vmem:[%s982 + $0x17a0] sm:%s975]
                  %1201 = vst [vmem:[%s983 + $0x6c0] sm:%s975] %v1200
                  %v1202 = vld [vmem:[%s982 + $0x17d8] sm:%s975]
                  %1203 = vst [vmem:[%s983 + $0x6d0] sm:%s975] %v1202
                  %v1204 = vld [vmem:[%s982 + $0x1810] sm:%s975]
                  %1205 = vst [vmem:[%s983 + $0x6e0] sm:%s975] %v1204
                  %v1206 = vld [vmem:[%s982 + $0x1848] sm:%s975]
                  %1207 = vst [vmem:[%s983 + $0x6f0] sm:%s975] %v1206
                  %v1208 = vld [vmem:[%s982 + $0x1880] sm:%s975]
                  %1209 = vst [vmem:[%s983 + $0x700] sm:%s975] %v1208
                  %v1210 = vld [vmem:[%s982 + $0x18b8] sm:%s975]
                  %1211 = vst [vmem:[%s983 + $0x710] sm:%s975] %v1210
                  %v1212 = vld [vmem:[%s982 + $0x18f0] sm:%s975]
                  %1213 = vst [vmem:[%s983 + $0x720] sm:%s975] %v1212
                  %v1214 = vld [vmem:[%s982 + $0x1928] sm:%s975]
                  %1215 = vst [vmem:[%s983 + $0x730] sm:%s975] %v1214
                  %v1216 = vld [vmem:[%s982 + $0x1960] sm:%s975]
                  %1217 = vst [vmem:[%s983 + $0x740] sm:%s975] %v1216
                  %v1218 = vld [vmem:[%s982 + $0x1998] sm:%s975]
                  %1219 = vst [vmem:[%s983 + $0x750] sm:%s975] %v1218
                  %v1220 = vld [vmem:[%s982 + $0x19d0] sm:%s975]
                  %1221 = vst [vmem:[%s983 + $0x760] sm:%s975] %v1220
                  %v1222 = vld [vmem:[%s982 + $0x1a08] sm:%s975]
                  %1223 = vst [vmem:[%s983 + $0x770] sm:%s975] %v1222
                  %v1224 = vld [vmem:[%s982 + $0x1a40] sm:%s975]
                  %1225 = vst [vmem:[%s983 + $0x780] sm:%s975] %v1224
                  %v1226 = vld [vmem:[%s982 + $0x1a78] sm:%s975]
                  %1227 = vst [vmem:[%s983 + $0x790] sm:%s975] %v1226
                  %v1228 = vld [vmem:[%s982 + $0x1ab0] sm:%s975]
                  %1229 = vst [vmem:[%s983 + $0x7a0] sm:%s975] %v1228
                  %v1230 = vld [vmem:[%s982 + $0x1ae8] sm:%s975]
                  %1231 = vst [vmem:[%s983 + $0x7b0] sm:%s975] %v1230
                  %v1232 = vld [vmem:[%s982 + $0x1b20] sm:%s975]
                  %1233 = vst [vmem:[%s983 + $0x7c0] sm:%s975] %v1232
                  %v1234 = vld [vmem:[%s982 + $0x1b58] sm:%s975]
                  %1235 = vst [vmem:[%s983 + $0x7d0] sm:%s975] %v1234
                  %v1236 = vld [vmem:[%s982 + $0x1b90] sm:%s975]
                  %1237 = vst [vmem:[%s983 + $0x7e0] sm:%s975] %v1236
                  %v1238 = vld [vmem:[%s982 + $0x1bc8] sm:%s975]
                  %1239 = vst [vmem:[%s983 + $0x7f0] sm:%s975] %v1238
                $region70: #{tpu_custom_call.1} parent=57 // loop_footer
                  %s981 = sadd.s32 1, %s977
                $region71: #{tpu_custom_call.1} parent=57 // loop_footer_branch
                  %976 = sbr.rel target = $region67
                $region72: #{tpu_custom_call.1} parent=57 // loop_exit
                  _
              $region58: #{tpu_custom_call.1} parent=31 // pred_fallthru
                _
            $region32: #{tpu_custom_call.1} parent=27 // pred_fallthru
              _
            // Predicated region
            $region33: #{tpu_custom_call.1} parent=27 // pred_check
              %p144 = pneg %p140
            $region34: #{tpu_custom_call.1} parent=27 // pred_check_branch
              %146 = sbr.rel (%p144) target = $region36
            $region35: #{tpu_custom_call.1} parent=27 // pred_region
              %s147 = sshllo.u32 0, %s136
              loop: start=0, step=1, limit=1
              $region37: #{tpu_custom_call.1} parent=35 // loop_pre_header
                _
              $region38: #{tpu_custom_call.1} parent=35 // loop_header
                %s149 = sphi 0, %s153
                %p150 = scmp.ge.s32.totalorder %s149, 1
                %s154 = sphi %s135, %s135
                %s155 = sphi %s125, %s125
              $region39: #{tpu_custom_call.1} parent=35 // loop_header_branch
                %152 = sbr.rel (%p150) target = $region43
              $region40: #{tpu_custom_call.1} parent=35 // loop_body
                %v156 = vld [vmem:[%s154] sm:%s147]
                %157 = vst [vmem:[%s155] sm:%s147] %v156
                %v158 = vld [vmem:[%s154 + $0x38] sm:%s147]
                %159 = vst [vmem:[%s155 + $0x10] sm:%s147] %v158
                %v160 = vld [vmem:[%s154 + $0x70] sm:%s147]
                %161 = vst [vmem:[%s155 + $0x20] sm:%s147] %v160
                %v162 = vld [vmem:[%s154 + $0xa8] sm:%s147]
                %163 = vst [vmem:[%s155 + $0x30] sm:%s147] %v162
                %v164 = vld [vmem:[%s154 + $0xe0] sm:%s147]
                %165 = vst [vmem:[%s155 + $0x40] sm:%s147] %v164
                %v166 = vld [vmem:[%s154 + $0x118] sm:%s147]
                %167 = vst [vmem:[%s155 + $0x50] sm:%s147] %v166
                %v168 = vld [vmem:[%s154 + $0x150] sm:%s147]
                %169 = vst [vmem:[%s155 + $0x60] sm:%s147] %v168
                %v170 = vld [vmem:[%s154 + $0x188] sm:%s147]
                %171 = vst [vmem:[%s155 + $0x70] sm:%s147] %v170
                %v172 = vld [vmem:[%s154 + $0x1c0] sm:%s147]
                %173 = vst [vmem:[%s155 + $0x80] sm:%s147] %v172
                %v174 = vld [vmem:[%s154 + $0x1f8] sm:%s147]
                %175 = vst [vmem:[%s155 + $0x90] sm:%s147] %v174
                %v176 = vld [vmem:[%s154 + $0x230] sm:%s147]
                %177 = vst [vmem:[%s155 + $0xa0] sm:%s147] %v176
                %v178 = vld [vmem:[%s154 + $0x268] sm:%s147]
                %179 = vst [vmem:[%s155 + $0xb0] sm:%s147] %v178
                %v180 = vld [vmem:[%s154 + $0x2a0] sm:%s147]
                %181 = vst [vmem:[%s155 + $0xc0] sm:%s147] %v180
                %v182 = vld [vmem:[%s154 + $0x2d8] sm:%s147]
                %183 = vst [vmem:[%s155 + $0xd0] sm:%s147] %v182
                %v184 = vld [vmem:[%s154 + $0x310] sm:%s147]
                %185 = vst [vmem:[%s155 + $0xe0] sm:%s147] %v184
                %v186 = vld [vmem:[%s154 + $0x348] sm:%s147]
                %187 = vst [vmem:[%s155 + $0xf0] sm:%s147] %v186
                %v188 = vld [vmem:[%s154 + $0x380] sm:%s147]
                %189 = vst [vmem:[%s155 + $0x100] sm:%s147] %v188
                %v190 = vld [vmem:[%s154 + $0x3b8] sm:%s147]
                %191 = vst [vmem:[%s155 + $0x110] sm:%s147] %v190
                %v192 = vld [vmem:[%s154 + $0x3f0] sm:%s147]
                %193 = vst [vmem:[%s155 + $0x120] sm:%s147] %v192
                %v194 = vld [vmem:[%s154 + $0x428] sm:%s147]
                %195 = vst [vmem:[%s155 + $0x130] sm:%s147] %v194
                %v196 = vld [vmem:[%s154 + $0x460] sm:%s147]
                %197 = vst [vmem:[%s155 + $0x140] sm:%s147] %v196
                %v198 = vld [vmem:[%s154 + $0x498] sm:%s147]
                %199 = vst [vmem:[%s155 + $0x150] sm:%s147] %v198
                %v200 = vld [vmem:[%s154 + $0x4d0] sm:%s147]
                %201 = vst [vmem:[%s155 + $0x160] sm:%s147] %v200
                %v202 = vld [vmem:[%s154 + $0x508] sm:%s147]
                %203 = vst [vmem:[%s155 + $0x170] sm:%s147] %v202
                %v204 = vld [vmem:[%s154 + $0x540] sm:%s147]
                %205 = vst [vmem:[%s155 + $0x180] sm:%s147] %v204
                %v206 = vld [vmem:[%s154 + $0x578] sm:%s147]
                %207 = vst [vmem:[%s155 + $0x190] sm:%s147] %v206
                %v208 = vld [vmem:[%s154 + $0x5b0] sm:%s147]
                %209 = vst [vmem:[%s155 + $0x1a0] sm:%s147] %v208
                %v210 = vld [vmem:[%s154 + $0x5e8] sm:%s147]
                %211 = vst [vmem:[%s155 + $0x1b0] sm:%s147] %v210
                %v212 = vld [vmem:[%s154 + $0x620] sm:%s147]
                %213 = vst [vmem:[%s155 + $0x1c0] sm:%s147] %v212
                %v214 = vld [vmem:[%s154 + $0x658] sm:%s147]
                %215 = vst [vmem:[%s155 + $0x1d0] sm:%s147] %v214
                %v216 = vld [vmem:[%s154 + $0x690] sm:%s147]
                %217 = vst [vmem:[%s155 + $0x1e0] sm:%s147] %v216
                %v218 = vld [vmem:[%s154 + $0x6c8] sm:%s147]
                %219 = vst [vmem:[%s155 + $0x1f0] sm:%s147] %v218
                %v220 = vld [vmem:[%s154 + $0x700] sm:%s147]
                %221 = vst [vmem:[%s155 + $0x200] sm:%s147] %v220
                %v222 = vld [vmem:[%s154 + $0x738] sm:%s147]
                %223 = vst [vmem:[%s155 + $0x210] sm:%s147] %v222
                %v224 = vld [vmem:[%s154 + $0x770] sm:%s147]
                %225 = vst [vmem:[%s155 + $0x220] sm:%s147] %v224
                %v226 = vld [vmem:[%s154 + $0x7a8] sm:%s147]
                %227 = vst [vmem:[%s155 + $0x230] sm:%s147] %v226
                %v228 = vld [vmem:[%s154 + $0x7e0] sm:%s147]
                %229 = vst [vmem:[%s155 + $0x240] sm:%s147] %v228
                %v230 = vld [vmem:[%s154 + $0x818] sm:%s147]
                %231 = vst [vmem:[%s155 + $0x250] sm:%s147] %v230
                %v232 = vld [vmem:[%s154 + $0x850] sm:%s147]
                %233 = vst [vmem:[%s155 + $0x260] sm:%s147] %v232
                %v234 = vld [vmem:[%s154 + $0x888] sm:%s147]
                %235 = vst [vmem:[%s155 + $0x270] sm:%s147] %v234
                %v236 = vld [vmem:[%s154 + $0x8c0] sm:%s147]
                %237 = vst [vmem:[%s155 + $0x280] sm:%s147] %v236
                %v238 = vld [vmem:[%s154 + $0x8f8] sm:%s147]
                %239 = vst [vmem:[%s155 + $0x290] sm:%s147] %v238
                %v240 = vld [vmem:[%s154 + $0x930] sm:%s147]
                %241 = vst [vmem:[%s155 + $0x2a0] sm:%s147] %v240
                %v242 = vld [vmem:[%s154 + $0x968] sm:%s147]
                %243 = vst [vmem:[%s155 + $0x2b0] sm:%s147] %v242
                %v244 = vld [vmem:[%s154 + $0x9a0] sm:%s147]
                %245 = vst [vmem:[%s155 + $0x2c0] sm:%s147] %v244
                %v246 = vld [vmem:[%s154 + $0x9d8] sm:%s147]
                %247 = vst [vmem:[%s155 + $0x2d0] sm:%s147] %v246
                %v248 = vld [vmem:[%s154 + $0xa10] sm:%s147]
                %249 = vst [vmem:[%s155 + $0x2e0] sm:%s147] %v248
                %v250 = vld [vmem:[%s154 + $0xa48] sm:%s147]
                %251 = vst [vmem:[%s155 + $0x2f0] sm:%s147] %v250
                %v252 = vld [vmem:[%s154 + $0xa80] sm:%s147]
                %253 = vst [vmem:[%s155 + $0x300] sm:%s147] %v252
                %v254 = vld [vmem:[%s154 + $0xab8] sm:%s147]
                %255 = vst [vmem:[%s155 + $0x310] sm:%s147] %v254
                %v256 = vld [vmem:[%s154 + $0xaf0] sm:%s147]
                %257 = vst [vmem:[%s155 + $0x320] sm:%s147] %v256
                %v258 = vld [vmem:[%s154 + $0xb28] sm:%s147]
                %259 = vst [vmem:[%s155 + $0x330] sm:%s147] %v258
                %v260 = vld [vmem:[%s154 + $0xb60] sm:%s147]
                %261 = vst [vmem:[%s155 + $0x340] sm:%s147] %v260
                %v262 = vld [vmem:[%s154 + $0xb98] sm:%s147]
                %263 = vst [vmem:[%s155 + $0x350] sm:%s147] %v262
                %v264 = vld [vmem:[%s154 + $0xbd0] sm:%s147]
                %265 = vst [vmem:[%s155 + $0x360] sm:%s147] %v264
                %v266 = vld [vmem:[%s154 + $0xc08] sm:%s147]
                %267 = vst [vmem:[%s155 + $0x370] sm:%s147] %v266
                %v268 = vld [vmem:[%s154 + $0xc40] sm:%s147]
                %269 = vst [vmem:[%s155 + $0x380] sm:%s147] %v268
                %v270 = vld [vmem:[%s154 + $0xc78] sm:%s147]
                %271 = vst [vmem:[%s155 + $0x390] sm:%s147] %v270
                %v272 = vld [vmem:[%s154 + $0xcb0] sm:%s147]
                %273 = vst [vmem:[%s155 + $0x3a0] sm:%s147] %v272
                %v274 = vld [vmem:[%s154 + $0xce8] sm:%s147]
                %275 = vst [vmem:[%s155 + $0x3b0] sm:%s147] %v274
                %v276 = vld [vmem:[%s154 + $0xd20] sm:%s147]
                %277 = vst [vmem:[%s155 + $0x3c0] sm:%s147] %v276
                %v278 = vld [vmem:[%s154 + $0xd58] sm:%s147]
                %279 = vst [vmem:[%s155 + $0x3d0] sm:%s147] %v278
                %v280 = vld [vmem:[%s154 + $0xd90] sm:%s147]
                %281 = vst [vmem:[%s155 + $0x3e0] sm:%s147] %v280
                %v282 = vld [vmem:[%s154 + $0xdc8] sm:%s147]
                %283 = vst [vmem:[%s155 + $0x3f0] sm:%s147] %v282
                %v284 = vld [vmem:[%s154 + $0xe00] sm:%s147]
                %285 = vst [vmem:[%s155 + $0x400] sm:%s147] %v284
                %v286 = vld [vmem:[%s154 + $0xe38] sm:%s147]
                %287 = vst [vmem:[%s155 + $0x410] sm:%s147] %v286
                %v288 = vld [vmem:[%s154 + $0xe70] sm:%s147]
                %289 = vst [vmem:[%s155 + $0x420] sm:%s147] %v288
                %v290 = vld [vmem:[%s154 + $0xea8] sm:%s147]
                %291 = vst [vmem:[%s155 + $0x430] sm:%s147] %v290
                %v292 = vld [vmem:[%s154 + $0xee0] sm:%s147]
                %293 = vst [vmem:[%s155 + $0x440] sm:%s147] %v292
                %v294 = vld [vmem:[%s154 + $0xf18] sm:%s147]
                %295 = vst [vmem:[%s155 + $0x450] sm:%s147] %v294
                %v296 = vld [vmem:[%s154 + $0xf50] sm:%s147]
                %297 = vst [vmem:[%s155 + $0x460] sm:%s147] %v296
                %v298 = vld [vmem:[%s154 + $0xf88] sm:%s147]
                %299 = vst [vmem:[%s155 + $0x470] sm:%s147] %v298
                %v300 = vld [vmem:[%s154 + $0xfc0] sm:%s147]
                %301 = vst [vmem:[%s155 + $0x480] sm:%s147] %v300
                %v302 = vld [vmem:[%s154 + $0xff8] sm:%s147]
                %303 = vst [vmem:[%s155 + $0x490] sm:%s147] %v302
                %v304 = vld [vmem:[%s154 + $0x1030] sm:%s147]
                %305 = vst [vmem:[%s155 + $0x4a0] sm:%s147] %v304
                %v306 = vld [vmem:[%s154 + $0x1068] sm:%s147]
                %307 = vst [vmem:[%s155 + $0x4b0] sm:%s147] %v306
                %v308 = vld [vmem:[%s154 + $0x10a0] sm:%s147]
                %309 = vst [vmem:[%s155 + $0x4c0] sm:%s147] %v308
                %v310 = vld [vmem:[%s154 + $0x10d8] sm:%s147]
                %311 = vst [vmem:[%s155 + $0x4d0] sm:%s147] %v310
                %v312 = vld [vmem:[%s154 + $0x1110] sm:%s147]
                %313 = vst [vmem:[%s155 + $0x4e0] sm:%s147] %v312
                %v314 = vld [vmem:[%s154 + $0x1148] sm:%s147]
                %315 = vst [vmem:[%s155 + $0x4f0] sm:%s147] %v314
                %v316 = vld [vmem:[%s154 + $0x1180] sm:%s147]
                %317 = vst [vmem:[%s155 + $0x500] sm:%s147] %v316
                %v318 = vld [vmem:[%s154 + $0x11b8] sm:%s147]
                %319 = vst [vmem:[%s155 + $0x510] sm:%s147] %v318
                %v320 = vld [vmem:[%s154 + $0x11f0] sm:%s147]
                %321 = vst [vmem:[%s155 + $0x520] sm:%s147] %v320
                %v322 = vld [vmem:[%s154 + $0x1228] sm:%s147]
                %323 = vst [vmem:[%s155 + $0x530] sm:%s147] %v322
                %v324 = vld [vmem:[%s154 + $0x1260] sm:%s147]
                %325 = vst [vmem:[%s155 + $0x540] sm:%s147] %v324
                %v326 = vld [vmem:[%s154 + $0x1298] sm:%s147]
                %327 = vst [vmem:[%s155 + $0x550] sm:%s147] %v326
                %v328 = vld [vmem:[%s154 + $0x12d0] sm:%s147]
                %329 = vst [vmem:[%s155 + $0x560] sm:%s147] %v328
                %v330 = vld [vmem:[%s154 + $0x1308] sm:%s147]
                %331 = vst [vmem:[%s155 + $0x570] sm:%s147] %v330
                %v332 = vld [vmem:[%s154 + $0x1340] sm:%s147]
                %333 = vst [vmem:[%s155 + $0x580] sm:%s147] %v332
                %v334 = vld [vmem:[%s154 + $0x1378] sm:%s147]
                %335 = vst [vmem:[%s155 + $0x590] sm:%s147] %v334
                %v336 = vld [vmem:[%s154 + $0x13b0] sm:%s147]
                %337 = vst [vmem:[%s155 + $0x5a0] sm:%s147] %v336
                %v338 = vld [vmem:[%s154 + $0x13e8] sm:%s147]
                %339 = vst [vmem:[%s155 + $0x5b0] sm:%s147] %v338
                %v340 = vld [vmem:[%s154 + $0x1420] sm:%s147]
                %341 = vst [vmem:[%s155 + $0x5c0] sm:%s147] %v340
                %v342 = vld [vmem:[%s154 + $0x1458] sm:%s147]
                %343 = vst [vmem:[%s155 + $0x5d0] sm:%s147] %v342
                %v344 = vld [vmem:[%s154 + $0x1490] sm:%s147]
                %345 = vst [vmem:[%s155 + $0x5e0] sm:%s147] %v344
                %v346 = vld [vmem:[%s154 + $0x14c8] sm:%s147]
                %347 = vst [vmem:[%s155 + $0x5f0] sm:%s147] %v346
                %v348 = vld [vmem:[%s154 + $0x1500] sm:%s147]
                %349 = vst [vmem:[%s155 + $0x600] sm:%s147] %v348
                %v350 = vld [vmem:[%s154 + $0x1538] sm:%s147]
                %351 = vst [vmem:[%s155 + $0x610] sm:%s147] %v350
                %v352 = vld [vmem:[%s154 + $0x1570] sm:%s147]
                %353 = vst [vmem:[%s155 + $0x620] sm:%s147] %v352
                %v354 = vld [vmem:[%s154 + $0x15a8] sm:%s147]
                %355 = vst [vmem:[%s155 + $0x630] sm:%s147] %v354
                %v356 = vld [vmem:[%s154 + $0x15e0] sm:%s147]
                %357 = vst [vmem:[%s155 + $0x640] sm:%s147] %v356
                %v358 = vld [vmem:[%s154 + $0x1618] sm:%s147]
                %359 = vst [vmem:[%s155 + $0x650] sm:%s147] %v358
                %v360 = vld [vmem:[%s154 + $0x1650] sm:%s147]
                %361 = vst [vmem:[%s155 + $0x660] sm:%s147] %v360
                %v362 = vld [vmem:[%s154 + $0x1688] sm:%s147]
                %363 = vst [vmem:[%s155 + $0x670] sm:%s147] %v362
                %v364 = vld [vmem:[%s154 + $0x16c0] sm:%s147]
                %365 = vst [vmem:[%s155 + $0x680] sm:%s147] %v364
                %v366 = vld [vmem:[%s154 + $0x16f8] sm:%s147]
                %367 = vst [vmem:[%s155 + $0x690] sm:%s147] %v366
                %v368 = vld [vmem:[%s154 + $0x1730] sm:%s147]
                %369 = vst [vmem:[%s155 + $0x6a0] sm:%s147] %v368
                %v370 = vld [vmem:[%s154 + $0x1768] sm:%s147]
                %371 = vst [vmem:[%s155 + $0x6b0] sm:%s147] %v370
                %v372 = vld [vmem:[%s154 + $0x17a0] sm:%s147]
                %373 = vst [vmem:[%s155 + $0x6c0] sm:%s147] %v372
                %v374 = vld [vmem:[%s154 + $0x17d8] sm:%s147]
                %375 = vst [vmem:[%s155 + $0x6d0] sm:%s147] %v374
                %v376 = vld [vmem:[%s154 + $0x1810] sm:%s147]
                %377 = vst [vmem:[%s155 + $0x6e0] sm:%s147] %v376
                %v378 = vld [vmem:[%s154 + $0x1848] sm:%s147]
                %379 = vst [vmem:[%s155 + $0x6f0] sm:%s147] %v378
                %v380 = vld [vmem:[%s154 + $0x1880] sm:%s147]
                %381 = vst [vmem:[%s155 + $0x700] sm:%s147] %v380
                %v382 = vld [vmem:[%s154 + $0x18b8] sm:%s147]
                %383 = vst [vmem:[%s155 + $0x710] sm:%s147] %v382
                %v384 = vld [vmem:[%s154 + $0x18f0] sm:%s147]
                %385 = vst [vmem:[%s155 + $0x720] sm:%s147] %v384
                %v386 = vld [vmem:[%s154 + $0x1928] sm:%s147]
                %387 = vst [vmem:[%s155 + $0x730] sm:%s147] %v386
                %v388 = vld [vmem:[%s154 + $0x1960] sm:%s147]
                %389 = vst [vmem:[%s155 + $0x740] sm:%s147] %v388
                %v390 = vld [vmem:[%s154 + $0x1998] sm:%s147]
                %391 = vst [vmem:[%s155 + $0x750] sm:%s147] %v390
                %v392 = vld [vmem:[%s154 + $0x19d0] sm:%s147]
                %393 = vst [vmem:[%s155 + $0x760] sm:%s147] %v392
                %v394 = vld [vmem:[%s154 + $0x1a08] sm:%s147]
                %395 = vst [vmem:[%s155 + $0x770] sm:%s147] %v394
                %v396 = vld [vmem:[%s154 + $0x1a40] sm:%s147]
                %397 = vst [vmem:[%s155 + $0x780] sm:%s147] %v396
                %v398 = vld [vmem:[%s154 + $0x1a78] sm:%s147]
                %399 = vst [vmem:[%s155 + $0x790] sm:%s147] %v398
                %v400 = vld [vmem:[%s154 + $0x1ab0] sm:%s147]
                %401 = vst [vmem:[%s155 + $0x7a0] sm:%s147] %v400
                %v402 = vld [vmem:[%s154 + $0x1ae8] sm:%s147]
                %403 = vst [vmem:[%s155 + $0x7b0] sm:%s147] %v402
                %v404 = vld [vmem:[%s154 + $0x1b20] sm:%s147]
                %405 = vst [vmem:[%s155 + $0x7c0] sm:%s147] %v404
                %v406 = vld [vmem:[%s154 + $0x1b58] sm:%s147]
                %407 = vst [vmem:[%s155 + $0x7d0] sm:%s147] %v406
                %v408 = vld [vmem:[%s154 + $0x1b90] sm:%s147]
                %409 = vst [vmem:[%s155 + $0x7e0] sm:%s147] %v408
                %v410 = vld [vmem:[%s154 + $0x1bc8] sm:%s147]
                %411 = vst [vmem:[%s155 + $0x7f0] sm:%s147] %v410
              $region41: #{tpu_custom_call.1} parent=35 // loop_footer
                %s153 = sadd.s32 1, %s149
              $region42: #{tpu_custom_call.1} parent=35 // loop_footer_branch
                %148 = sbr.rel target = $region38
              $region43: #{tpu_custom_call.1} parent=35 // loop_exit
                _
            $region36: #{tpu_custom_call.1} parent=27 // pred_fallthru
              _
          $region28: #{tpu_custom_call.1} parent=23 // pred_fallthru
            _
          %1240 = vnop
        $region24: #{tpu_custom_call.1} parent=19 // pred_fallthru
          _
      $region20: #{tpu_custom_call.1} parent=5 // pred_fallthru
        _
      %p1241 = scmp.le.s32.totalorder 1, %s8
      %p1242 = scmp.lt.s32.totalorder %s8, 5
      %p1243 = pnand %p1241, %p1242
      %p1244 = pneg %p1243
      // Predicated region
      $region73: #{tpu_custom_call.1} parent=5 // pred_check
        _
      $region74: #{tpu_custom_call.1} parent=5 // pred_check_branch
        %1246 = sbr.rel (%p1243) target = $region76
      $region75: #{tpu_custom_call.1} parent=5 // pred_region
        %s1247 = ssub.s32 %s8, 1
        %s1248 = sand.u32 %s35, 1
        %s1249 = sand.u32 %s35, 1
        %s1250 = smul.addr %s1249, 2048
        %s1251 = scalar_lea.vmem [#allocation2], %s1250
        // Predicated region
        $region77: #{tpu_custom_call.1} parent=75 // pred_check
          %p1252 = pneg %p48
        $region78: #{tpu_custom_call.1} parent=75 // pred_check_branch
          %1254 = sbr.rel (%p1252) target = $region80
        $region79: #{tpu_custom_call.1} parent=75 // pred_region
          _
        $region80: #{tpu_custom_call.1} parent=75 // pred_fallthru
          _
        %s1255 = sand.u32 %s35, 1
        %s1256 = sand.u32 %s35, 1
        %s1257 = smul.addr %s1256, 2048
        %s1258 = scalar_lea.vmem [#allocation2], %s1257
        %p1259 = pneg %p48
        %p1260 = pneg %p45
        %p1261 = pneg %p69
        %p1262 = pneg %p66
        %p1263 = pneg %p97
        %p1264 = pneg %p94
        %s1265 = sand.u32 %s84, 1
        %s1266 = sand.u32 %s84, 1
        %s1267 = smul.addr %s1266, 512
        %s1268 = scalar_lea.vmem [#allocation3], %s1267
        %s1269 = smul.u32 2, %s18
        %s1270 = ssub.s32 7, %s1269
        %p1271 = scmp.lt.s32.totalorder %s1270, 2
        %s1272 = scalar_select %p1271, %s1270, 2
        %s1273 = smul.u32 16384, %s1272
        %s1274 = smul.u32 2, %s18
        %s1275 = ssub.s32 7, %s1274
        %p1276 = scmp.lt.s32.totalorder %s1275, 2
        %s1277 = scalar_select %p1276, %s1275, 2
        %s1278 = smul.u32 4096, %s1277
        %v1279 = vld [vmem:[%s1] sm:$0xff]
        %v1280 = vld [vmem:[%s1 + $0x8] sm:$0xff]
        %v1281 = vld [vmem:[%s1 + $0x10] sm:$0xff]
        %v1282 = vld [vmem:[%s1 + $0x18] sm:$0xff]
        %v1283 = vld [vmem:[%s1 + $0x20] sm:$0xff]
        %v1284 = vld [vmem:[%s1 + $0x28] sm:$0xff]
        %v1285 = vld [vmem:[%s1 + $0x30] sm:$0xff]
        %v1286 = vld [vmem:[%s1 + $0x38] sm:$0xff]
        %v1287 = vld [vmem:[%s1 + $0x40] sm:$0xff]
        %v1288 = vld [vmem:[%s1 + $0x48] sm:$0xff]
        %v1289 = vld [vmem:[%s1 + $0x50] sm:$0xff]
        %v1290 = vld [vmem:[%s1 + $0x58] sm:$0xff]
        %v1291 = vld [vmem:[%s1 + $0x60] sm:$0xff]
        %v1292 = vld [vmem:[%s1 + $0x68] sm:$0xff]
        %v1293 = vld [vmem:[%s1 + $0x70] sm:$0xff]
        %v1294 = vld [vmem:[%s1 + $0x78] sm:$0xff]
        %v1295 = vld [vmem:[%s1 + $0x80] sm:$0xff]
        %v1296 = vld [vmem:[%s1 + $0x88] sm:$0xff]
        %v1297 = vld [vmem:[%s1 + $0x90] sm:$0xff]
        %v1298 = vld [vmem:[%s1 + $0x98] sm:$0xff]
        %v1299 = vld [vmem:[%s1 + $0xa0] sm:$0xff]
        %v1300 = vld [vmem:[%s1 + $0xa8] sm:$0xff]
        %v1301 = vld [vmem:[%s1 + $0xb0] sm:$0xff]
        %v1302 = vld [vmem:[%s1 + $0xb8] sm:$0xff]
        %v1303 = vld [vmem:[%s1 + $0xc0] sm:$0xff]
        %v1304 = vld [vmem:[%s1 + $0xc8] sm:$0xff]
        %v1305 = vld [vmem:[%s1 + $0xd0] sm:$0xff]
        %v1306 = vld [vmem:[%s1 + $0xd8] sm:$0xff]
        %v1307 = vld [vmem:[%s1 + $0xe0] sm:$0xff]
        %v1308 = vld [vmem:[%s1 + $0xe8] sm:$0xff]
        %v1309 = vld [vmem:[%s1 + $0xf0] sm:$0xff]
        %v1310 = vld [vmem:[%s1 + $0xf8] sm:$0xff]
        %v1311 = vld [vmem:[%s1 + $0x100] sm:$0xff]
        %v1312 = vld [vmem:[%s1 + $0x108] sm:$0xff]
        %v1313 = vld [vmem:[%s1 + $0x110] sm:$0xff]
        %v1314 = vld [vmem:[%s1 + $0x118] sm:$0xff]
        %v1315 = vld [vmem:[%s1 + $0x120] sm:$0xff]
        %v1316 = vld [vmem:[%s1 + $0x128] sm:$0xff]
        %v1317 = vld [vmem:[%s1 + $0x130] sm:$0xff]
        %v1318 = vld [vmem:[%s1 + $0x138] sm:$0xff]
        %v1319 = vld [vmem:[%s1 + $0x140] sm:$0xff]
        %v1320 = vld [vmem:[%s1 + $0x148] sm:$0xff]
        %v1321 = vld [vmem:[%s1 + $0x150] sm:$0xff]
        %v1322 = vld [vmem:[%s1 + $0x158] sm:$0xff]
        %v1323 = vld [vmem:[%s1 + $0x160] sm:$0xff]
        %v1324 = vld [vmem:[%s1 + $0x168] sm:$0xff]
        %v1325 = vld [vmem:[%s1 + $0x170] sm:$0xff]
        %v1326 = vld [vmem:[%s1 + $0x178] sm:$0xff]
        %v1327 = vld [vmem:[%s1 + $0x180] sm:$0xff]
        %v1328 = vld [vmem:[%s1 + $0x188] sm:$0xff]
        %v1329 = vld [vmem:[%s1 + $0x190] sm:$0xff]
        %v1330 = vld [vmem:[%s1 + $0x198] sm:$0xff]
        %v1331 = vld [vmem:[%s1 + $0x1a0] sm:$0xff]
        %v1332 = vld [vmem:[%s1 + $0x1a8] sm:$0xff]
        %v1333 = vld [vmem:[%s1 + $0x1b0] sm:$0xff]
        %v1334 = vld [vmem:[%s1 + $0x1b8] sm:$0xff]
        %v1335 = vld [vmem:[%s1 + $0x1c0] sm:$0xff]
        %v1336 = vld [vmem:[%s1 + $0x1c8] sm:$0xff]
        %v1337 = vld [vmem:[%s1 + $0x1d0] sm:$0xff]
        %v1338 = vld [vmem:[%s1 + $0x1d8] sm:$0xff]
        %v1339 = vld [vmem:[%s1 + $0x1e0] sm:$0xff]
        %v1340 = vld [vmem:[%s1 + $0x1e8] sm:$0xff]
        %v1341 = vld [vmem:[%s1 + $0x1f0] sm:$0xff]
        %v1342 = vld [vmem:[%s1 + $0x1f8] sm:$0xff]
        %v1343 = vld [vmem:[%s1 + $0x200] sm:$0xff]
        %v1344 = vld [vmem:[%s1 + $0x208] sm:$0xff]
        %v1345 = vld [vmem:[%s1 + $0x210] sm:$0xff]
        %v1346 = vld [vmem:[%s1 + $0x218] sm:$0xff]
        %v1347 = vld [vmem:[%s1 + $0x220] sm:$0xff]
        %v1348 = vld [vmem:[%s1 + $0x228] sm:$0xff]
        %v1349 = vld [vmem:[%s1 + $0x230] sm:$0xff]
        %v1350 = vld [vmem:[%s1 + $0x238] sm:$0xff]
        %v1351 = vld [vmem:[%s1 + $0x240] sm:$0xff]
        %v1352 = vld [vmem:[%s1 + $0x248] sm:$0xff]
        %v1353 = vld [vmem:[%s1 + $0x250] sm:$0xff]
        %v1354 = vld [vmem:[%s1 + $0x258] sm:$0xff]
        %v1355 = vld [vmem:[%s1 + $0x260] sm:$0xff]
        %v1356 = vld [vmem:[%s1 + $0x268] sm:$0xff]
        %v1357 = vld [vmem:[%s1 + $0x270] sm:$0xff]
        %v1358 = vld [vmem:[%s1 + $0x278] sm:$0xff]
        %v1359 = vld [vmem:[%s1 + $0x280] sm:$0xff]
        %v1360 = vld [vmem:[%s1 + $0x288] sm:$0xff]
        %v1361 = vld [vmem:[%s1 + $0x290] sm:$0xff]
        %v1362 = vld [vmem:[%s1 + $0x298] sm:$0xff]
        %v1363 = vld [vmem:[%s1 + $0x2a0] sm:$0xff]
        %v1364 = vld [vmem:[%s1 + $0x2a8] sm:$0xff]
        %v1365 = vld [vmem:[%s1 + $0x2b0] sm:$0xff]
        %v1366 = vld [vmem:[%s1 + $0x2b8] sm:$0xff]
        %v1367 = vld [vmem:[%s1 + $0x2c0] sm:$0xff]
        %v1368 = vld [vmem:[%s1 + $0x2c8] sm:$0xff]
        %v1369 = vld [vmem:[%s1 + $0x2d0] sm:$0xff]
        %v1370 = vld [vmem:[%s1 + $0x2d8] sm:$0xff]
        %v1371 = vld [vmem:[%s1 + $0x2e0] sm:$0xff]
        %v1372 = vld [vmem:[%s1 + $0x2e8] sm:$0xff]
        %v1373 = vld [vmem:[%s1 + $0x2f0] sm:$0xff]
        %v1374 = vld [vmem:[%s1 + $0x2f8] sm:$0xff]
        %v1375 = vld [vmem:[%s1 + $0x300] sm:$0xff]
        %v1376 = vld [vmem:[%s1 + $0x308] sm:$0xff]
        %v1377 = vld [vmem:[%s1 + $0x310] sm:$0xff]
        %v1378 = vld [vmem:[%s1 + $0x318] sm:$0xff]
        %v1379 = vld [vmem:[%s1 + $0x320] sm:$0xff]
        %v1380 = vld [vmem:[%s1 + $0x328] sm:$0xff]
        %v1381 = vld [vmem:[%s1 + $0x330] sm:$0xff]
        %v1382 = vld [vmem:[%s1 + $0x338] sm:$0xff]
        %v1383 = vld [vmem:[%s1 + $0x340] sm:$0xff]
        %v1384 = vld [vmem:[%s1 + $0x348] sm:$0xff]
        %v1385 = vld [vmem:[%s1 + $0x350] sm:$0xff]
        %v1386 = vld [vmem:[%s1 + $0x358] sm:$0xff]
        %v1387 = vld [vmem:[%s1 + $0x360] sm:$0xff]
        %v1388 = vld [vmem:[%s1 + $0x368] sm:$0xff]
        %v1389 = vld [vmem:[%s1 + $0x370] sm:$0xff]
        %v1390 = vld [vmem:[%s1 + $0x378] sm:$0xff]
        %v1391 = vld [vmem:[%s1 + $0x380] sm:$0xff]
        %v1392 = vld [vmem:[%s1 + $0x388] sm:$0xff]
        %v1393 = vld [vmem:[%s1 + $0x390] sm:$0xff]
        %v1394 = vld [vmem:[%s1 + $0x398] sm:$0xff]
        %v1395 = vld [vmem:[%s1 + $0x3a0] sm:$0xff]
        %v1396 = vld [vmem:[%s1 + $0x3a8] sm:$0xff]
        %v1397 = vld [vmem:[%s1 + $0x3b0] sm:$0xff]
        %v1398 = vld [vmem:[%s1 + $0x3b8] sm:$0xff]
        %v1399 = vld [vmem:[%s1 + $0x3c0] sm:$0xff]
        %v1400 = vld [vmem:[%s1 + $0x3c8] sm:$0xff]
        %v1401 = vld [vmem:[%s1 + $0x3d0] sm:$0xff]
        %v1402 = vld [vmem:[%s1 + $0x3d8] sm:$0xff]
        %v1403 = vld [vmem:[%s1 + $0x3e0] sm:$0xff]
        %v1404 = vld [vmem:[%s1 + $0x3e8] sm:$0xff]
        %v1405 = vld [vmem:[%s1 + $0x3f0] sm:$0xff]
        %v1406 = vld [vmem:[%s1 + $0x3f8] sm:$0xff]
        %v1407 = vld [vmem:[%s1 + $0x400] sm:$0xff]
        %v1408 = vld [vmem:[%s1 + $0x408] sm:$0xff]
        %v1409 = vld [vmem:[%s1 + $0x410] sm:$0xff]
        %v1410 = vld [vmem:[%s1 + $0x418] sm:$0xff]
        %v1411 = vld [vmem:[%s1 + $0x420] sm:$0xff]
        %v1412 = vld [vmem:[%s1 + $0x428] sm:$0xff]
        %v1413 = vld [vmem:[%s1 + $0x430] sm:$0xff]
        %v1414 = vld [vmem:[%s1 + $0x438] sm:$0xff]
        %v1415 = vld [vmem:[%s1 + $0x440] sm:$0xff]
        %v1416 = vld [vmem:[%s1 + $0x448] sm:$0xff]
        %v1417 = vld [vmem:[%s1 + $0x450] sm:$0xff]
        %v1418 = vld [vmem:[%s1 + $0x458] sm:$0xff]
        %v1419 = vld [vmem:[%s1 + $0x460] sm:$0xff]
        %v1420 = vld [vmem:[%s1 + $0x468] sm:$0xff]
        %v1421 = vld [vmem:[%s1 + $0x470] sm:$0xff]
        %v1422 = vld [vmem:[%s1 + $0x478] sm:$0xff]
        %v1423 = vld [vmem:[%s1 + $0x480] sm:$0xff]
        %v1424 = vld [vmem:[%s1 + $0x488] sm:$0xff]
        %v1425 = vld [vmem:[%s1 + $0x490] sm:$0xff]
        %v1426 = vld [vmem:[%s1 + $0x498] sm:$0xff]
        %v1427 = vld [vmem:[%s1 + $0x4a0] sm:$0xff]
        %v1428 = vld [vmem:[%s1 + $0x4a8] sm:$0xff]
        %v1429 = vld [vmem:[%s1 + $0x4b0] sm:$0xff]
        %v1430 = vld [vmem:[%s1 + $0x4b8] sm:$0xff]
        %v1431 = vld [vmem:[%s1 + $0x4c0] sm:$0xff]
        %v1432 = vld [vmem:[%s1 + $0x4c8] sm:$0xff]
        %v1433 = vld [vmem:[%s1 + $0x4d0] sm:$0xff]
        %v1434 = vld [vmem:[%s1 + $0x4d8] sm:$0xff]
        %v1435 = vld [vmem:[%s1 + $0x4e0] sm:$0xff]
        %v1436 = vld [vmem:[%s1 + $0x4e8] sm:$0xff]
        %v1437 = vld [vmem:[%s1 + $0x4f0] sm:$0xff]
        %v1438 = vld [vmem:[%s1 + $0x4f8] sm:$0xff]
        %v1439 = vld [vmem:[%s1 + $0x500] sm:$0xff]
        %v1440 = vld [vmem:[%s1 + $0x508] sm:$0xff]
        %v1441 = vld [vmem:[%s1 + $0x510] sm:$0xff]
        %v1442 = vld [vmem:[%s1 + $0x518] sm:$0xff]
        %v1443 = vld [vmem:[%s1 + $0x520] sm:$0xff]
        %v1444 = vld [vmem:[%s1 + $0x528] sm:$0xff]
        %v1445 = vld [vmem:[%s1 + $0x530] sm:$0xff]
        %v1446 = vld [vmem:[%s1 + $0x538] sm:$0xff]
        %v1447 = vld [vmem:[%s1 + $0x540] sm:$0xff]
        %v1448 = vld [vmem:[%s1 + $0x548] sm:$0xff]
        %v1449 = vld [vmem:[%s1 + $0x550] sm:$0xff]
        %v1450 = vld [vmem:[%s1 + $0x558] sm:$0xff]
        %v1451 = vld [vmem:[%s1 + $0x560] sm:$0xff]
        %v1452 = vld [vmem:[%s1 + $0x568] sm:$0xff]
        %v1453 = vld [vmem:[%s1 + $0x570] sm:$0xff]
        %v1454 = vld [vmem:[%s1 + $0x578] sm:$0xff]
        %v1455 = vld [vmem:[%s1 + $0x580] sm:$0xff]
        %v1456 = vld [vmem:[%s1 + $0x588] sm:$0xff]
        %v1457 = vld [vmem:[%s1 + $0x590] sm:$0xff]
        %v1458 = vld [vmem:[%s1 + $0x598] sm:$0xff]
        %v1459 = vld [vmem:[%s1 + $0x5a0] sm:$0xff]
        %v1460 = vld [vmem:[%s1 + $0x5a8] sm:$0xff]
        %v1461 = vld [vmem:[%s1 + $0x5b0] sm:$0xff]
        %v1462 = vld [vmem:[%s1 + $0x5b8] sm:$0xff]
        %v1463 = vld [vmem:[%s1 + $0x5c0] sm:$0xff]
        %v1464 = vld [vmem:[%s1 + $0x5c8] sm:$0xff]
        %v1465 = vld [vmem:[%s1 + $0x5d0] sm:$0xff]
        %v1466 = vld [vmem:[%s1 + $0x5d8] sm:$0xff]
        %v1467 = vld [vmem:[%s1 + $0x5e0] sm:$0xff]
        %v1468 = vld [vmem:[%s1 + $0x5e8] sm:$0xff]
        %v1469 = vld [vmem:[%s1 + $0x5f0] sm:$0xff]
        %v1470 = vld [vmem:[%s1 + $0x5f8] sm:$0xff]
        %v1471 = vld [vmem:[%s1 + $0x600] sm:$0xff]
        %v1472 = vld [vmem:[%s1 + $0x608] sm:$0xff]
        %v1473 = vld [vmem:[%s1 + $0x610] sm:$0xff]
        %v1474 = vld [vmem:[%s1 + $0x618] sm:$0xff]
        %v1475 = vld [vmem:[%s1 + $0x620] sm:$0xff]
        %v1476 = vld [vmem:[%s1 + $0x628] sm:$0xff]
        %v1477 = vld [vmem:[%s1 + $0x630] sm:$0xff]
        %v1478 = vld [vmem:[%s1 + $0x638] sm:$0xff]
        %v1479 = vld [vmem:[%s1 + $0x640] sm:$0xff]
        %v1480 = vld [vmem:[%s1 + $0x648] sm:$0xff]
        %v1481 = vld [vmem:[%s1 + $0x650] sm:$0xff]
        %v1482 = vld [vmem:[%s1 + $0x658] sm:$0xff]
        %v1483 = vld [vmem:[%s1 + $0x660] sm:$0xff]
        %v1484 = vld [vmem:[%s1 + $0x668] sm:$0xff]
        %v1485 = vld [vmem:[%s1 + $0x670] sm:$0xff]
        %v1486 = vld [vmem:[%s1 + $0x678] sm:$0xff]
        %v1487 = vld [vmem:[%s1 + $0x680] sm:$0xff]
        %v1488 = vld [vmem:[%s1 + $0x688] sm:$0xff]
        %v1489 = vld [vmem:[%s1 + $0x690] sm:$0xff]
        %v1490 = vld [vmem:[%s1 + $0x698] sm:$0xff]
        %v1491 = vld [vmem:[%s1 + $0x6a0] sm:$0xff]
        %v1492 = vld [vmem:[%s1 + $0x6a8] sm:$0xff]
        %v1493 = vld [vmem:[%s1 + $0x6b0] sm:$0xff]
        %v1494 = vld [vmem:[%s1 + $0x6b8] sm:$0xff]
        %v1495 = vld [vmem:[%s1 + $0x6c0] sm:$0xff]
        %v1496 = vld [vmem:[%s1 + $0x6c8] sm:$0xff]
        %v1497 = vld [vmem:[%s1 + $0x6d0] sm:$0xff]
        %v1498 = vld [vmem:[%s1 + $0x6d8] sm:$0xff]
        %v1499 = vld [vmem:[%s1 + $0x6e0] sm:$0xff]
        %v1500 = vld [vmem:[%s1 + $0x6e8] sm:$0xff]
        %v1501 = vld [vmem:[%s1 + $0x6f0] sm:$0xff]
        %v1502 = vld [vmem:[%s1 + $0x6f8] sm:$0xff]
        %v1503 = vld [vmem:[%s1 + $0x700] sm:$0xff]
        %v1504 = vld [vmem:[%s1 + $0x708] sm:$0xff]
        %v1505 = vld [vmem:[%s1 + $0x710] sm:$0xff]
        %v1506 = vld [vmem:[%s1 + $0x718] sm:$0xff]
        %v1507 = vld [vmem:[%s1 + $0x720] sm:$0xff]
        %v1508 = vld [vmem:[%s1 + $0x728] sm:$0xff]
        %v1509 = vld [vmem:[%s1 + $0x730] sm:$0xff]
        %v1510 = vld [vmem:[%s1 + $0x738] sm:$0xff]
        %v1511 = vld [vmem:[%s1 + $0x740] sm:$0xff]
        %v1512 = vld [vmem:[%s1 + $0x748] sm:$0xff]
        %v1513 = vld [vmem:[%s1 + $0x750] sm:$0xff]
        %v1514 = vld [vmem:[%s1 + $0x758] sm:$0xff]
        %v1515 = vld [vmem:[%s1 + $0x760] sm:$0xff]
        %v1516 = vld [vmem:[%s1 + $0x768] sm:$0xff]
        %v1517 = vld [vmem:[%s1 + $0x770] sm:$0xff]
        %v1518 = vld [vmem:[%s1 + $0x778] sm:$0xff]
        %v1519 = vld [vmem:[%s1 + $0x780] sm:$0xff]
        %v1520 = vld [vmem:[%s1 + $0x788] sm:$0xff]
        %v1521 = vld [vmem:[%s1 + $0x790] sm:$0xff]
        %v1522 = vld [vmem:[%s1 + $0x798] sm:$0xff]
        %v1523 = vld [vmem:[%s1 + $0x7a0] sm:$0xff]
        %v1524 = vld [vmem:[%s1 + $0x7a8] sm:$0xff]
        %v1525 = vld [vmem:[%s1 + $0x7b0] sm:$0xff]
        %v1526 = vld [vmem:[%s1 + $0x7b8] sm:$0xff]
        %v1527 = vld [vmem:[%s1 + $0x7c0] sm:$0xff]
        %v1528 = vld [vmem:[%s1 + $0x7c8] sm:$0xff]
        %v1529 = vld [vmem:[%s1 + $0x7d0] sm:$0xff]
        %v1530 = vld [vmem:[%s1 + $0x7d8] sm:$0xff]
        %v1531 = vld [vmem:[%s1 + $0x7e0] sm:$0xff]
        %v1532 = vld [vmem:[%s1 + $0x7e8] sm:$0xff]
        %v1533 = vld [vmem:[%s1 + $0x7f0] sm:$0xff]
        %v1534 = vld [vmem:[%s1 + $0x7f8] sm:$0xff]
        %v1535 = vld [vmem:[%s1251] sm:$0xff]
        %v1536 = vld [vmem:[%s1251 + $0x8] sm:$0xff]
        %v1537 = vld [vmem:[%s1251 + $0x10] sm:$0xff]
        %v1538 = vld [vmem:[%s1251 + $0x18] sm:$0xff]
        %v1539 = vld [vmem:[%s1251 + $0x20] sm:$0xff]
        %v1540 = vld [vmem:[%s1251 + $0x28] sm:$0xff]
        %v1541 = vld [vmem:[%s1251 + $0x30] sm:$0xff]
        %v1542 = vld [vmem:[%s1251 + $0x38] sm:$0xff]
        %v1543 = vld [vmem:[%s1251 + $0x40] sm:$0xff]
        %v1544 = vld [vmem:[%s1251 + $0x48] sm:$0xff]
        %v1545 = vld [vmem:[%s1251 + $0x50] sm:$0xff]
        %v1546 = vld [vmem:[%s1251 + $0x58] sm:$0xff]
        %v1547 = vld [vmem:[%s1251 + $0x60] sm:$0xff]
        %v1548 = vld [vmem:[%s1251 + $0x68] sm:$0xff]
        %v1549 = vld [vmem:[%s1251 + $0x70] sm:$0xff]
        %v1550 = vld [vmem:[%s1251 + $0x78] sm:$0xff]
        %v1551 = vld [vmem:[%s1251 + $0x80] sm:$0xff]
        %v1552 = vld [vmem:[%s1251 + $0x88] sm:$0xff]
        %v1553 = vld [vmem:[%s1251 + $0x90] sm:$0xff]
        %v1554 = vld [vmem:[%s1251 + $0x98] sm:$0xff]
        %v1555 = vld [vmem:[%s1251 + $0xa0] sm:$0xff]
        %v1556 = vld [vmem:[%s1251 + $0xa8] sm:$0xff]
        %v1557 = vld [vmem:[%s1251 + $0xb0] sm:$0xff]
        %v1558 = vld [vmem:[%s1251 + $0xb8] sm:$0xff]
        %v1559 = vld [vmem:[%s1251 + $0xc0] sm:$0xff]
        %v1560 = vld [vmem:[%s1251 + $0xc8] sm:$0xff]
        %v1561 = vld [vmem:[%s1251 + $0xd0] sm:$0xff]
        %v1562 = vld [vmem:[%s1251 + $0xd8] sm:$0xff]
        %v1563 = vld [vmem:[%s1251 + $0xe0] sm:$0xff]
        %v1564 = vld [vmem:[%s1251 + $0xe8] sm:$0xff]
        %v1565 = vld [vmem:[%s1251 + $0xf0] sm:$0xff]
        %v1566 = vld [vmem:[%s1251 + $0xf8] sm:$0xff]
        %v1567 = vld [vmem:[%s1251 + $0x100] sm:$0xff]
        %v1568 = vld [vmem:[%s1251 + $0x108] sm:$0xff]
        %v1569 = vld [vmem:[%s1251 + $0x110] sm:$0xff]
        %v1570 = vld [vmem:[%s1251 + $0x118] sm:$0xff]
        %v1571 = vld [vmem:[%s1251 + $0x120] sm:$0xff]
        %v1572 = vld [vmem:[%s1251 + $0x128] sm:$0xff]
        %v1573 = vld [vmem:[%s1251 + $0x130] sm:$0xff]
        %v1574 = vld [vmem:[%s1251 + $0x138] sm:$0xff]
        %v1575 = vld [vmem:[%s1251 + $0x140] sm:$0xff]
        %v1576 = vld [vmem:[%s1251 + $0x148] sm:$0xff]
        %v1577 = vld [vmem:[%s1251 + $0x150] sm:$0xff]
        %v1578 = vld [vmem:[%s1251 + $0x158] sm:$0xff]
        %v1579 = vld [vmem:[%s1251 + $0x160] sm:$0xff]
        %v1580 = vld [vmem:[%s1251 + $0x168] sm:$0xff]
        %v1581 = vld [vmem:[%s1251 + $0x170] sm:$0xff]
        %v1582 = vld [vmem:[%s1251 + $0x178] sm:$0xff]
        %v1583 = vld [vmem:[%s1251 + $0x180] sm:$0xff]
        %v1584 = vld [vmem:[%s1251 + $0x188] sm:$0xff]
        %v1585 = vld [vmem:[%s1251 + $0x190] sm:$0xff]
        %v1586 = vld [vmem:[%s1251 + $0x198] sm:$0xff]
        %v1587 = vld [vmem:[%s1251 + $0x1a0] sm:$0xff]
        %v1588 = vld [vmem:[%s1251 + $0x1a8] sm:$0xff]
        %v1589 = vld [vmem:[%s1251 + $0x1b0] sm:$0xff]
        %v1590 = vld [vmem:[%s1251 + $0x1b8] sm:$0xff]
        %v1591 = vld [vmem:[%s1251 + $0x1c0] sm:$0xff]
        %v1592 = vld [vmem:[%s1251 + $0x1c8] sm:$0xff]
        %v1593 = vld [vmem:[%s1251 + $0x1d0] sm:$0xff]
        %v1594 = vld [vmem:[%s1251 + $0x1d8] sm:$0xff]
        %v1595 = vld [vmem:[%s1251 + $0x1e0] sm:$0xff]
        %v1596 = vld [vmem:[%s1251 + $0x1e8] sm:$0xff]
        %v1597 = vld [vmem:[%s1251 + $0x1f0] sm:$0xff]
        %v1598 = vld [vmem:[%s1251 + $0x1f8] sm:$0xff]
        %v1599 = vld [vmem:[%s1251 + $0x200] sm:$0xff]
        %v1600 = vld [vmem:[%s1251 + $0x208] sm:$0xff]
        %v1601 = vld [vmem:[%s1251 + $0x210] sm:$0xff]
        %v1602 = vld [vmem:[%s1251 + $0x218] sm:$0xff]
        %v1603 = vld [vmem:[%s1251 + $0x220] sm:$0xff]
        %v1604 = vld [vmem:[%s1251 + $0x228] sm:$0xff]
        %v1605 = vld [vmem:[%s1251 + $0x230] sm:$0xff]
        %v1606 = vld [vmem:[%s1251 + $0x238] sm:$0xff]
        %v1607 = vld [vmem:[%s1251 + $0x240] sm:$0xff]
        %v1608 = vld [vmem:[%s1251 + $0x248] sm:$0xff]
        %v1609 = vld [vmem:[%s1251 + $0x250] sm:$0xff]
        %v1610 = vld [vmem:[%s1251 + $0x258] sm:$0xff]
        %v1611 = vld [vmem:[%s1251 + $0x260] sm:$0xff]
        %v1612 = vld [vmem:[%s1251 + $0x268] sm:$0xff]
        %v1613 = vld [vmem:[%s1251 + $0x270] sm:$0xff]
        %v1614 = vld [vmem:[%s1251 + $0x278] sm:$0xff]
        %v1615 = vld [vmem:[%s1251 + $0x280] sm:$0xff]
        %v1616 = vld [vmem:[%s1251 + $0x288] sm:$0xff]
        %v1617 = vld [vmem:[%s1251 + $0x290] sm:$0xff]
        %v1618 = vld [vmem:[%s1251 + $0x298] sm:$0xff]
        %v1619 = vld [vmem:[%s1251 + $0x2a0] sm:$0xff]
        %v1620 = vld [vmem:[%s1251 + $0x2a8] sm:$0xff]
        %v1621 = vld [vmem:[%s1251 + $0x2b0] sm:$0xff]
        %v1622 = vld [vmem:[%s1251 + $0x2b8] sm:$0xff]
        %v1623 = vld [vmem:[%s1251 + $0x2c0] sm:$0xff]
        %v1624 = vld [vmem:[%s1251 + $0x2c8] sm:$0xff]
        %v1625 = vld [vmem:[%s1251 + $0x2d0] sm:$0xff]
        %v1626 = vld [vmem:[%s1251 + $0x2d8] sm:$0xff]
        %v1627 = vld [vmem:[%s1251 + $0x2e0] sm:$0xff]
        %v1628 = vld [vmem:[%s1251 + $0x2e8] sm:$0xff]
        %v1629 = vld [vmem:[%s1251 + $0x2f0] sm:$0xff]
        %v1630 = vld [vmem:[%s1251 + $0x2f8] sm:$0xff]
        %v1631 = vld [vmem:[%s1251 + $0x300] sm:$0xff]
        %v1632 = vld [vmem:[%s1251 + $0x308] sm:$0xff]
        %v1633 = vld [vmem:[%s1251 + $0x310] sm:$0xff]
        %v1634 = vld [vmem:[%s1251 + $0x318] sm:$0xff]
        %v1635 = vld [vmem:[%s1251 + $0x320] sm:$0xff]
        %v1636 = vld [vmem:[%s1251 + $0x328] sm:$0xff]
        %v1637 = vld [vmem:[%s1251 + $0x330] sm:$0xff]
        %v1638 = vld [vmem:[%s1251 + $0x338] sm:$0xff]
        %v1639 = vld [vmem:[%s1251 + $0x340] sm:$0xff]
        %v1640 = vld [vmem:[%s1251 + $0x348] sm:$0xff]
        %v1641 = vld [vmem:[%s1251 + $0x350] sm:$0xff]
        %v1642 = vld [vmem:[%s1251 + $0x358] sm:$0xff]
        %v1643 = vld [vmem:[%s1251 + $0x360] sm:$0xff]
        %v1644 = vld [vmem:[%s1251 + $0x368] sm:$0xff]
        %v1645 = vld [vmem:[%s1251 + $0x370] sm:$0xff]
        %v1646 = vld [vmem:[%s1251 + $0x378] sm:$0xff]
        %v1647 = vld [vmem:[%s1251 + $0x380] sm:$0xff]
        %v1648 = vld [vmem:[%s1251 + $0x388] sm:$0xff]
        %v1649 = vld [vmem:[%s1251 + $0x390] sm:$0xff]
        %v1650 = vld [vmem:[%s1251 + $0x398] sm:$0xff]
        %v1651 = vld [vmem:[%s1251 + $0x3a0] sm:$0xff]
        %v1652 = vld [vmem:[%s1251 + $0x3a8] sm:$0xff]
        %v1653 = vld [vmem:[%s1251 + $0x3b0] sm:$0xff]
        %v1654 = vld [vmem:[%s1251 + $0x3b8] sm:$0xff]
        %v1655 = vld [vmem:[%s1251 + $0x3c0] sm:$0xff]
        %v1656 = vld [vmem:[%s1251 + $0x3c8] sm:$0xff]
        %v1657 = vld [vmem:[%s1251 + $0x3d0] sm:$0xff]
        %v1658 = vld [vmem:[%s1251 + $0x3d8] sm:$0xff]
        %v1659 = vld [vmem:[%s1251 + $0x3e0] sm:$0xff]
        %v1660 = vld [vmem:[%s1251 + $0x3e8] sm:$0xff]
        %v1661 = vld [vmem:[%s1251 + $0x3f0] sm:$0xff]
        %v1662 = vld [vmem:[%s1251 + $0x3f8] sm:$0xff]
        %v1663 = vld [vmem:[%s1251 + $0x400] sm:$0xff]
        %v1664 = vld [vmem:[%s1251 + $0x408] sm:$0xff]
        %v1665 = vld [vmem:[%s1251 + $0x410] sm:$0xff]
        %v1666 = vld [vmem:[%s1251 + $0x418] sm:$0xff]
        %v1667 = vld [vmem:[%s1251 + $0x420] sm:$0xff]
        %v1668 = vld [vmem:[%s1251 + $0x428] sm:$0xff]
        %v1669 = vld [vmem:[%s1251 + $0x430] sm:$0xff]
        %v1670 = vld [vmem:[%s1251 + $0x438] sm:$0xff]
        %v1671 = vld [vmem:[%s1251 + $0x440] sm:$0xff]
        %v1672 = vld [vmem:[%s1251 + $0x448] sm:$0xff]
        %v1673 = vld [vmem:[%s1251 + $0x450] sm:$0xff]
        %v1674 = vld [vmem:[%s1251 + $0x458] sm:$0xff]
        %v1675 = vld [vmem:[%s1251 + $0x460] sm:$0xff]
        %v1676 = vld [vmem:[%s1251 + $0x468] sm:$0xff]
        %v1677 = vld [vmem:[%s1251 + $0x470] sm:$0xff]
        %v1678 = vld [vmem:[%s1251 + $0x478] sm:$0xff]
        %v1679 = vld [vmem:[%s1251 + $0x480] sm:$0xff]
        %v1680 = vld [vmem:[%s1251 + $0x488] sm:$0xff]
        %v1681 = vld [vmem:[%s1251 + $0x490] sm:$0xff]
        %v1682 = vld [vmem:[%s1251 + $0x498] sm:$0xff]
        %v1683 = vld [vmem:[%s1251 + $0x4a0] sm:$0xff]
        %v1684 = vld [vmem:[%s1251 + $0x4a8] sm:$0xff]
        %v1685 = vld [vmem:[%s1251 + $0x4b0] sm:$0xff]
        %v1686 = vld [vmem:[%s1251 + $0x4b8] sm:$0xff]
        %v1687 = vld [vmem:[%s1251 + $0x4c0] sm:$0xff]
        %v1688 = vld [vmem:[%s1251 + $0x4c8] sm:$0xff]
        %v1689 = vld [vmem:[%s1251 + $0x4d0] sm:$0xff]
        %v1690 = vld [vmem:[%s1251 + $0x4d8] sm:$0xff]
        %v1691 = vld [vmem:[%s1251 + $0x4e0] sm:$0xff]
        %v1692 = vld [vmem:[%s1251 + $0x4e8] sm:$0xff]
        %v1693 = vld [vmem:[%s1251 + $0x4f0] sm:$0xff]
        %v1694 = vld [vmem:[%s1251 + $0x4f8] sm:$0xff]
        %v1695 = vld [vmem:[%s1251 + $0x500] sm:$0xff]
        %v1696 = vld [vmem:[%s1251 + $0x508] sm:$0xff]
        %v1697 = vld [vmem:[%s1251 + $0x510] sm:$0xff]
        %v1698 = vld [vmem:[%s1251 + $0x518] sm:$0xff]
        %v1699 = vld [vmem:[%s1251 + $0x520] sm:$0xff]
        %v1700 = vld [vmem:[%s1251 + $0x528] sm:$0xff]
        %v1701 = vld [vmem:[%s1251 + $0x530] sm:$0xff]
        %v1702 = vld [vmem:[%s1251 + $0x538] sm:$0xff]
        %v1703 = vld [vmem:[%s1251 + $0x540] sm:$0xff]
        %v1704 = vld [vmem:[%s1251 + $0x548] sm:$0xff]
        %v1705 = vld [vmem:[%s1251 + $0x550] sm:$0xff]
        %v1706 = vld [vmem:[%s1251 + $0x558] sm:$0xff]
        %v1707 = vld [vmem:[%s1251 + $0x560] sm:$0xff]
        %v1708 = vld [vmem:[%s1251 + $0x568] sm:$0xff]
        %v1709 = vld [vmem:[%s1251 + $0x570] sm:$0xff]
        %v1710 = vld [vmem:[%s1251 + $0x578] sm:$0xff]
        %v1711 = vld [vmem:[%s1251 + $0x580] sm:$0xff]
        %v1712 = vld [vmem:[%s1251 + $0x588] sm:$0xff]
        %v1713 = vld [vmem:[%s1251 + $0x590] sm:$0xff]
        %v1714 = vld [vmem:[%s1251 + $0x598] sm:$0xff]
        %v1715 = vld [vmem:[%s1251 + $0x5a0] sm:$0xff]
        %v1716 = vld [vmem:[%s1251 + $0x5a8] sm:$0xff]
        %v1717 = vld [vmem:[%s1251 + $0x5b0] sm:$0xff]
        %v1718 = vld [vmem:[%s1251 + $0x5b8] sm:$0xff]
        %v1719 = vld [vmem:[%s1251 + $0x5c0] sm:$0xff]
        %v1720 = vld [vmem:[%s1251 + $0x5c8] sm:$0xff]
        %v1721 = vld [vmem:[%s1251 + $0x5d0] sm:$0xff]
        %v1722 = vld [vmem:[%s1251 + $0x5d8] sm:$0xff]
        %v1723 = vld [vmem:[%s1251 + $0x5e0] sm:$0xff]
        %v1724 = vld [vmem:[%s1251 + $0x5e8] sm:$0xff]
        %v1725 = vld [vmem:[%s1251 + $0x5f0] sm:$0xff]
        %v1726 = vld [vmem:[%s1251 + $0x5f8] sm:$0xff]
        %v1727 = vld [vmem:[%s1251 + $0x600] sm:$0xff]
        %v1728 = vld [vmem:[%s1251 + $0x608] sm:$0xff]
        %v1729 = vld [vmem:[%s1251 + $0x610] sm:$0xff]
        %v1730 = vld [vmem:[%s1251 + $0x618] sm:$0xff]
        %v1731 = vld [vmem:[%s1251 + $0x620] sm:$0xff]
        %v1732 = vld [vmem:[%s1251 + $0x628] sm:$0xff]
        %v1733 = vld [vmem:[%s1251 + $0x630] sm:$0xff]
        %v1734 = vld [vmem:[%s1251 + $0x638] sm:$0xff]
        %v1735 = vld [vmem:[%s1251 + $0x640] sm:$0xff]
        %v1736 = vld [vmem:[%s1251 + $0x648] sm:$0xff]
        %v1737 = vld [vmem:[%s1251 + $0x650] sm:$0xff]
        %v1738 = vld [vmem:[%s1251 + $0x658] sm:$0xff]
        %v1739 = vld [vmem:[%s1251 + $0x660] sm:$0xff]
        %v1740 = vld [vmem:[%s1251 + $0x668] sm:$0xff]
        %v1741 = vld [vmem:[%s1251 + $0x670] sm:$0xff]
        %v1742 = vld [vmem:[%s1251 + $0x678] sm:$0xff]
        %v1743 = vld [vmem:[%s1251 + $0x680] sm:$0xff]
        %v1744 = vld [vmem:[%s1251 + $0x688] sm:$0xff]
        %v1745 = vld [vmem:[%s1251 + $0x690] sm:$0xff]
        %v1746 = vld [vmem:[%s1251 + $0x698] sm:$0xff]
        %v1747 = vld [vmem:[%s1251 + $0x6a0] sm:$0xff]
        %v1748 = vld [vmem:[%s1251 + $0x6a8] sm:$0xff]
        %v1749 = vld [vmem:[%s1251 + $0x6b0] sm:$0xff]
        %v1750 = vld [vmem:[%s1251 + $0x6b8] sm:$0xff]
        %v1751 = vld [vmem:[%s1251 + $0x6c0] sm:$0xff]
        %v1752 = vld [vmem:[%s1251 + $0x6c8] sm:$0xff]
        %v1753 = vld [vmem:[%s1251 + $0x6d0] sm:$0xff]
        %v1754 = vld [vmem:[%s1251 + $0x6d8] sm:$0xff]
        %v1755 = vld [vmem:[%s1251 + $0x6e0] sm:$0xff]
        %v1756 = vld [vmem:[%s1251 + $0x6e8] sm:$0xff]
        %v1757 = vld [vmem:[%s1251 + $0x6f0] sm:$0xff]
        %v1758 = vld [vmem:[%s1251 + $0x6f8] sm:$0xff]
        %v1759 = vld [vmem:[%s1251 + $0x700] sm:$0xff]
        %v1760 = vld [vmem:[%s1251 + $0x708] sm:$0xff]
        %v1761 = vld [vmem:[%s1251 + $0x710] sm:$0xff]
        %v1762 = vld [vmem:[%s1251 + $0x718] sm:$0xff]
        %v1763 = vld [vmem:[%s1251 + $0x720] sm:$0xff]
        %v1764 = vld [vmem:[%s1251 + $0x728] sm:$0xff]
        %v1765 = vld [vmem:[%s1251 + $0x730] sm:$0xff]
        %v1766 = vld [vmem:[%s1251 + $0x738] sm:$0xff]
        %v1767 = vld [vmem:[%s1251 + $0x740] sm:$0xff]
        %v1768 = vld [vmem:[%s1251 + $0x748] sm:$0xff]
        %v1769 = vld [vmem:[%s1251 + $0x750] sm:$0xff]
        %v1770 = vld [vmem:[%s1251 + $0x758] sm:$0xff]
        %v1771 = vld [vmem:[%s1251 + $0x760] sm:$0xff]
        %v1772 = vld [vmem:[%s1251 + $0x768] sm:$0xff]
        %v1773 = vld [vmem:[%s1251 + $0x770] sm:$0xff]
        %v1774 = vld [vmem:[%s1251 + $0x778] sm:$0xff]
        %v1775 = vld [vmem:[%s1251 + $0x780] sm:$0xff]
        %v1776 = vld [vmem:[%s1251 + $0x788] sm:$0xff]
        %v1777 = vld [vmem:[%s1251 + $0x790] sm:$0xff]
        %v1778 = vld [vmem:[%s1251 + $0x798] sm:$0xff]
        %v1779 = vld [vmem:[%s1251 + $0x7a0] sm:$0xff]
        %v1780 = vld [vmem:[%s1251 + $0x7a8] sm:$0xff]
        %v1781 = vld [vmem:[%s1251 + $0x7b0] sm:$0xff]
        %v1782 = vld [vmem:[%s1251 + $0x7b8] sm:$0xff]
        %v1783 = vld [vmem:[%s1251 + $0x7c0] sm:$0xff]
        %v1784 = vld [vmem:[%s1251 + $0x7c8] sm:$0xff]
        %v1785 = vld [vmem:[%s1251 + $0x7d0] sm:$0xff]
        %v1786 = vld [vmem:[%s1251 + $0x7d8] sm:$0xff]
        %v1787 = vld [vmem:[%s1251 + $0x7e0] sm:$0xff]
        %v1788 = vld [vmem:[%s1251 + $0x7e8] sm:$0xff]
        %v1789 = vld [vmem:[%s1251 + $0x7f0] sm:$0xff]
        %v1790 = vld [vmem:[%s1251 + $0x7f8] sm:$0xff]
        %1791 = vmatprep.subr.mxu0 %v1536
        %1792 = vmatpush1.msra.mxu0 %v1535
        %1793 = vmatprep.subr.mxu0 %v1538
        %1794 = vmatpush1.msra.mxu0 %v1537
        %1795 = vmatprep.subr.mxu0 %v1540
        %1796 = vmatpush1.msra.mxu0 %v1539
        %1797 = vmatprep.subr.mxu0 %v1542
        %1798 = vmatpush1.msra.mxu0 %v1541
        %1799 = vmatprep.subr.mxu0 %v1544
        %1800 = vmatpush1.msra.mxu0 %v1543
        %1801 = vmatprep.subr.mxu0 %v1546
        %1802 = vmatpush1.msra.mxu0 %v1545
        %1803 = vmatprep.subr.mxu0 %v1548
        %1804 = vmatpush1.msra.mxu0 %v1547
        %1805 = vmatprep.subr.mxu0 %v1550
        %1806 = vmatpush1.msra.mxu0 %v1549
        %1807 = vmatprep.subr.mxu0 %v1552
        %1808 = vmatpush1.msra.mxu0 %v1551
        %1809 = vmatprep.subr.mxu0 %v1554
        %1810 = vmatpush1.msra.mxu0 %v1553
        %1811 = vmatprep.subr.mxu0 %v1556
        %1812 = vmatpush1.msra.mxu0 %v1555
        %1813 = vmatprep.subr.mxu0 %v1558
        %1814 = vmatpush1.msra.mxu0 %v1557
        %1815 = vmatprep.subr.mxu0 %v1560
        %1816 = vmatpush1.msra.mxu0 %v1559
        %1817 = vmatprep.subr.mxu0 %v1562
        %1818 = vmatpush1.msra.mxu0 %v1561
        %1819 = vmatprep.subr.mxu0 %v1564
        %1820 = vmatpush1.msra.mxu0 %v1563
        %1821 = vmatprep.subr.mxu0 %v1566
        %1822 = vmatpush1.msra.mxu0 %v1565
        %1823 = vmatprep.subr.mxu0 %v1568
        %1824 = vmatpush1.msra.mxu0 %v1567
        %1825 = vmatprep.subr.mxu0 %v1570
        %1826 = vmatpush1.msra.mxu0 %v1569
        %1827 = vmatprep.subr.mxu0 %v1572
        %1828 = vmatpush1.msra.mxu0 %v1571
        %1829 = vmatprep.subr.mxu0 %v1574
        %1830 = vmatpush1.msra.mxu0 %v1573
        %1831 = vmatprep.subr.mxu0 %v1576
        %1832 = vmatpush1.msra.mxu0 %v1575
        %1833 = vmatprep.subr.mxu0 %v1578
        %1834 = vmatpush1.msra.mxu0 %v1577
        %1835 = vmatprep.subr.mxu0 %v1580
        %1836 = vmatpush1.msra.mxu0 %v1579
        %1837 = vmatprep.subr.mxu0 %v1582
        %1838 = vmatpush1.msra.mxu0 %v1581
        %1839 = vmatprep.subr.mxu0 %v1584
        %1840 = vmatpush1.msra.mxu0 %v1583
        %1841 = vmatprep.subr.mxu0 %v1586
        %1842 = vmatpush1.msra.mxu0 %v1585
        %1843 = vmatprep.subr.mxu0 %v1588
        %1844 = vmatpush1.msra.mxu0 %v1587
        %1845 = vmatprep.subr.mxu0 %v1590
        %1846 = vmatpush1.msra.mxu0 %v1589
        %1847 = vmatprep.subr.mxu0 %v1592
        %1848 = vmatpush1.msra.mxu0 %v1591
        %1849 = vmatprep.subr.mxu0 %v1594
        %1850 = vmatpush1.msra.mxu0 %v1593
        %1851 = vmatprep.subr.mxu0 %v1596
        %1852 = vmatpush1.msra.mxu0 %v1595
        %1853 = vmatprep.subr.mxu0 %v1598
        %1854 = vmatpush1.msra.mxu0 %v1597
        %1855 = vmatprep.mubr.f32.mxu0 %v1280
        %1856 = vmatmul.mubr.f32.gmra.mrb[0].mxu0 %v1279
        %v1857 = vpop.f32.mrb[0].mxu0
        %v1858 = vadd.f32 0.0, %v1857
        %v1859 = vpop.f32.mrb[0].mxu0
        %v1860 = vadd.f32 0.0, %v1859
        %1861 = vmatprep.mubr.f32.mxu0 %v1288
        %1862 = vmatmul.mubr.f32.gmra.mrb[0].mxu0 %v1287
        %v1863 = vpop.f32.mrb[0].mxu0
        %v1864 = vadd.f32 0.0, %v1863
        %v1865 = vpop.f32.mrb[0].mxu0
        %v1866 = vadd.f32 0.0, %v1865
        %1867 = vmatprep.mubr.f32.mxu0 %v1296
        %1868 = vmatmul.mubr.f32.gmra.mrb[0].mxu0 %v1295
        %v1869 = vpop.f32.mrb[0].mxu0
        %v1870 = vadd.f32 0.0, %v1869
        %v1871 = vpop.f32.mrb[0].mxu0
        %v1872 = vadd.f32 0.0, %v1871
        %1873 = vmatprep.mubr.f32.mxu0 %v1304
        %1874 = vmatmul.mubr.f32.gmra.mrb[0].mxu0 %v1303
        %v1875 = vpop.f32.mrb[0].mxu0
        %v1876 = vadd.f32 0.0, %v1875
        %v1877 = vpop.f32.mrb[0].mxu0
        %v1878 = vadd.f32 0.0, %v1877
        %1879 = vmatprep.mubr.f32.mxu0 %v1312
        %1880 = vmatmul.mubr.f32.gmra.mrb[0].mxu0 %v1311
        %v1881 = vpop.f32.mrb[0].mxu0
        %v1882 = vadd.f32 0.0, %v1881
        %v1883 = vpop.f32.mrb[0].mxu0
        %v1884 = vadd.f32 0.0, %v1883
        %1885 = vmatprep.mubr.f32.mxu0 %v1320
        %1886 = vmatmul.mubr.f32.gmra.mrb[0].mxu0 %v1319
        %v1887 = vpop.f32.mrb[0].mxu0
        %v1888 = vadd.f32 0.0, %v1887
        %v1889 = vpop.f32.mrb[0].mxu0
        %v1890 = vadd.f32 0.0, %v1889
        %1891 = vmatprep.mubr.f32.mxu0 %v1328
        %1892 = vmatmul.mubr.f32.gmra.mrb[0].mxu0 %v1327
        %v1893 = vpop.f32.mrb[0].mxu0
        %v1894 = vadd.f32 0.0, %v1893
        %v1895 = vpop.f32.mrb[0].mxu0
        %v1896 = vadd.f32 0.0, %v1895
        %1897 = vmatprep.mubr.f32.mxu0 %v1336
        %1898 = vmatmul.mubr.f32.gmra.mrb[0].mxu0 %v1335
        %v1899 = vpop.f32.mrb[0].mxu0
        %v1900 = vadd.f32 0.0, %v1899
        %v1901 = vpop.f32.mrb[0].mxu0
        %v1902 = vadd.f32 0.0, %v1901
        %1903 = vmatprep.mubr.f32.mxu0 %v1344
        %1904 = vmatmul.mubr.f32.gmra.mrb[0].mxu0 %v1343
        %v1905 = vpop.f32.mrb[0].mxu0
        %v1906 = vadd.f32 0.0, %v1905
        %v1907 = vpop.f32.mrb[0].mxu0
        %v1908 = vadd.f32 0.0, %v1907
        %1909 = vmatprep.mubr.f32.mxu0 %v1352
        %1910 = vmatmul.mubr.f32.gmra.mrb[0].mxu0 %v1351
        %v1911 = vpop.f32.mrb[0].mxu0
        %v1912 = vadd.f32 0.0, %v1911
        %v1913 = vpop.f32.mrb[0].mxu0
        %v1914 = vadd.f32 0.0, %v1913
        %1915 = vmatprep.mubr.f32.mxu0 %v1360
        %1916 = vmatmul.mubr.f32.gmra.mrb[0].mxu0 %v1359
        %v1917 = vpop.f32.mrb[0].mxu0
        %v1918 = vadd.f32 0.0, %v1917
        %v1919 = vpop.f32.mrb[0].mxu0
        %v1920 = vadd.f32 0.0, %v1919
        %1921 = vmatprep.mubr.f32.mxu0 %v1368
        %1922 = vmatmul.mubr.f32.gmra.mrb[0].mxu0 %v1367
        %v1923 = vpop.f32.mrb[0].mxu0
        %v1924 = vadd.f32 0.0, %v1923
        %v1925 = vpop.f32.mrb[0].mxu0
        %v1926 = vadd.f32 0.0, %v1925
        %1927 = vmatprep.mubr.f32.mxu0 %v1376
        %1928 = vmatmul.mubr.f32.gmra.mrb[0].mxu0 %v1375
        %v1929 = vpop.f32.mrb[0].mxu0
        %v1930 = vadd.f32 0.0, %v1929
        %v1931 = vpop.f32.mrb[0].mxu0
        %v1932 = vadd.f32 0.0, %v1931
        %1933 = vmatprep.mubr.f32.mxu0 %v1384
        %1934 = vmatmul.mubr.f32.gmra.mrb[0].mxu0 %v1383
        %v1935 = vpop.f32.mrb[0].mxu0
        %v1936 = vadd.f32 0.0, %v1935
        %v1937 = vpop.f32.mrb[0].mxu0
        %v1938 = vadd.f32 0.0, %v1937
        %1939 = vmatprep.mubr.f32.mxu0 %v1392
        %1940 = vmatmul.mubr.f32.gmra.mrb[0].mxu0 %v1391
        %v1941 = vpop.f32.mrb[0].mxu0
        %v1942 = vadd.f32 0.0, %v1941
        %v1943 = vpop.f32.mrb[0].mxu0
        %v1944 = vadd.f32 0.0, %v1943
        %1945 = vmatprep.mubr.f32.mxu0 %v1400
        %1946 = vmatmul.mubr.f32.gmra.mrb[0].mxu0 %v1399
        %v1947 = vpop.f32.mrb[0].mxu0
        %v1948 = vadd.f32 0.0, %v1947
        %v1949 = vpop.f32.mrb[0].mxu0
        %v1950 = vadd.f32 0.0, %v1949
        %1951 = vmatprep.mubr.f32.mxu0 %v1408
        %1952 = vmatmul.mubr.f32.gmra.mrb[0].mxu0 %v1407
        %v1953 = vpop.f32.mrb[0].mxu0
        %v1954 = vadd.f32 0.0, %v1953
        %v1955 = vpop.f32.mrb[0].mxu0
        %v1956 = vadd.f32 0.0, %v1955
        %1957 = vmatprep.mubr.f32.mxu0 %v1416
        %1958 = vmatmul.mubr.f32.gmra.mrb[0].mxu0 %v1415
        %v1959 = vpop.f32.mrb[0].mxu0
        %v1960 = vadd.f32 0.0, %v1959
        %v1961 = vpop.f32.mrb[0].mxu0
        %v1962 = vadd.f32 0.0, %v1961
        %1963 = vmatprep.mubr.f32.mxu0 %v1424
        %1964 = vmatmul.mubr.f32.gmra.mrb[0].mxu0 %v1423
        %v1965 = vpop.f32.mrb[0].mxu0
        %v1966 = vadd.f32 0.0, %v1965
        %v1967 = vpop.f32.mrb[0].mxu0
        %v1968 = vadd.f32 0.0, %v1967
        %1969 = vmatprep.mubr.f32.mxu0 %v1432
        %1970 = vmatmul.mubr.f32.gmra.mrb[0].mxu0 %v1431
        %v1971 = vpop.f32.mrb[0].mxu0
        %v1972 = vadd.f32 0.0, %v1971
        %v1973 = vpop.f32.mrb[0].mxu0
        %v1974 = vadd.f32 0.0, %v1973
        %1975 = vmatprep.mubr.f32.mxu0 %v1440
        %1976 = vmatmul.mubr.f32.gmra.mrb[0].mxu0 %v1439
        %v1977 = vpop.f32.mrb[0].mxu0
        %v1978 = vadd.f32 0.0, %v1977
        %v1979 = vpop.f32.mrb[0].mxu0
        %v1980 = vadd.f32 0.0, %v1979
        %1981 = vmatprep.mubr.f32.mxu0 %v1448
        %1982 = vmatmul.mubr.f32.gmra.mrb[0].mxu0 %v1447
        %v1983 = vpop.f32.mrb[0].mxu0
        %v1984 = vadd.f32 0.0, %v1983
        %v1985 = vpop.f32.mrb[0].mxu0
        %v1986 = vadd.f32 0.0, %v1985
        %1987 = vmatprep.mubr.f32.mxu0 %v1456
        %1988 = vmatmul.mubr.f32.gmra.mrb[0].mxu0 %v1455
        %v1989 = vpop.f32.mrb[0].mxu0
        %v1990 = vadd.f32 0.0, %v1989
        %v1991 = vpop.f32.mrb[0].mxu0
        %v1992 = vadd.f32 0.0, %v1991
        %1993 = vmatprep.mubr.f32.mxu0 %v1464
        %1994 = vmatmul.mubr.f32.gmra.mrb[0].mxu0 %v1463
        %v1995 = vpop.f32.mrb[0].mxu0
        %v1996 = vadd.f32 0.0, %v1995
        %v1997 = vpop.f32.mrb[0].mxu0
        %v1998 = vadd.f32 0.0, %v1997
        %1999 = vmatprep.mubr.f32.mxu0 %v1472
        %2000 = vmatmul.mubr.f32.gmra.mrb[0].mxu0 %v1471
        %v2001 = vpop.f32.mrb[0].mxu0
        %v2002 = vadd.f32 0.0, %v2001
        %v2003 = vpop.f32.mrb[0].mxu0
        %v2004 = vadd.f32 0.0, %v2003
        %2005 = vmatprep.mubr.f32.mxu0 %v1480
        %2006 = vmatmul.mubr.f32.gmra.mrb[0].mxu0 %v1479
        %v2007 = vpop.f32.mrb[0].mxu0
        %v2008 = vadd.f32 0.0, %v2007
        %v2009 = vpop.f32.mrb[0].mxu0
        %v2010 = vadd.f32 0.0, %v2009
        %2011 = vmatprep.mubr.f32.mxu0 %v1488
        %2012 = vmatmul.mubr.f32.gmra.mrb[0].mxu0 %v1487
        %v2013 = vpop.f32.mrb[0].mxu0
        %v2014 = vadd.f32 0.0, %v2013
        %v2015 = vpop.f32.mrb[0].mxu0
        %v2016 = vadd.f32 0.0, %v2015
        %2017 = vmatprep.mubr.f32.mxu0 %v1496
        %2018 = vmatmul.mubr.f32.gmra.mrb[0].mxu0 %v1495
        %v2019 = vpop.f32.mrb[0].mxu0
        %v2020 = vadd.f32 0.0, %v2019
        %v2021 = vpop.f32.mrb[0].mxu0
        %v2022 = vadd.f32 0.0, %v2021
        %2023 = vmatprep.mubr.f32.mxu0 %v1504
        %2024 = vmatmul.mubr.f32.gmra.mrb[0].mxu0 %v1503
        %v2025 = vpop.f32.mrb[0].mxu0
        %v2026 = vadd.f32 0.0, %v2025
        %v2027 = vpop.f32.mrb[0].mxu0
        %v2028 = vadd.f32 0.0, %v2027
        %2029 = vmatprep.mubr.f32.mxu0 %v1512
        %2030 = vmatmul.mubr.f32.gmra.mrb[0].mxu0 %v1511
        %v2031 = vpop.f32.mrb[0].mxu0
        %v2032 = vadd.f32 0.0, %v2031
        %v2033 = vpop.f32.mrb[0].mxu0
        %v2034 = vadd.f32 0.0, %v2033
        %2035 = vmatprep.mubr.f32.mxu0 %v1520
        %2036 = vmatmul.mubr.f32.gmra.mrb[0].mxu0 %v1519
        %v2037 = vpop.f32.mrb[0].mxu0
        %v2038 = vadd.f32 0.0, %v2037
        %v2039 = vpop.f32.mrb[0].mxu0
        %v2040 = vadd.f32 0.0, %v2039
        %2041 = vmatprep.mubr.f32.mxu0 %v1528
        %2042 = vmatmul.mubr.f32.gmra.mrb[0].mxu0 %v1527
        %v2043 = vpop.f32.mrb[0].mxu0
        %v2044 = vadd.f32 0.0, %v2043
        %v2045 = vpop.f32.mrb[0].mxu0
        %v2046 = vadd.f32 0.0, %v2045
        %2047 = vdwg.mxu0
        %2048 = vmatprep.subr.mxu0 %v1600
        %2049 = vmatpush1.msra.mxu0 %v1599
        %2050 = vmatprep.subr.mxu0 %v1602
        %2051 = vmatpush1.msra.mxu0 %v1601
        %2052 = vmatprep.subr.mxu0 %v1604
        %2053 = vmatpush1.msra.mxu0 %v1603
        %2054 = vmatprep.subr.mxu0 %v1606
        %2055 = vmatpush1.msra.mxu0 %v1605
        %2056 = vmatprep.subr.mxu0 %v1608
        %2057 = vmatpush1.msra.mxu0 %v1607
        %2058 = vmatprep.subr.mxu0 %v1610
        %2059 = vmatpush1.msra.mxu0 %v1609
        %2060 = vmatprep.subr.mxu0 %v1612
        %2061 = vmatpush1.msra.mxu0 %v1611
        %2062 = vmatprep.subr.mxu0 %v1614
        %2063 = vmatpush1.msra.mxu0 %v1613
        %2064 = vmatprep.subr.mxu0 %v1616
        %2065 = vmatpush1.msra.mxu0 %v1615
        %2066 = vmatprep.subr.mxu0 %v1618
        %2067 = vmatpush1.msra.mxu0 %v1617
        %2068 = vmatprep.subr.mxu0 %v1620
        %2069 = vmatpush1.msra.mxu0 %v1619
        %2070 = vmatprep.subr.mxu0 %v1622
        %2071 = vmatpush1.msra.mxu0 %v1621
        %2072 = vmatprep.subr.mxu0 %v1624
        %2073 = vmatpush1.msra.mxu0 %v1623
        %2074 = vmatprep.subr.mxu0 %v1626
        %2075 = vmatpush1.msra.mxu0 %v1625
        %2076 = vmatprep.subr.mxu0 %v1628
        %2077 = vmatpush1.msra.mxu0 %v1627
        %2078 = vmatprep.subr.mxu0 %v1630
        %2079 = vmatpush1.msra.mxu0 %v1629
        %2080 = vmatprep.subr.mxu0 %v1632
        %2081 = vmatpush1.msra.mxu0 %v1631
        %2082 = vmatprep.subr.mxu0 %v1634
        %2083 = vmatpush1.msra.mxu0 %v1633
        %2084 = vmatprep.subr.mxu0 %v1636
        %2085 = vmatpush1.msra.mxu0 %v1635
        %2086 = vmatprep.subr.mxu0 %v1638
        %2087 = vmatpush1.msra.mxu0 %v1637
        %2088 = vmatprep.subr.mxu0 %v1640
        %2089 = vmatpush1.msra.mxu0 %v1639
        %2090 = vmatprep.subr.mxu0 %v1642
        %2091 = vmatpush1.msra.mxu0 %v1641
        %2092 = vmatprep.subr.mxu0 %v1644
        %2093 = vmatpush1.msra.mxu0 %v1643
        %2094 = vmatprep.subr.mxu0 %v1646
        %2095 = vmatpush1.msra.mxu0 %v1645
        %2096 = vmatprep.subr.mxu0 %v1648
        %2097 = vmatpush1.msra.mxu0 %v1647
        %2098 = vmatprep.subr.mxu0 %v1650
        %2099 = vmatpush1.msra.mxu0 %v1649
        %2100 = vmatprep.subr.mxu0 %v1652
        %2101 = vmatpush1.msra.mxu0 %v1651
        %2102 = vmatprep.subr.mxu0 %v1654
        %2103 = vmatpush1.msra.mxu0 %v1653
        %2104 = vmatprep.subr.mxu0 %v1656
        %2105 = vmatpush1.msra.mxu0 %v1655
        %2106 = vmatprep.subr.mxu0 %v1658
        %2107 = vmatpush1.msra.mxu0 %v1657
        %2108 = vmatprep.subr.mxu0 %v1660
        %2109 = vmatpush1.msra.mxu0 %v1659
        %2110 = vmatprep.subr.mxu0 %v1662
        %2111 = vmatpush1.msra.mxu0 %v1661
        %2112 = vmatprep.mubr.f32.mxu0 %v1282
        %2113 = vmatmul.mubr.f32.gmra.mrb[0].mxu0 %v1281
        %v2114 = vpop.f32.mrb[0].mxu0
        %v2115 = vadd.f32 %v1858, %v2114
        %v2116 = vpop.f32.mrb[0].mxu0
        %v2117 = vadd.f32 %v1860, %v2116
        %2118 = vmatprep.mubr.f32.mxu0 %v1290
        %2119 = vmatmul.mubr.f32.gmra.mrb[0].mxu0 %v1289
        %v2120 = vpop.f32.mrb[0].mxu0
        %v2121 = vadd.f32 %v1864, %v2120
        %v2122 = vpop.f32.mrb[0].mxu0
        %v2123 = vadd.f32 %v1866, %v2122
        %2124 = vmatprep.mubr.f32.mxu0 %v1298
        %2125 = vmatmul.mubr.f32.gmra.mrb[0].mxu0 %v1297
        %v2126 = vpop.f32.mrb[0].mxu0
        %v2127 = vadd.f32 %v1870, %v2126
        %v2128 = vpop.f32.mrb[0].mxu0
        %v2129 = vadd.f32 %v1872, %v2128
        %2130 = vmatprep.mubr.f32.mxu0 %v1306
        %2131 = vmatmul.mubr.f32.gmra.mrb[0].mxu0 %v1305
        %v2132 = vpop.f32.mrb[0].mxu0
        %v2133 = vadd.f32 %v1876, %v2132
        %v2134 = vpop.f32.mrb[0].mxu0
        %v2135 = vadd.f32 %v1878, %v2134
        %2136 = vmatprep.mubr.f32.mxu0 %v1314
        %2137 = vmatmul.mubr.f32.gmra.mrb[0].mxu0 %v1313
        %v2138 = vpop.f32.mrb[0].mxu0
        %v2139 = vadd.f32 %v1882, %v2138
        %v2140 = vpop.f32.mrb[0].mxu0
        %v2141 = vadd.f32 %v1884, %v2140
        %2142 = vmatprep.mubr.f32.mxu0 %v1322
        %2143 = vmatmul.mubr.f32.gmra.mrb[0].mxu0 %v1321
        %v2144 = vpop.f32.mrb[0].mxu0
        %v2145 = vadd.f32 %v1888, %v2144
        %v2146 = vpop.f32.mrb[0].mxu0
        %v2147 = vadd.f32 %v1890, %v2146
        %2148 = vmatprep.mubr.f32.mxu0 %v1330
        %2149 = vmatmul.mubr.f32.gmra.mrb[0].mxu0 %v1329
        %v2150 = vpop.f32.mrb[0].mxu0
        %v2151 = vadd.f32 %v1894, %v2150
        %v2152 = vpop.f32.mrb[0].mxu0
        %v2153 = vadd.f32 %v1896, %v2152
        %2154 = vmatprep.mubr.f32.mxu0 %v1338
        %2155 = vmatmul.mubr.f32.gmra.mrb[0].mxu0 %v1337
        %v2156 = vpop.f32.mrb[0].mxu0
        %v2157 = vadd.f32 %v1900, %v2156
        %v2158 = vpop.f32.mrb[0].mxu0
        %v2159 = vadd.f32 %v1902, %v2158
        %2160 = vmatprep.mubr.f32.mxu0 %v1346
        %2161 = vmatmul.mubr.f32.gmra.mrb[0].mxu0 %v1345
        %v2162 = vpop.f32.mrb[0].mxu0
        %v2163 = vadd.f32 %v1906, %v2162
        %v2164 = vpop.f32.mrb[0].mxu0
        %v2165 = vadd.f32 %v1908, %v2164
        %2166 = vmatprep.mubr.f32.mxu0 %v1354
        %2167 = vmatmul.mubr.f32.gmra.mrb[0].mxu0 %v1353
        %v2168 = vpop.f32.mrb[0].mxu0
        %v2169 = vadd.f32 %v1912, %v2168
        %v2170 = vpop.f32.mrb[0].mxu0
        %v2171 = vadd.f32 %v1914, %v2170
        %2172 = vmatprep.mubr.f32.mxu0 %v1362
        %2173 = vmatmul.mubr.f32.gmra.mrb[0].mxu0 %v1361
        %v2174 = vpop.f32.mrb[0].mxu0
        %v2175 = vadd.f32 %v1918, %v2174
        %v2176 = vpop.f32.mrb[0].mxu0
        %v2177 = vadd.f32 %v1920, %v2176
        %2178 = vmatprep.mubr.f32.mxu0 %v1370
        %2179 = vmatmul.mubr.f32.gmra.mrb[0].mxu0 %v1369
        %v2180 = vpop.f32.mrb[0].mxu0
        %v2181 = vadd.f32 %v1924, %v2180
        %v2182 = vpop.f32.mrb[0].mxu0
        %v2183 = vadd.f32 %v1926, %v2182
        %2184 = vmatprep.mubr.f32.mxu0 %v1378
        %2185 = vmatmul.mubr.f32.gmra.mrb[0].mxu0 %v1377
        %v2186 = vpop.f32.mrb[0].mxu0
        %v2187 = vadd.f32 %v1930, %v2186
        %v2188 = vpop.f32.mrb[0].mxu0
        %v2189 = vadd.f32 %v1932, %v2188
        %2190 = vmatprep.mubr.f32.mxu0 %v1386
        %2191 = vmatmul.mubr.f32.gmra.mrb[0].mxu0 %v1385
        %v2192 = vpop.f32.mrb[0].mxu0
        %v2193 = vadd.f32 %v1936, %v2192
        %v2194 = vpop.f32.mrb[0].mxu0
        %v2195 = vadd.f32 %v1938, %v2194
        %2196 = vmatprep.mubr.f32.mxu0 %v1394
        %2197 = vmatmul.mubr.f32.gmra.mrb[0].mxu0 %v1393
        %v2198 = vpop.f32.mrb[0].mxu0
        %v2199 = vadd.f32 %v1942, %v2198
        %v2200 = vpop.f32.mrb[0].mxu0
        %v2201 = vadd.f32 %v1944, %v2200
        %2202 = vmatprep.mubr.f32.mxu0 %v1402
        %2203 = vmatmul.mubr.f32.gmra.mrb[0].mxu0 %v1401
        %v2204 = vpop.f32.mrb[0].mxu0
        %v2205 = vadd.f32 %v1948, %v2204
        %v2206 = vpop.f32.mrb[0].mxu0
        %v2207 = vadd.f32 %v1950, %v2206
        %2208 = vmatprep.mubr.f32.mxu0 %v1410
        %2209 = vmatmul.mubr.f32.gmra.mrb[0].mxu0 %v1409
        %v2210 = vpop.f32.mrb[0].mxu0
        %v2211 = vadd.f32 %v1954, %v2210
        %v2212 = vpop.f32.mrb[0].mxu0
        %v2213 = vadd.f32 %v1956, %v2212
        %2214 = vmatprep.mubr.f32.mxu0 %v1418
        %2215 = vmatmul.mubr.f32.gmra.mrb[0].mxu0 %v1417
        %v2216 = vpop.f32.mrb[0].mxu0
        %v2217 = vadd.f32 %v1960, %v2216
        %v2218 = vpop.f32.mrb[0].mxu0
        %v2219 = vadd.f32 %v1962, %v2218
        %2220 = vmatprep.mubr.f32.mxu0 %v1426
        %2221 = vmatmul.mubr.f32.gmra.mrb[0].mxu0 %v1425
        %v2222 = vpop.f32.mrb[0].mxu0
        %v2223 = vadd.f32 %v1966, %v2222
        %v2224 = vpop.f32.mrb[0].mxu0
        %v2225 = vadd.f32 %v1968, %v2224
        %2226 = vmatprep.mubr.f32.mxu0 %v1434
        %2227 = vmatmul.mubr.f32.gmra.mrb[0].mxu0 %v1433
        %v2228 = vpop.f32.mrb[0].mxu0
        %v2229 = vadd.f32 %v1972, %v2228
        %v2230 = vpop.f32.mrb[0].mxu0
        %v2231 = vadd.f32 %v1974, %v2230
        %2232 = vmatprep.mubr.f32.mxu0 %v1442
        %2233 = vmatmul.mubr.f32.gmra.mrb[0].mxu0 %v1441
        %v2234 = vpop.f32.mrb[0].mxu0
        %v2235 = vadd.f32 %v1978, %v2234
        %v2236 = vpop.f32.mrb[0].mxu0
        %v2237 = vadd.f32 %v1980, %v2236
        %2238 = vmatprep.mubr.f32.mxu0 %v1450
        %2239 = vmatmul.mubr.f32.gmra.mrb[0].mxu0 %v1449
        %v2240 = vpop.f32.mrb[0].mxu0
        %v2241 = vadd.f32 %v1984, %v2240
        %v2242 = vpop.f32.mrb[0].mxu0
        %v2243 = vadd.f32 %v1986, %v2242
        %2244 = vmatprep.mubr.f32.mxu0 %v1458
        %2245 = vmatmul.mubr.f32.gmra.mrb[0].mxu0 %v1457
        %v2246 = vpop.f32.mrb[0].mxu0
        %v2247 = vadd.f32 %v1990, %v2246
        %v2248 = vpop.f32.mrb[0].mxu0
        %v2249 = vadd.f32 %v1992, %v2248
        %2250 = vmatprep.mubr.f32.mxu0 %v1466
        %2251 = vmatmul.mubr.f32.gmra.mrb[0].mxu0 %v1465
        %v2252 = vpop.f32.mrb[0].mxu0
        %v2253 = vadd.f32 %v1996, %v2252
        %v2254 = vpop.f32.mrb[0].mxu0
        %v2255 = vadd.f32 %v1998, %v2254
        %2256 = vmatprep.mubr.f32.mxu0 %v1474
        %2257 = vmatmul.mubr.f32.gmra.mrb[0].mxu0 %v1473
        %v2258 = vpop.f32.mrb[0].mxu0
        %v2259 = vadd.f32 %v2002, %v2258
        %v2260 = vpop.f32.mrb[0].mxu0
        %v2261 = vadd.f32 %v2004, %v2260
        %2262 = vmatprep.mubr.f32.mxu0 %v1482
        %2263 = vmatmul.mubr.f32.gmra.mrb[0].mxu0 %v1481
        %v2264 = vpop.f32.mrb[0].mxu0
        %v2265 = vadd.f32 %v2008, %v2264
        %v2266 = vpop.f32.mrb[0].mxu0
        %v2267 = vadd.f32 %v2010, %v2266
        %2268 = vmatprep.mubr.f32.mxu0 %v1490
        %2269 = vmatmul.mubr.f32.gmra.mrb[0].mxu0 %v1489
        %v2270 = vpop.f32.mrb[0].mxu0
        %v2271 = vadd.f32 %v2014, %v2270
        %v2272 = vpop.f32.mrb[0].mxu0
        %v2273 = vadd.f32 %v2016, %v2272
        %2274 = vmatprep.mubr.f32.mxu0 %v1498
        %2275 = vmatmul.mubr.f32.gmra.mrb[0].mxu0 %v1497
        %v2276 = vpop.f32.mrb[0].mxu0
        %v2277 = vadd.f32 %v2020, %v2276
        %v2278 = vpop.f32.mrb[0].mxu0
        %v2279 = vadd.f32 %v2022, %v2278
        %2280 = vmatprep.mubr.f32.mxu0 %v1506
        %2281 = vmatmul.mubr.f32.gmra.mrb[0].mxu0 %v1505
        %v2282 = vpop.f32.mrb[0].mxu0
        %v2283 = vadd.f32 %v2026, %v2282
        %v2284 = vpop.f32.mrb[0].mxu0
        %v2285 = vadd.f32 %v2028, %v2284
        %2286 = vmatprep.mubr.f32.mxu0 %v1514
        %2287 = vmatmul.mubr.f32.gmra.mrb[0].mxu0 %v1513
        %v2288 = vpop.f32.mrb[0].mxu0
        %v2289 = vadd.f32 %v2032, %v2288
        %v2290 = vpop.f32.mrb[0].mxu0
        %v2291 = vadd.f32 %v2034, %v2290
        %2292 = vmatprep.mubr.f32.mxu0 %v1522
        %2293 = vmatmul.mubr.f32.gmra.mrb[0].mxu0 %v1521
        %v2294 = vpop.f32.mrb[0].mxu0
        %v2295 = vadd.f32 %v2038, %v2294
        %v2296 = vpop.f32.mrb[0].mxu0
        %v2297 = vadd.f32 %v2040, %v2296
        %2298 = vmatprep.mubr.f32.mxu0 %v1530
        %2299 = vmatmul.mubr.f32.gmra.mrb[0].mxu0 %v1529
        %v2300 = vpop.f32.mrb[0].mxu0
        %v2301 = vadd.f32 %v2044, %v2300
        %v2302 = vpop.f32.mrb[0].mxu0
        %v2303 = vadd.f32 %v2046, %v2302
        %2304 = vdwg.mxu0
        %2305 = vmatprep.subr.mxu0 %v1664
        %2306 = vmatpush1.msra.mxu0 %v1663
        %2307 = vmatprep.subr.mxu0 %v1666
        %2308 = vmatpush1.msra.mxu0 %v1665
        %2309 = vmatprep.subr.mxu0 %v1668
        %2310 = vmatpush1.msra.mxu0 %v1667
        %2311 = vmatprep.subr.mxu0 %v1670
        %2312 = vmatpush1.msra.mxu0 %v1669
        %2313 = vmatprep.subr.mxu0 %v1672
        %2314 = vmatpush1.msra.mxu0 %v1671
        %2315 = vmatprep.subr.mxu0 %v1674
        %2316 = vmatpush1.msra.mxu0 %v1673
        %2317 = vmatprep.subr.mxu0 %v1676
        %2318 = vmatpush1.msra.mxu0 %v1675
        %2319 = vmatprep.subr.mxu0 %v1678
        %2320 = vmatpush1.msra.mxu0 %v1677
        %2321 = vmatprep.subr.mxu0 %v1680
        %2322 = vmatpush1.msra.mxu0 %v1679
        %2323 = vmatprep.subr.mxu0 %v1682
        %2324 = vmatpush1.msra.mxu0 %v1681
        %2325 = vmatprep.subr.mxu0 %v1684
        %2326 = vmatpush1.msra.mxu0 %v1683
        %2327 = vmatprep.subr.mxu0 %v1686
        %2328 = vmatpush1.msra.mxu0 %v1685
        %2329 = vmatprep.subr.mxu0 %v1688
        %2330 = vmatpush1.msra.mxu0 %v1687
        %2331 = vmatprep.subr.mxu0 %v1690
        %2332 = vmatpush1.msra.mxu0 %v1689
        %2333 = vmatprep.subr.mxu0 %v1692
        %2334 = vmatpush1.msra.mxu0 %v1691
        %2335 = vmatprep.subr.mxu0 %v1694
        %2336 = vmatpush1.msra.mxu0 %v1693
        %2337 = vmatprep.subr.mxu0 %v1696
        %2338 = vmatpush1.msra.mxu0 %v1695
        %2339 = vmatprep.subr.mxu0 %v1698
        %2340 = vmatpush1.msra.mxu0 %v1697
        %2341 = vmatprep.subr.mxu0 %v1700
        %2342 = vmatpush1.msra.mxu0 %v1699
        %2343 = vmatprep.subr.mxu0 %v1702
        %2344 = vmatpush1.msra.mxu0 %v1701
        %2345 = vmatprep.subr.mxu0 %v1704
        %2346 = vmatpush1.msra.mxu0 %v1703
        %2347 = vmatprep.subr.mxu0 %v1706
        %2348 = vmatpush1.msra.mxu0 %v1705
        %2349 = vmatprep.subr.mxu0 %v1708
        %2350 = vmatpush1.msra.mxu0 %v1707
        %2351 = vmatprep.subr.mxu0 %v1710
        %2352 = vmatpush1.msra.mxu0 %v1709
        %2353 = vmatprep.subr.mxu0 %v1712
        %2354 = vmatpush1.msra.mxu0 %v1711
        %2355 = vmatprep.subr.mxu0 %v1714
        %2356 = vmatpush1.msra.mxu0 %v1713
        %2357 = vmatprep.subr.mxu0 %v1716
        %2358 = vmatpush1.msra.mxu0 %v1715
        %2359 = vmatprep.subr.mxu0 %v1718
        %2360 = vmatpush1.msra.mxu0 %v1717
        %2361 = vmatprep.subr.mxu0 %v1720
        %2362 = vmatpush1.msra.mxu0 %v1719
        %2363 = vmatprep.subr.mxu0 %v1722
        %2364 = vmatpush1.msra.mxu0 %v1721
        %2365 = vmatprep.subr.mxu0 %v1724
        %2366 = vmatpush1.msra.mxu0 %v1723
        %2367 = vmatprep.subr.mxu0 %v1726
        %2368 = vmatpush1.msra.mxu0 %v1725
        %2369 = vmatprep.mubr.f32.mxu0 %v1284
        %2370 = vmatmul.mubr.f32.gmra.mrb[0].mxu0 %v1283
        %v2371 = vpop.f32.mrb[0].mxu0
        %v2372 = vadd.f32 %v2115, %v2371
        %v2373 = vpop.f32.mrb[0].mxu0
        %v2374 = vadd.f32 %v2117, %v2373
        %2375 = vmatprep.mubr.f32.mxu0 %v1292
        %2376 = vmatmul.mubr.f32.gmra.mrb[0].mxu0 %v1291
        %v2377 = vpop.f32.mrb[0].mxu0
        %v2378 = vadd.f32 %v2121, %v2377
        %v2379 = vpop.f32.mrb[0].mxu0
        %v2380 = vadd.f32 %v2123, %v2379
        %2381 = vmatprep.mubr.f32.mxu0 %v1300
        %2382 = vmatmul.mubr.f32.gmra.mrb[0].mxu0 %v1299
        %v2383 = vpop.f32.mrb[0].mxu0
        %v2384 = vadd.f32 %v2127, %v2383
        %v2385 = vpop.f32.mrb[0].mxu0
        %v2386 = vadd.f32 %v2129, %v2385
        %2387 = vmatprep.mubr.f32.mxu0 %v1308
        %2388 = vmatmul.mubr.f32.gmra.mrb[0].mxu0 %v1307
        %v2389 = vpop.f32.mrb[0].mxu0
        %v2390 = vadd.f32 %v2133, %v2389
        %v2391 = vpop.f32.mrb[0].mxu0
        %v2392 = vadd.f32 %v2135, %v2391
        %2393 = vmatprep.mubr.f32.mxu0 %v1316
        %2394 = vmatmul.mubr.f32.gmra.mrb[0].mxu0 %v1315
        %v2395 = vpop.f32.mrb[0].mxu0
        %v2396 = vadd.f32 %v2139, %v2395
        %v2397 = vpop.f32.mrb[0].mxu0
        %v2398 = vadd.f32 %v2141, %v2397
        %2399 = vmatprep.mubr.f32.mxu0 %v1324
        %2400 = vmatmul.mubr.f32.gmra.mrb[0].mxu0 %v1323
        %v2401 = vpop.f32.mrb[0].mxu0
        %v2402 = vadd.f32 %v2145, %v2401
        %v2403 = vpop.f32.mrb[0].mxu0
        %v2404 = vadd.f32 %v2147, %v2403
        %2405 = vmatprep.mubr.f32.mxu0 %v1332
        %2406 = vmatmul.mubr.f32.gmra.mrb[0].mxu0 %v1331
        %v2407 = vpop.f32.mrb[0].mxu0
        %v2408 = vadd.f32 %v2151, %v2407
        %v2409 = vpop.f32.mrb[0].mxu0
        %v2410 = vadd.f32 %v2153, %v2409
        %2411 = vmatprep.mubr.f32.mxu0 %v1340
        %2412 = vmatmul.mubr.f32.gmra.mrb[0].mxu0 %v1339
        %v2413 = vpop.f32.mrb[0].mxu0
        %v2414 = vadd.f32 %v2157, %v2413
        %v2415 = vpop.f32.mrb[0].mxu0
        %v2416 = vadd.f32 %v2159, %v2415
        %2417 = vmatprep.mubr.f32.mxu0 %v1348
        %2418 = vmatmul.mubr.f32.gmra.mrb[0].mxu0 %v1347
        %v2419 = vpop.f32.mrb[0].mxu0
        %v2420 = vadd.f32 %v2163, %v2419
        %v2421 = vpop.f32.mrb[0].mxu0
        %v2422 = vadd.f32 %v2165, %v2421
        %2423 = vmatprep.mubr.f32.mxu0 %v1356
        %2424 = vmatmul.mubr.f32.gmra.mrb[0].mxu0 %v1355
        %v2425 = vpop.f32.mrb[0].mxu0
        %v2426 = vadd.f32 %v2169, %v2425
        %v2427 = vpop.f32.mrb[0].mxu0
        %v2428 = vadd.f32 %v2171, %v2427
        %2429 = vmatprep.mubr.f32.mxu0 %v1364
        %2430 = vmatmul.mubr.f32.gmra.mrb[0].mxu0 %v1363
        %v2431 = vpop.f32.mrb[0].mxu0
        %v2432 = vadd.f32 %v2175, %v2431
        %v2433 = vpop.f32.mrb[0].mxu0
        %v2434 = vadd.f32 %v2177, %v2433
        %2435 = vmatprep.mubr.f32.mxu0 %v1372
        %2436 = vmatmul.mubr.f32.gmra.mrb[0].mxu0 %v1371
        %v2437 = vpop.f32.mrb[0].mxu0
        %v2438 = vadd.f32 %v2181, %v2437
        %v2439 = vpop.f32.mrb[0].mxu0
        %v2440 = vadd.f32 %v2183, %v2439
        %2441 = vmatprep.mubr.f32.mxu0 %v1380
        %2442 = vmatmul.mubr.f32.gmra.mrb[0].mxu0 %v1379
        %v2443 = vpop.f32.mrb[0].mxu0
        %v2444 = vadd.f32 %v2187, %v2443
        %v2445 = vpop.f32.mrb[0].mxu0
        %v2446 = vadd.f32 %v2189, %v2445
        %2447 = vmatprep.mubr.f32.mxu0 %v1388
        %2448 = vmatmul.mubr.f32.gmra.mrb[0].mxu0 %v1387
        %v2449 = vpop.f32.mrb[0].mxu0
        %v2450 = vadd.f32 %v2193, %v2449
        %v2451 = vpop.f32.mrb[0].mxu0
        %v2452 = vadd.f32 %v2195, %v2451
        %2453 = vmatprep.mubr.f32.mxu0 %v1396
        %2454 = vmatmul.mubr.f32.gmra.mrb[0].mxu0 %v1395
        %v2455 = vpop.f32.mrb[0].mxu0
        %v2456 = vadd.f32 %v2199, %v2455
        %v2457 = vpop.f32.mrb[0].mxu0
        %v2458 = vadd.f32 %v2201, %v2457
        %2459 = vmatprep.mubr.f32.mxu0 %v1404
        %2460 = vmatmul.mubr.f32.gmra.mrb[0].mxu0 %v1403
        %v2461 = vpop.f32.mrb[0].mxu0
        %v2462 = vadd.f32 %v2205, %v2461
        %v2463 = vpop.f32.mrb[0].mxu0
        %v2464 = vadd.f32 %v2207, %v2463
        %2465 = vmatprep.mubr.f32.mxu0 %v1412
        %2466 = vmatmul.mubr.f32.gmra.mrb[0].mxu0 %v1411
        %v2467 = vpop.f32.mrb[0].mxu0
        %v2468 = vadd.f32 %v2211, %v2467
        %v2469 = vpop.f32.mrb[0].mxu0
        %v2470 = vadd.f32 %v2213, %v2469
        %2471 = vmatprep.mubr.f32.mxu0 %v1420
        %2472 = vmatmul.mubr.f32.gmra.mrb[0].mxu0 %v1419
        %v2473 = vpop.f32.mrb[0].mxu0
        %v2474 = vadd.f32 %v2217, %v2473
        %v2475 = vpop.f32.mrb[0].mxu0
        %v2476 = vadd.f32 %v2219, %v2475
        %2477 = vmatprep.mubr.f32.mxu0 %v1428
        %2478 = vmatmul.mubr.f32.gmra.mrb[0].mxu0 %v1427
        %v2479 = vpop.f32.mrb[0].mxu0
        %v2480 = vadd.f32 %v2223, %v2479
        %v2481 = vpop.f32.mrb[0].mxu0
        %v2482 = vadd.f32 %v2225, %v2481
        %2483 = vmatprep.mubr.f32.mxu0 %v1436
        %2484 = vmatmul.mubr.f32.gmra.mrb[0].mxu0 %v1435
        %v2485 = vpop.f32.mrb[0].mxu0
        %v2486 = vadd.f32 %v2229, %v2485
        %v2487 = vpop.f32.mrb[0].mxu0
        %v2488 = vadd.f32 %v2231, %v2487
        %2489 = vmatprep.mubr.f32.mxu0 %v1444
        %2490 = vmatmul.mubr.f32.gmra.mrb[0].mxu0 %v1443
        %v2491 = vpop.f32.mrb[0].mxu0
        %v2492 = vadd.f32 %v2235, %v2491
        %v2493 = vpop.f32.mrb[0].mxu0
        %v2494 = vadd.f32 %v2237, %v2493
        %2495 = vmatprep.mubr.f32.mxu0 %v1452
        %2496 = vmatmul.mubr.f32.gmra.mrb[0].mxu0 %v1451
        %v2497 = vpop.f32.mrb[0].mxu0
        %v2498 = vadd.f32 %v2241, %v2497
        %v2499 = vpop.f32.mrb[0].mxu0
        %v2500 = vadd.f32 %v2243, %v2499
        %2501 = vmatprep.mubr.f32.mxu0 %v1460
        %2502 = vmatmul.mubr.f32.gmra.mrb[0].mxu0 %v1459
        %v2503 = vpop.f32.mrb[0].mxu0
        %v2504 = vadd.f32 %v2247, %v2503
        %v2505 = vpop.f32.mrb[0].mxu0
        %v2506 = vadd.f32 %v2249, %v2505
        %2507 = vmatprep.mubr.f32.mxu0 %v1468
        %2508 = vmatmul.mubr.f32.gmra.mrb[0].mxu0 %v1467
        %v2509 = vpop.f32.mrb[0].mxu0
        %v2510 = vadd.f32 %v2253, %v2509
        %v2511 = vpop.f32.mrb[0].mxu0
        %v2512 = vadd.f32 %v2255, %v2511
        %2513 = vmatprep.mubr.f32.mxu0 %v1476
        %2514 = vmatmul.mubr.f32.gmra.mrb[0].mxu0 %v1475
        %v2515 = vpop.f32.mrb[0].mxu0
        %v2516 = vadd.f32 %v2259, %v2515
        %v2517 = vpop.f32.mrb[0].mxu0
        %v2518 = vadd.f32 %v2261, %v2517
        %2519 = vmatprep.mubr.f32.mxu0 %v1484
        %2520 = vmatmul.mubr.f32.gmra.mrb[0].mxu0 %v1483
        %v2521 = vpop.f32.mrb[0].mxu0
        %v2522 = vadd.f32 %v2265, %v2521
        %v2523 = vpop.f32.mrb[0].mxu0
        %v2524 = vadd.f32 %v2267, %v2523
        %2525 = vmatprep.mubr.f32.mxu0 %v1492
        %2526 = vmatmul.mubr.f32.gmra.mrb[0].mxu0 %v1491
        %v2527 = vpop.f32.mrb[0].mxu0
        %v2528 = vadd.f32 %v2271, %v2527
        %v2529 = vpop.f32.mrb[0].mxu0
        %v2530 = vadd.f32 %v2273, %v2529
        %2531 = vmatprep.mubr.f32.mxu0 %v1500
        %2532 = vmatmul.mubr.f32.gmra.mrb[0].mxu0 %v1499
        %v2533 = vpop.f32.mrb[0].mxu0
        %v2534 = vadd.f32 %v2277, %v2533
        %v2535 = vpop.f32.mrb[0].mxu0
        %v2536 = vadd.f32 %v2279, %v2535
        %2537 = vmatprep.mubr.f32.mxu0 %v1508
        %2538 = vmatmul.mubr.f32.gmra.mrb[0].mxu0 %v1507
        %v2539 = vpop.f32.mrb[0].mxu0
        %v2540 = vadd.f32 %v2283, %v2539
        %v2541 = vpop.f32.mrb[0].mxu0
        %v2542 = vadd.f32 %v2285, %v2541
        %2543 = vmatprep.mubr.f32.mxu0 %v1516
        %2544 = vmatmul.mubr.f32.gmra.mrb[0].mxu0 %v1515
        %v2545 = vpop.f32.mrb[0].mxu0
        %v2546 = vadd.f32 %v2289, %v2545
        %v2547 = vpop.f32.mrb[0].mxu0
        %v2548 = vadd.f32 %v2291, %v2547
        %2549 = vmatprep.mubr.f32.mxu0 %v1524
        %2550 = vmatmul.mubr.f32.gmra.mrb[0].mxu0 %v1523
        %v2551 = vpop.f32.mrb[0].mxu0
        %v2552 = vadd.f32 %v2295, %v2551
        %v2553 = vpop.f32.mrb[0].mxu0
        %v2554 = vadd.f32 %v2297, %v2553
        %2555 = vmatprep.mubr.f32.mxu0 %v1532
        %2556 = vmatmul.mubr.f32.gmra.mrb[0].mxu0 %v1531
        %v2557 = vpop.f32.mrb[0].mxu0
        %v2558 = vadd.f32 %v2301, %v2557
        %v2559 = vpop.f32.mrb[0].mxu0
        %v2560 = vadd.f32 %v2303, %v2559
        %2561 = vdwg.mxu0
        %2562 = vmatprep.subr.mxu0 %v1728
        %2563 = vmatpush1.msra.mxu0 %v1727
        %2564 = vmatprep.subr.mxu0 %v1730
        %2565 = vmatpush1.msra.mxu0 %v1729
        %2566 = vmatprep.subr.mxu0 %v1732
        %2567 = vmatpush1.msra.mxu0 %v1731
        %2568 = vmatprep.subr.mxu0 %v1734
        %2569 = vmatpush1.msra.mxu0 %v1733
        %2570 = vmatprep.subr.mxu0 %v1736
        %2571 = vmatpush1.msra.mxu0 %v1735
        %2572 = vmatprep.subr.mxu0 %v1738
        %2573 = vmatpush1.msra.mxu0 %v1737
        %2574 = vmatprep.subr.mxu0 %v1740
        %2575 = vmatpush1.msra.mxu0 %v1739
        %2576 = vmatprep.subr.mxu0 %v1742
        %2577 = vmatpush1.msra.mxu0 %v1741
        %2578 = vmatprep.subr.mxu0 %v1744
        %2579 = vmatpush1.msra.mxu0 %v1743
        %2580 = vmatprep.subr.mxu0 %v1746
        %2581 = vmatpush1.msra.mxu0 %v1745
        %2582 = vmatprep.subr.mxu0 %v1748
        %2583 = vmatpush1.msra.mxu0 %v1747
        %2584 = vmatprep.subr.mxu0 %v1750
        %2585 = vmatpush1.msra.mxu0 %v1749
        %2586 = vmatprep.subr.mxu0 %v1752
        %2587 = vmatpush1.msra.mxu0 %v1751
        %2588 = vmatprep.subr.mxu0 %v1754
        %2589 = vmatpush1.msra.mxu0 %v1753
        %2590 = vmatprep.subr.mxu0 %v1756
        %2591 = vmatpush1.msra.mxu0 %v1755
        %2592 = vmatprep.subr.mxu0 %v1758
        %2593 = vmatpush1.msra.mxu0 %v1757
        %2594 = vmatprep.subr.mxu0 %v1760
        %2595 = vmatpush1.msra.mxu0 %v1759
        %2596 = vmatprep.subr.mxu0 %v1762
        %2597 = vmatpush1.msra.mxu0 %v1761
        %2598 = vmatprep.subr.mxu0 %v1764
        %2599 = vmatpush1.msra.mxu0 %v1763
        %2600 = vmatprep.subr.mxu0 %v1766
        %2601 = vmatpush1.msra.mxu0 %v1765
        %2602 = vmatprep.subr.mxu0 %v1768
        %2603 = vmatpush1.msra.mxu0 %v1767
        %2604 = vmatprep.subr.mxu0 %v1770
        %2605 = vmatpush1.msra.mxu0 %v1769
        %2606 = vmatprep.subr.mxu0 %v1772
        %2607 = vmatpush1.msra.mxu0 %v1771
        %2608 = vmatprep.subr.mxu0 %v1774
        %2609 = vmatpush1.msra.mxu0 %v1773
        %2610 = vmatprep.subr.mxu0 %v1776
        %2611 = vmatpush1.msra.mxu0 %v1775
        %2612 = vmatprep.subr.mxu0 %v1778
        %2613 = vmatpush1.msra.mxu0 %v1777
        %2614 = vmatprep.subr.mxu0 %v1780
        %2615 = vmatpush1.msra.mxu0 %v1779
        %2616 = vmatprep.subr.mxu0 %v1782
        %2617 = vmatpush1.msra.mxu0 %v1781
        %2618 = vmatprep.subr.mxu0 %v1784
        %2619 = vmatpush1.msra.mxu0 %v1783
        %2620 = vmatprep.subr.mxu0 %v1786
        %2621 = vmatpush1.msra.mxu0 %v1785
        %2622 = vmatprep.subr.mxu0 %v1788
        %2623 = vmatpush1.msra.mxu0 %v1787
        %2624 = vmatprep.subr.mxu0 %v1790
        %2625 = vmatpush1.msra.mxu0 %v1789
        %2626 = vmatprep.mubr.f32.mxu0 %v1286
        %2627 = vmatmul.mubr.f32.gmra.mrb[0].mxu0 %v1285
        %v2628 = vpop.f32.mrb[0].mxu0
        %v2629 = vadd.f32 %v2372, %v2628
        %v2630 = vpop.f32.mrb[0].mxu0
        %v2631 = vadd.f32 %v2374, %v2630
        %2632 = vmatprep.mubr.f32.mxu0 %v1294
        %2633 = vmatmul.mubr.f32.gmra.mrb[0].mxu0 %v1293
        %v2634 = vpop.f32.mrb[0].mxu0
        %v2635 = vadd.f32 %v2378, %v2634
        %v2636 = vpop.f32.mrb[0].mxu0
        %v2637 = vadd.f32 %v2380, %v2636
        %2638 = vmatprep.mubr.f32.mxu0 %v1302
        %2639 = vmatmul.mubr.f32.gmra.mrb[0].mxu0 %v1301
        %v2640 = vpop.f32.mrb[0].mxu0
        %v2641 = vadd.f32 %v2384, %v2640
        %v2642 = vpop.f32.mrb[0].mxu0
        %v2643 = vadd.f32 %v2386, %v2642
        %2644 = vmatprep.mubr.f32.mxu0 %v1310
        %2645 = vmatmul.mubr.f32.gmra.mrb[0].mxu0 %v1309
        %v2646 = vpop.f32.mrb[0].mxu0
        %v2647 = vadd.f32 %v2390, %v2646
        %v2648 = vpop.f32.mrb[0].mxu0
        %v2649 = vadd.f32 %v2392, %v2648
        %2650 = vmatprep.mubr.f32.mxu0 %v1318
        %2651 = vmatmul.mubr.f32.gmra.mrb[0].mxu0 %v1317
        %v2652 = vpop.f32.mrb[0].mxu0
        %v2653 = vadd.f32 %v2396, %v2652
        %v2654 = vpop.f32.mrb[0].mxu0
        %v2655 = vadd.f32 %v2398, %v2654
        %2656 = vmatprep.mubr.f32.mxu0 %v1326
        %2657 = vmatmul.mubr.f32.gmra.mrb[0].mxu0 %v1325
        %v2658 = vpop.f32.mrb[0].mxu0
        %v2659 = vadd.f32 %v2402, %v2658
        %v2660 = vpop.f32.mrb[0].mxu0
        %v2661 = vadd.f32 %v2404, %v2660
        %2662 = vmatprep.mubr.f32.mxu0 %v1334
        %2663 = vmatmul.mubr.f32.gmra.mrb[0].mxu0 %v1333
        %v2664 = vpop.f32.mrb[0].mxu0
        %v2665 = vadd.f32 %v2408, %v2664
        %v2666 = vpop.f32.mrb[0].mxu0
        %v2667 = vadd.f32 %v2410, %v2666
        %2668 = vmatprep.mubr.f32.mxu0 %v1342
        %2669 = vmatmul.mubr.f32.gmra.mrb[0].mxu0 %v1341
        %v2670 = vpop.f32.mrb[0].mxu0
        %v2671 = vadd.f32 %v2414, %v2670
        %v2672 = vpop.f32.mrb[0].mxu0
        %v2673 = vadd.f32 %v2416, %v2672
        %2674 = vmatprep.mubr.f32.mxu0 %v1350
        %2675 = vmatmul.mubr.f32.gmra.mrb[0].mxu0 %v1349
        %v2676 = vpop.f32.mrb[0].mxu0
        %v2677 = vadd.f32 %v2420, %v2676
        %v2678 = vpop.f32.mrb[0].mxu0
        %v2679 = vadd.f32 %v2422, %v2678
        %2680 = vmatprep.mubr.f32.mxu0 %v1358
        %2681 = vmatmul.mubr.f32.gmra.mrb[0].mxu0 %v1357
        %v2682 = vpop.f32.mrb[0].mxu0
        %v2683 = vadd.f32 %v2426, %v2682
        %v2684 = vpop.f32.mrb[0].mxu0
        %v2685 = vadd.f32 %v2428, %v2684
        %2686 = vmatprep.mubr.f32.mxu0 %v1366
        %2687 = vmatmul.mubr.f32.gmra.mrb[0].mxu0 %v1365
        %v2688 = vpop.f32.mrb[0].mxu0
        %v2689 = vadd.f32 %v2432, %v2688
        %v2690 = vpop.f32.mrb[0].mxu0
        %v2691 = vadd.f32 %v2434, %v2690
        %2692 = vmatprep.mubr.f32.mxu0 %v1374
        %2693 = vmatmul.mubr.f32.gmra.mrb[0].mxu0 %v1373
        %v2694 = vpop.f32.mrb[0].mxu0
        %v2695 = vadd.f32 %v2438, %v2694
        %v2696 = vpop.f32.mrb[0].mxu0
        %v2697 = vadd.f32 %v2440, %v2696
        %2698 = vmatprep.mubr.f32.mxu0 %v1382
        %2699 = vmatmul.mubr.f32.gmra.mrb[0].mxu0 %v1381
        %v2700 = vpop.f32.mrb[0].mxu0
        %v2701 = vadd.f32 %v2444, %v2700
        %v2702 = vpop.f32.mrb[0].mxu0
        %v2703 = vadd.f32 %v2446, %v2702
        %2704 = vmatprep.mubr.f32.mxu0 %v1390
        %2705 = vmatmul.mubr.f32.gmra.mrb[0].mxu0 %v1389
        %v2706 = vpop.f32.mrb[0].mxu0
        %v2707 = vadd.f32 %v2450, %v2706
        %v2708 = vpop.f32.mrb[0].mxu0
        %v2709 = vadd.f32 %v2452, %v2708
        %2710 = vmatprep.mubr.f32.mxu0 %v1398
        %2711 = vmatmul.mubr.f32.gmra.mrb[0].mxu0 %v1397
        %v2712 = vpop.f32.mrb[0].mxu0
        %v2713 = vadd.f32 %v2456, %v2712
        %v2714 = vpop.f32.mrb[0].mxu0
        %v2715 = vadd.f32 %v2458, %v2714
        %2716 = vmatprep.mubr.f32.mxu0 %v1406
        %2717 = vmatmul.mubr.f32.gmra.mrb[0].mxu0 %v1405
        %v2718 = vpop.f32.mrb[0].mxu0
        %v2719 = vadd.f32 %v2462, %v2718
        %v2720 = vpop.f32.mrb[0].mxu0
        %v2721 = vadd.f32 %v2464, %v2720
        %2722 = vmatprep.mubr.f32.mxu0 %v1414
        %2723 = vmatmul.mubr.f32.gmra.mrb[0].mxu0 %v1413
        %v2724 = vpop.f32.mrb[0].mxu0
        %v2725 = vadd.f32 %v2468, %v2724
        %v2726 = vpop.f32.mrb[0].mxu0
        %v2727 = vadd.f32 %v2470, %v2726
        %2728 = vmatprep.mubr.f32.mxu0 %v1422
        %2729 = vmatmul.mubr.f32.gmra.mrb[0].mxu0 %v1421
        %v2730 = vpop.f32.mrb[0].mxu0
        %v2731 = vadd.f32 %v2474, %v2730
        %v2732 = vpop.f32.mrb[0].mxu0
        %v2733 = vadd.f32 %v2476, %v2732
        %2734 = vmatprep.mubr.f32.mxu0 %v1430
        %2735 = vmatmul.mubr.f32.gmra.mrb[0].mxu0 %v1429
        %v2736 = vpop.f32.mrb[0].mxu0
        %v2737 = vadd.f32 %v2480, %v2736
        %v2738 = vpop.f32.mrb[0].mxu0
        %v2739 = vadd.f32 %v2482, %v2738
        %2740 = vmatprep.mubr.f32.mxu0 %v1438
        %2741 = vmatmul.mubr.f32.gmra.mrb[0].mxu0 %v1437
        %v2742 = vpop.f32.mrb[0].mxu0
        %v2743 = vadd.f32 %v2486, %v2742
        %v2744 = vpop.f32.mrb[0].mxu0
        %v2745 = vadd.f32 %v2488, %v2744
        %2746 = vmatprep.mubr.f32.mxu0 %v1446
        %2747 = vmatmul.mubr.f32.gmra.mrb[0].mxu0 %v1445
        %v2748 = vpop.f32.mrb[0].mxu0
        %v2749 = vadd.f32 %v2492, %v2748
        %v2750 = vpop.f32.mrb[0].mxu0
        %v2751 = vadd.f32 %v2494, %v2750
        %2752 = vmatprep.mubr.f32.mxu0 %v1454
        %2753 = vmatmul.mubr.f32.gmra.mrb[0].mxu0 %v1453
        %v2754 = vpop.f32.mrb[0].mxu0
        %v2755 = vadd.f32 %v2498, %v2754
        %v2756 = vpop.f32.mrb[0].mxu0
        %v2757 = vadd.f32 %v2500, %v2756
        %2758 = vmatprep.mubr.f32.mxu0 %v1462
        %2759 = vmatmul.mubr.f32.gmra.mrb[0].mxu0 %v1461
        %v2760 = vpop.f32.mrb[0].mxu0
        %v2761 = vadd.f32 %v2504, %v2760
        %v2762 = vpop.f32.mrb[0].mxu0
        %v2763 = vadd.f32 %v2506, %v2762
        %2764 = vmatprep.mubr.f32.mxu0 %v1470
        %2765 = vmatmul.mubr.f32.gmra.mrb[0].mxu0 %v1469
        %v2766 = vpop.f32.mrb[0].mxu0
        %v2767 = vadd.f32 %v2510, %v2766
        %v2768 = vpop.f32.mrb[0].mxu0
        %v2769 = vadd.f32 %v2512, %v2768
        %2770 = vmatprep.mubr.f32.mxu0 %v1478
        %2771 = vmatmul.mubr.f32.gmra.mrb[0].mxu0 %v1477
        %v2772 = vpop.f32.mrb[0].mxu0
        %v2773 = vadd.f32 %v2516, %v2772
        %v2774 = vpop.f32.mrb[0].mxu0
        %v2775 = vadd.f32 %v2518, %v2774
        %2776 = vmatprep.mubr.f32.mxu0 %v1486
        %2777 = vmatmul.mubr.f32.gmra.mrb[0].mxu0 %v1485
        %v2778 = vpop.f32.mrb[0].mxu0
        %v2779 = vadd.f32 %v2522, %v2778
        %v2780 = vpop.f32.mrb[0].mxu0
        %v2781 = vadd.f32 %v2524, %v2780
        %2782 = vmatprep.mubr.f32.mxu0 %v1494
        %2783 = vmatmul.mubr.f32.gmra.mrb[0].mxu0 %v1493
        %v2784 = vpop.f32.mrb[0].mxu0
        %v2785 = vadd.f32 %v2528, %v2784
        %v2786 = vpop.f32.mrb[0].mxu0
        %v2787 = vadd.f32 %v2530, %v2786
        %2788 = vmatprep.mubr.f32.mxu0 %v1502
        %2789 = vmatmul.mubr.f32.gmra.mrb[0].mxu0 %v1501
        %v2790 = vpop.f32.mrb[0].mxu0
        %v2791 = vadd.f32 %v2534, %v2790
        %v2792 = vpop.f32.mrb[0].mxu0
        %v2793 = vadd.f32 %v2536, %v2792
        %2794 = vmatprep.mubr.f32.mxu0 %v1510
        %2795 = vmatmul.mubr.f32.gmra.mrb[0].mxu0 %v1509
        %v2796 = vpop.f32.mrb[0].mxu0
        %v2797 = vadd.f32 %v2540, %v2796
        %v2798 = vpop.f32.mrb[0].mxu0
        %v2799 = vadd.f32 %v2542, %v2798
        %2800 = vmatprep.mubr.f32.mxu0 %v1518
        %2801 = vmatmul.mubr.f32.gmra.mrb[0].mxu0 %v1517
        %v2802 = vpop.f32.mrb[0].mxu0
        %v2803 = vadd.f32 %v2546, %v2802
        %v2804 = vpop.f32.mrb[0].mxu0
        %v2805 = vadd.f32 %v2548, %v2804
        %2806 = vmatprep.mubr.f32.mxu0 %v1526
        %2807 = vmatmul.mubr.f32.gmra.mrb[0].mxu0 %v1525
        %v2808 = vpop.f32.mrb[0].mxu0
        %v2809 = vadd.f32 %v2552, %v2808
        %v2810 = vpop.f32.mrb[0].mxu0
        %v2811 = vadd.f32 %v2554, %v2810
        %2812 = vmatprep.mubr.f32.mxu0 %v1534
        %2813 = vmatmul.mubr.f32.gmra.mrb[0].mxu0 %v1533
        %v2814 = vpop.f32.mrb[0].mxu0
        %v2815 = vadd.f32 %v2558, %v2814
        %v2816 = vpop.f32.mrb[0].mxu0
        %v2817 = vadd.f32 %v2560, %v2816
        %2818 = vdwg.mxu0
        %2819 = vst [vmem:[%s1268] sm:$0xff] %v2629
        %2820 = vst [vmem:[%s1268 + $0x8] sm:$0xff] %v2631
        %2821 = vst [vmem:[%s1268 + $0x10] sm:$0xff] %v2635
        %2822 = vst [vmem:[%s1268 + $0x18] sm:$0xff] %v2637
        %2823 = vst [vmem:[%s1268 + $0x20] sm:$0xff] %v2641
        %2824 = vst [vmem:[%s1268 + $0x28] sm:$0xff] %v2643
        %2825 = vst [vmem:[%s1268 + $0x30] sm:$0xff] %v2647
        %2826 = vst [vmem:[%s1268 + $0x38] sm:$0xff] %v2649
        %2827 = vst [vmem:[%s1268 + $0x40] sm:$0xff] %v2653
        %2828 = vst [vmem:[%s1268 + $0x48] sm:$0xff] %v2655
        %2829 = vst [vmem:[%s1268 + $0x50] sm:$0xff] %v2659
        %2830 = vst [vmem:[%s1268 + $0x58] sm:$0xff] %v2661
        %2831 = vst [vmem:[%s1268 + $0x60] sm:$0xff] %v2665
        %2832 = vst [vmem:[%s1268 + $0x68] sm:$0xff] %v2667
        %2833 = vst [vmem:[%s1268 + $0x70] sm:$0xff] %v2671
        %2834 = vst [vmem:[%s1268 + $0x78] sm:$0xff] %v2673
        %2835 = vst [vmem:[%s1268 + $0x80] sm:$0xff] %v2677
        %2836 = vst [vmem:[%s1268 + $0x88] sm:$0xff] %v2679
        %2837 = vst [vmem:[%s1268 + $0x90] sm:$0xff] %v2683
        %2838 = vst [vmem:[%s1268 + $0x98] sm:$0xff] %v2685
        %2839 = vst [vmem:[%s1268 + $0xa0] sm:$0xff] %v2689
        %2840 = vst [vmem:[%s1268 + $0xa8] sm:$0xff] %v2691
        %2841 = vst [vmem:[%s1268 + $0xb0] sm:$0xff] %v2695
        %2842 = vst [vmem:[%s1268 + $0xb8] sm:$0xff] %v2697
        %2843 = vst [vmem:[%s1268 + $0xc0] sm:$0xff] %v2701
        %2844 = vst [vmem:[%s1268 + $0xc8] sm:$0xff] %v2703
        %2845 = vst [vmem:[%s1268 + $0xd0] sm:$0xff] %v2707
        %2846 = vst [vmem:[%s1268 + $0xd8] sm:$0xff] %v2709
        %2847 = vst [vmem:[%s1268 + $0xe0] sm:$0xff] %v2713
        %2848 = vst [vmem:[%s1268 + $0xe8] sm:$0xff] %v2715
        %2849 = vst [vmem:[%s1268 + $0xf0] sm:$0xff] %v2719
        %2850 = vst [vmem:[%s1268 + $0xf8] sm:$0xff] %v2721
        %2851 = vst [vmem:[%s1268 + $0x100] sm:$0xff] %v2725
        %2852 = vst [vmem:[%s1268 + $0x108] sm:$0xff] %v2727
        %2853 = vst [vmem:[%s1268 + $0x110] sm:$0xff] %v2731
        %2854 = vst [vmem:[%s1268 + $0x118] sm:$0xff] %v2733
        %2855 = vst [vmem:[%s1268 + $0x120] sm:$0xff] %v2737
        %2856 = vst [vmem:[%s1268 + $0x128] sm:$0xff] %v2739
        %2857 = vst [vmem:[%s1268 + $0x130] sm:$0xff] %v2743
        %2858 = vst [vmem:[%s1268 + $0x138] sm:$0xff] %v2745
        %2859 = vst [vmem:[%s1268 + $0x140] sm:$0xff] %v2749
        %2860 = vst [vmem:[%s1268 + $0x148] sm:$0xff] %v2751
        %2861 = vst [vmem:[%s1268 + $0x150] sm:$0xff] %v2755
        %2862 = vst [vmem:[%s1268 + $0x158] sm:$0xff] %v2757
        %2863 = vst [vmem:[%s1268 + $0x160] sm:$0xff] %v2761
        %2864 = vst [vmem:[%s1268 + $0x168] sm:$0xff] %v2763
        %2865 = vst [vmem:[%s1268 + $0x170] sm:$0xff] %v2767
        %2866 = vst [vmem:[%s1268 + $0x178] sm:$0xff] %v2769
        %2867 = vst [vmem:[%s1268 + $0x180] sm:$0xff] %v2773
        %2868 = vst [vmem:[%s1268 + $0x188] sm:$0xff] %v2775
        %2869 = vst [vmem:[%s1268 + $0x190] sm:$0xff] %v2779
        %2870 = vst [vmem:[%s1268 + $0x198] sm:$0xff] %v2781
        %2871 = vst [vmem:[%s1268 + $0x1a0] sm:$0xff] %v2785
        %2872 = vst [vmem:[%s1268 + $0x1a8] sm:$0xff] %v2787
        %2873 = vst [vmem:[%s1268 + $0x1b0] sm:$0xff] %v2791
        %2874 = vst [vmem:[%s1268 + $0x1b8] sm:$0xff] %v2793
        %2875 = vst [vmem:[%s1268 + $0x1c0] sm:$0xff] %v2797
        %2876 = vst [vmem:[%s1268 + $0x1c8] sm:$0xff] %v2799
        %2877 = vst [vmem:[%s1268 + $0x1d0] sm:$0xff] %v2803
        %2878 = vst [vmem:[%s1268 + $0x1d8] sm:$0xff] %v2805
        %2879 = vst [vmem:[%s1268 + $0x1e0] sm:$0xff] %v2809
        %2880 = vst [vmem:[%s1268 + $0x1e8] sm:$0xff] %v2811
        %2881 = vst [vmem:[%s1268 + $0x1f0] sm:$0xff] %v2815
        %2882 = vst [vmem:[%s1268 + $0x1f8] sm:$0xff] %v2817
        %s2883 = sand.u32 %s84, 1
        %s2884 = sand.u32 %s84, 1
        %s2885 = smul.addr %s2884, 512
        %s2886 = scalar_lea.vmem [#allocation3], %s2885
        // Predicated region
        $region81: #{tpu_custom_call.1} parent=75 // pred_check
          %p2887 = pneg %p94
        $region82: #{tpu_custom_call.1} parent=75 // pred_check_branch
          %2889 = sbr.rel (%p2887) target = $region84
        $region83: #{tpu_custom_call.1} parent=75 // pred_region
          %s2890 = smul.u32 2, %s18
          %s2891 = ssub.s32 7, %s2890
          %p2892 = scmp.lt.s32.totalorder %s2891, 2
          %s2893 = scalar_select %p2892, %s2891, 2
          %s2894 = smul.u32 4096, %s2893
          %p2895 = scmp.ne.s32.totalorder 0, %s2894
          %s2896 = smul.addr %s17, 224
          %s2897 = sadd.s32 %s2890, %s2896
          %s2898 = smul.addr %s2897, 8
          %s2899 = scalar_lea.vmem %s2, %s2898
          %s2900 = smul.u32 %s2893, 8
          // Predicated region
          $region85: #{tpu_custom_call.1} parent=83 // pred_check
            %p2901 = pneg %p2895
          $region86: #{tpu_custom_call.1} parent=83 // pred_check_branch
            %2903 = sbr.rel (%p2901) target = $region88
          $region87: #{tpu_custom_call.1} parent=83 // pred_region
            %p2904 = scmp.lt.u32.totalorder %s2900, 8
            %p2905 = pneg %p2904
            // Predicated region
            $region89: #{tpu_custom_call.1} parent=87 // pred_check
              _
            $region90: #{tpu_custom_call.1} parent=87 // pred_check_branch
              %2907 = sbr.rel (%p2904) target = $region92
            $region91: #{tpu_custom_call.1} parent=87 // pred_region
              %s2984 = sand.u32 %s2900, 7
              %p2985 = scmp.eq.s32.totalorder %s2984, 0
              // Predicated region
              $region104: #{tpu_custom_call.1} parent=91 // pred_check
                %p2986 = pneg %p2985
              $region105: #{tpu_custom_call.1} parent=91 // pred_check_branch
                %2988 = sbr.rel (%p2986) target = $region107
              $region106: #{tpu_custom_call.1} parent=91 // pred_region
                %s2989 = sshrl.u32 %s2900, 3
                %s2990 = sshrl.u32 %s2989, 1
                // While loop
                $region108: #{tpu_custom_call.1} parent=106 // loop_pre_header
                  _
                $region109: #{tpu_custom_call.1} parent=106 // loop_header
                  %s2994 = sphi 0, %s2996
                  %p2995 = scmp.ge.s32.totalorder %s2994, %s2990
                  %s2999 = sphi 0, %s3132
                  %s3000 = sphi %s2886, %s3135
                  %s3001 = sphi %s2899, %s3136
                $region110: #{tpu_custom_call.1} parent=106 // loop_header_branch
                  %2998 = sbr.rel (%p2995) target = $region114
                $region111: #{tpu_custom_call.1} parent=106 // loop_body
                  %v3002 = vld [vmem:[%s3000] sm:$0xff]
                  %3003 = vst [vmem:[%s3001] sm:$0xff] %v3002
                  %v3004 = vld [vmem:[%s3000 + $0x8] sm:$0xff]
                  %3005 = vst [vmem:[%s3001 + $0x8] sm:$0xff] %v3004
                  %v3006 = vld [vmem:[%s3000 + $0x10] sm:$0xff]
                  %3007 = vst [vmem:[%s3001 + $0x38] sm:$0xff] %v3006
                  %v3008 = vld [vmem:[%s3000 + $0x18] sm:$0xff]
                  %3009 = vst [vmem:[%s3001 + $0x40] sm:$0xff] %v3008
                  %v3010 = vld [vmem:[%s3000 + $0x20] sm:$0xff]
                  %3011 = vst [vmem:[%s3001 + $0x70] sm:$0xff] %v3010
                  %v3012 = vld [vmem:[%s3000 + $0x28] sm:$0xff]
                  %3013 = vst [vmem:[%s3001 + $0x78] sm:$0xff] %v3012
                  %v3014 = vld [vmem:[%s3000 + $0x30] sm:$0xff]
                  %3015 = vst [vmem:[%s3001 + $0xa8] sm:$0xff] %v3014
                  %v3016 = vld [vmem:[%s3000 + $0x38] sm:$0xff]
                  %3017 = vst [vmem:[%s3001 + $0xb0] sm:$0xff] %v3016
                  %v3018 = vld [vmem:[%s3000 + $0x40] sm:$0xff]
                  %3019 = vst [vmem:[%s3001 + $0xe0] sm:$0xff] %v3018
                  %v3020 = vld [vmem:[%s3000 + $0x48] sm:$0xff]
                  %3021 = vst [vmem:[%s3001 + $0xe8] sm:$0xff] %v3020
                  %v3022 = vld [vmem:[%s3000 + $0x50] sm:$0xff]
                  %3023 = vst [vmem:[%s3001 + $0x118] sm:$0xff] %v3022
                  %v3024 = vld [vmem:[%s3000 + $0x58] sm:$0xff]
                  %3025 = vst [vmem:[%s3001 + $0x120] sm:$0xff] %v3024
                  %v3026 = vld [vmem:[%s3000 + $0x60] sm:$0xff]
                  %3027 = vst [vmem:[%s3001 + $0x150] sm:$0xff] %v3026
                  %v3028 = vld [vmem:[%s3000 + $0x68] sm:$0xff]
                  %3029 = vst [vmem:[%s3001 + $0x158] sm:$0xff] %v3028
                  %v3030 = vld [vmem:[%s3000 + $0x70] sm:$0xff]
                  %3031 = vst [vmem:[%s3001 + $0x188] sm:$0xff] %v3030
                  %v3032 = vld [vmem:[%s3000 + $0x78] sm:$0xff]
                  %3033 = vst [vmem:[%s3001 + $0x190] sm:$0xff] %v3032
                  %v3034 = vld [vmem:[%s3000 + $0x80] sm:$0xff]
                  %3035 = vst [vmem:[%s3001 + $0x1c0] sm:$0xff] %v3034
                  %v3036 = vld [vmem:[%s3000 + $0x88] sm:$0xff]
                  %3037 = vst [vmem:[%s3001 + $0x1c8] sm:$0xff] %v3036
                  %v3038 = vld [vmem:[%s3000 + $0x90] sm:$0xff]
                  %3039 = vst [vmem:[%s3001 + $0x1f8] sm:$0xff] %v3038
                  %v3040 = vld [vmem:[%s3000 + $0x98] sm:$0xff]
                  %3041 = vst [vmem:[%s3001 + $0x200] sm:$0xff] %v3040
                  %v3042 = vld [vmem:[%s3000 + $0xa0] sm:$0xff]
                  %3043 = vst [vmem:[%s3001 + $0x230] sm:$0xff] %v3042
                  %v3044 = vld [vmem:[%s3000 + $0xa8] sm:$0xff]
                  %3045 = vst [vmem:[%s3001 + $0x238] sm:$0xff] %v3044
                  %v3046 = vld [vmem:[%s3000 + $0xb0] sm:$0xff]
                  %3047 = vst [vmem:[%s3001 + $0x268] sm:$0xff] %v3046
                  %v3048 = vld [vmem:[%s3000 + $0xb8] sm:$0xff]
                  %3049 = vst [vmem:[%s3001 + $0x270] sm:$0xff] %v3048
                  %v3050 = vld [vmem:[%s3000 + $0xc0] sm:$0xff]
                  %3051 = vst [vmem:[%s3001 + $0x2a0] sm:$0xff] %v3050
                  %v3052 = vld [vmem:[%s3000 + $0xc8] sm:$0xff]
                  %3053 = vst [vmem:[%s3001 + $0x2a8] sm:$0xff] %v3052
                  %v3054 = vld [vmem:[%s3000 + $0xd0] sm:$0xff]
                  %3055 = vst [vmem:[%s3001 + $0x2d8] sm:$0xff] %v3054
                  %v3056 = vld [vmem:[%s3000 + $0xd8] sm:$0xff]
                  %3057 = vst [vmem:[%s3001 + $0x2e0] sm:$0xff] %v3056
                  %v3058 = vld [vmem:[%s3000 + $0xe0] sm:$0xff]
                  %3059 = vst [vmem:[%s3001 + $0x310] sm:$0xff] %v3058
                  %v3060 = vld [vmem:[%s3000 + $0xe8] sm:$0xff]
                  %3061 = vst [vmem:[%s3001 + $0x318] sm:$0xff] %v3060
                  %v3062 = vld [vmem:[%s3000 + $0xf0] sm:$0xff]
                  %3063 = vst [vmem:[%s3001 + $0x348] sm:$0xff] %v3062
                  %v3064 = vld [vmem:[%s3000 + $0xf8] sm:$0xff]
                  %3065 = vst [vmem:[%s3001 + $0x350] sm:$0xff] %v3064
                  %v3066 = vld [vmem:[%s3000 + $0x100] sm:$0xff]
                  %3067 = vst [vmem:[%s3001 + $0x380] sm:$0xff] %v3066
                  %v3068 = vld [vmem:[%s3000 + $0x108] sm:$0xff]
                  %3069 = vst [vmem:[%s3001 + $0x388] sm:$0xff] %v3068
                  %v3070 = vld [vmem:[%s3000 + $0x110] sm:$0xff]
                  %3071 = vst [vmem:[%s3001 + $0x3b8] sm:$0xff] %v3070
                  %v3072 = vld [vmem:[%s3000 + $0x118] sm:$0xff]
                  %3073 = vst [vmem:[%s3001 + $0x3c0] sm:$0xff] %v3072
                  %v3074 = vld [vmem:[%s3000 + $0x120] sm:$0xff]
                  %3075 = vst [vmem:[%s3001 + $0x3f0] sm:$0xff] %v3074
                  %v3076 = vld [vmem:[%s3000 + $0x128] sm:$0xff]
                  %3077 = vst [vmem:[%s3001 + $0x3f8] sm:$0xff] %v3076
                  %v3078 = vld [vmem:[%s3000 + $0x130] sm:$0xff]
                  %3079 = vst [vmem:[%s3001 + $0x428] sm:$0xff] %v3078
                  %v3080 = vld [vmem:[%s3000 + $0x138] sm:$0xff]
                  %3081 = vst [vmem:[%s3001 + $0x430] sm:$0xff] %v3080
                  %v3082 = vld [vmem:[%s3000 + $0x140] sm:$0xff]
                  %3083 = vst [vmem:[%s3001 + $0x460] sm:$0xff] %v3082
                  %v3084 = vld [vmem:[%s3000 + $0x148] sm:$0xff]
                  %3085 = vst [vmem:[%s3001 + $0x468] sm:$0xff] %v3084
                  %v3086 = vld [vmem:[%s3000 + $0x150] sm:$0xff]
                  %3087 = vst [vmem:[%s3001 + $0x498] sm:$0xff] %v3086
                  %v3088 = vld [vmem:[%s3000 + $0x158] sm:$0xff]
                  %3089 = vst [vmem:[%s3001 + $0x4a0] sm:$0xff] %v3088
                  %v3090 = vld [vmem:[%s3000 + $0x160] sm:$0xff]
                  %3091 = vst [vmem:[%s3001 + $0x4d0] sm:$0xff] %v3090
                  %v3092 = vld [vmem:[%s3000 + $0x168] sm:$0xff]
                  %3093 = vst [vmem:[%s3001 + $0x4d8] sm:$0xff] %v3092
                  %v3094 = vld [vmem:[%s3000 + $0x170] sm:$0xff]
                  %3095 = vst [vmem:[%s3001 + $0x508] sm:$0xff] %v3094
                  %v3096 = vld [vmem:[%s3000 + $0x178] sm:$0xff]
                  %3097 = vst [vmem:[%s3001 + $0x510] sm:$0xff] %v3096
                  %v3098 = vld [vmem:[%s3000 + $0x180] sm:$0xff]
                  %3099 = vst [vmem:[%s3001 + $0x540] sm:$0xff] %v3098
                  %v3100 = vld [vmem:[%s3000 + $0x188] sm:$0xff]
                  %3101 = vst [vmem:[%s3001 + $0x548] sm:$0xff] %v3100
                  %v3102 = vld [vmem:[%s3000 + $0x190] sm:$0xff]
                  %3103 = vst [vmem:[%s3001 + $0x578] sm:$0xff] %v3102
                  %v3104 = vld [vmem:[%s3000 + $0x198] sm:$0xff]
                  %3105 = vst [vmem:[%s3001 + $0x580] sm:$0xff] %v3104
                  %v3106 = vld [vmem:[%s3000 + $0x1a0] sm:$0xff]
                  %3107 = vst [vmem:[%s3001 + $0x5b0] sm:$0xff] %v3106
                  %v3108 = vld [vmem:[%s3000 + $0x1a8] sm:$0xff]
                  %3109 = vst [vmem:[%s3001 + $0x5b8] sm:$0xff] %v3108
                  %v3110 = vld [vmem:[%s3000 + $0x1b0] sm:$0xff]
                  %3111 = vst [vmem:[%s3001 + $0x5e8] sm:$0xff] %v3110
                  %v3112 = vld [vmem:[%s3000 + $0x1b8] sm:$0xff]
                  %3113 = vst [vmem:[%s3001 + $0x5f0] sm:$0xff] %v3112
                  %v3114 = vld [vmem:[%s3000 + $0x1c0] sm:$0xff]
                  %3115 = vst [vmem:[%s3001 + $0x620] sm:$0xff] %v3114
                  %v3116 = vld [vmem:[%s3000 + $0x1c8] sm:$0xff]
                  %3117 = vst [vmem:[%s3001 + $0x628] sm:$0xff] %v3116
                  %v3118 = vld [vmem:[%s3000 + $0x1d0] sm:$0xff]
                  %3119 = vst [vmem:[%s3001 + $0x658] sm:$0xff] %v3118
                  %v3120 = vld [vmem:[%s3000 + $0x1d8] sm:$0xff]
                  %3121 = vst [vmem:[%s3001 + $0x660] sm:$0xff] %v3120
                  %v3122 = vld [vmem:[%s3000 + $0x1e0] sm:$0xff]
                  %3123 = vst [vmem:[%s3001 + $0x690] sm:$0xff] %v3122
                  %v3124 = vld [vmem:[%s3000 + $0x1e8] sm:$0xff]
                  %3125 = vst [vmem:[%s3001 + $0x698] sm:$0xff] %v3124
                  %v3126 = vld [vmem:[%s3000 + $0x1f0] sm:$0xff]
                  %3127 = vst [vmem:[%s3001 + $0x6c8] sm:$0xff] %v3126
                  %v3128 = vld [vmem:[%s3000 + $0x1f8] sm:$0xff]
                  %3129 = vst [vmem:[%s3001 + $0x6d0] sm:$0xff] %v3128
                  %s3130 = sadd.s32 1, %s2999
                  %p3131 = scmp.ge.s32.totalorder %s3130, %s2990
                  %s3132 = scalar_select %p3131, 0, %s3130
                  %s3133 = smul.u32 %s3132, 16
                  %s3134 = smul.u32 %s3132, 16
                  %s3135 = scalar_lea.vmem %s2886, %s3133 [#allocation3]
                  %s3136 = scalar_lea.vmem %s2899, %s3134
                $region112: #{tpu_custom_call.1} parent=106 // loop_footer
                  %s2996 = sadd.s32 %s2994, 1
                $region113: #{tpu_custom_call.1} parent=106 // loop_footer_branch
                  %2993 = sbr.rel target = $region109
                $region114: #{tpu_custom_call.1} parent=106 // loop_exit
                  _
                %s3137 = sshrl.u32 %s2989, 1
                %s3138 = sand.u32 %s2989, 1
                %s3139 = smul.u32 %s3137, 2
                %s3140 = smul.u32 128, %s3139
                %s3141 = sshra.s32 %s3140, 4
                %s3142 = scalar_lea.vmem %s2886, %s3141 [#allocation3]
                %s3143 = smul.u32 128, %s3139
                %s3144 = sshra.s32 %s3143, 4
                %s3145 = scalar_lea.vmem %s2899, %s3144
                // While loop
                $region115: #{tpu_custom_call.1} parent=106 // loop_pre_header
                  _
                $region116: #{tpu_custom_call.1} parent=106 // loop_header
                  %s3149 = sphi 0, %s3151
                  %p3150 = scmp.ge.s32.totalorder %s3149, %s3138
                  %s3154 = sphi 0, %s3223
                  %s3155 = sphi %s3142, %s3226
                  %s3156 = sphi %s3145, %s3227
                $region117: #{tpu_custom_call.1} parent=106 // loop_header_branch
                  %3153 = sbr.rel (%p3150) target = $region121
                $region118: #{tpu_custom_call.1} parent=106 // loop_body
                  %v3157 = vld [vmem:[%s3155] sm:$0xff]
                  %3158 = vst [vmem:[%s3156] sm:$0xff] %v3157
                  %v3159 = vld [vmem:[%s3155 + $0x10] sm:$0xff]
                  %3160 = vst [vmem:[%s3156 + $0x38] sm:$0xff] %v3159
                  %v3161 = vld [vmem:[%s3155 + $0x20] sm:$0xff]
                  %3162 = vst [vmem:[%s3156 + $0x70] sm:$0xff] %v3161
                  %v3163 = vld [vmem:[%s3155 + $0x30] sm:$0xff]
                  %3164 = vst [vmem:[%s3156 + $0xa8] sm:$0xff] %v3163
                  %v3165 = vld [vmem:[%s3155 + $0x40] sm:$0xff]
                  %3166 = vst [vmem:[%s3156 + $0xe0] sm:$0xff] %v3165
                  %v3167 = vld [vmem:[%s3155 + $0x50] sm:$0xff]
                  %3168 = vst [vmem:[%s3156 + $0x118] sm:$0xff] %v3167
                  %v3169 = vld [vmem:[%s3155 + $0x60] sm:$0xff]
                  %3170 = vst [vmem:[%s3156 + $0x150] sm:$0xff] %v3169
                  %v3171 = vld [vmem:[%s3155 + $0x70] sm:$0xff]
                  %3172 = vst [vmem:[%s3156 + $0x188] sm:$0xff] %v3171
                  %v3173 = vld [vmem:[%s3155 + $0x80] sm:$0xff]
                  %3174 = vst [vmem:[%s3156 + $0x1c0] sm:$0xff] %v3173
                  %v3175 = vld [vmem:[%s3155 + $0x90] sm:$0xff]
                  %3176 = vst [vmem:[%s3156 + $0x1f8] sm:$0xff] %v3175
                  %v3177 = vld [vmem:[%s3155 + $0xa0] sm:$0xff]
                  %3178 = vst [vmem:[%s3156 + $0x230] sm:$0xff] %v3177
                  %v3179 = vld [vmem:[%s3155 + $0xb0] sm:$0xff]
                  %3180 = vst [vmem:[%s3156 + $0x268] sm:$0xff] %v3179
                  %v3181 = vld [vmem:[%s3155 + $0xc0] sm:$0xff]
                  %3182 = vst [vmem:[%s3156 + $0x2a0] sm:$0xff] %v3181
                  %v3183 = vld [vmem:[%s3155 + $0xd0] sm:$0xff]
                  %3184 = vst [vmem:[%s3156 + $0x2d8] sm:$0xff] %v3183
                  %v3185 = vld [vmem:[%s3155 + $0xe0] sm:$0xff]
                  %3186 = vst [vmem:[%s3156 + $0x310] sm:$0xff] %v3185
                  %v3187 = vld [vmem:[%s3155 + $0xf0] sm:$0xff]
                  %3188 = vst [vmem:[%s3156 + $0x348] sm:$0xff] %v3187
                  %v3189 = vld [vmem:[%s3155 + $0x100] sm:$0xff]
                  %3190 = vst [vmem:[%s3156 + $0x380] sm:$0xff] %v3189
                  %v3191 = vld [vmem:[%s3155 + $0x110] sm:$0xff]
                  %3192 = vst [vmem:[%s3156 + $0x3b8] sm:$0xff] %v3191
                  %v3193 = vld [vmem:[%s3155 + $0x120] sm:$0xff]
                  %3194 = vst [vmem:[%s3156 + $0x3f0] sm:$0xff] %v3193
                  %v3195 = vld [vmem:[%s3155 + $0x130] sm:$0xff]
                  %3196 = vst [vmem:[%s3156 + $0x428] sm:$0xff] %v3195
                  %v3197 = vld [vmem:[%s3155 + $0x140] sm:$0xff]
                  %3198 = vst [vmem:[%s3156 + $0x460] sm:$0xff] %v3197
                  %v3199 = vld [vmem:[%s3155 + $0x150] sm:$0xff]
                  %3200 = vst [vmem:[%s3156 + $0x498] sm:$0xff] %v3199
                  %v3201 = vld [vmem:[%s3155 + $0x160] sm:$0xff]
                  %3202 = vst [vmem:[%s3156 + $0x4d0] sm:$0xff] %v3201
                  %v3203 = vld [vmem:[%s3155 + $0x170] sm:$0xff]
                  %3204 = vst [vmem:[%s3156 + $0x508] sm:$0xff] %v3203
                  %v3205 = vld [vmem:[%s3155 + $0x180] sm:$0xff]
                  %3206 = vst [vmem:[%s3156 + $0x540] sm:$0xff] %v3205
                  %v3207 = vld [vmem:[%s3155 + $0x190] sm:$0xff]
                  %3208 = vst [vmem:[%s3156 + $0x578] sm:$0xff] %v3207
                  %v3209 = vld [vmem:[%s3155 + $0x1a0] sm:$0xff]
                  %3210 = vst [vmem:[%s3156 + $0x5b0] sm:$0xff] %v3209
                  %v3211 = vld [vmem:[%s3155 + $0x1b0] sm:$0xff]
                  %3212 = vst [vmem:[%s3156 + $0x5e8] sm:$0xff] %v3211
                  %v3213 = vld [vmem:[%s3155 + $0x1c0] sm:$0xff]
                  %3214 = vst [vmem:[%s3156 + $0x620] sm:$0xff] %v3213
                  %v3215 = vld [vmem:[%s3155 + $0x1d0] sm:$0xff]
                  %3216 = vst [vmem:[%s3156 + $0x658] sm:$0xff] %v3215
                  %v3217 = vld [vmem:[%s3155 + $0x1e0] sm:$0xff]
                  %3218 = vst [vmem:[%s3156 + $0x690] sm:$0xff] %v3217
                  %v3219 = vld [vmem:[%s3155 + $0x1f0] sm:$0xff]
                  %3220 = vst [vmem:[%s3156 + $0x6c8] sm:$0xff] %v3219
                  %s3221 = sadd.s32 1, %s3154
                  %p3222 = scmp.ge.s32.totalorder %s3221, %s3138
                  %s3223 = scalar_select %p3222, 0, %s3221
                  %s3224 = smul.u32 %s3223, 8
                  %s3225 = smul.u32 %s3223, 8
                  %s3226 = scalar_lea.vmem %s3142, %s3224 [#allocation3]
                  %s3227 = scalar_lea.vmem %s3145, %s3225
                $region119: #{tpu_custom_call.1} parent=106 // loop_footer
                  %s3151 = sadd.s32 %s3149, 1
                $region120: #{tpu_custom_call.1} parent=106 // loop_footer_branch
                  %3148 = sbr.rel target = $region116
                $region121: #{tpu_custom_call.1} parent=106 // loop_exit
                  _
              $region107: #{tpu_custom_call.1} parent=91 // pred_fallthru
                _
              %p3228 = pneg %p2985
              // Predicated region
              $region122: #{tpu_custom_call.1} parent=91 // pred_check
                _
              $region123: #{tpu_custom_call.1} parent=91 // pred_check_branch
                %3230 = sbr.rel (%p2985) target = $region125
              $region124: #{tpu_custom_call.1} parent=91 // pred_region
                %s3231 = sand.u32 %s2900, 7
                %s3232 = ssub.s32 %s2900, %s3231
                %s3233 = scalar_lea.vmem %s2886, %s3232 [#allocation3]
                %s3234 = ssub.s32 %s2900, %s3231
                %s3235 = scalar_lea.vmem %s2899, %s3234
                %s3236 = sshrl.u32 %s2900, 3
                %s3237 = sshrl.u32 %s3236, 1
                // While loop
                $region126: #{tpu_custom_call.1} parent=124 // loop_pre_header
                  _
                $region127: #{tpu_custom_call.1} parent=124 // loop_header
                  %s3241 = sphi 0, %s3243
                  %p3242 = scmp.ge.s32.totalorder %s3241, %s3237
                  %s3246 = sphi 0, %s3379
                  %s3247 = sphi %s2886, %s3382
                  %s3248 = sphi %s2899, %s3383
                $region128: #{tpu_custom_call.1} parent=124 // loop_header_branch
                  %3245 = sbr.rel (%p3242) target = $region132
                $region129: #{tpu_custom_call.1} parent=124 // loop_body
                  %v3249 = vld [vmem:[%s3247] sm:$0xff]
                  %3250 = vst [vmem:[%s3248] sm:$0xff] %v3249
                  %v3251 = vld [vmem:[%s3247 + $0x8] sm:$0xff]
                  %3252 = vst [vmem:[%s3248 + $0x8] sm:$0xff] %v3251
                  %v3253 = vld [vmem:[%s3247 + $0x10] sm:$0xff]
                  %3254 = vst [vmem:[%s3248 + $0x38] sm:$0xff] %v3253
                  %v3255 = vld [vmem:[%s3247 + $0x18] sm:$0xff]
                  %3256 = vst [vmem:[%s3248 + $0x40] sm:$0xff] %v3255
                  %v3257 = vld [vmem:[%s3247 + $0x20] sm:$0xff]
                  %3258 = vst [vmem:[%s3248 + $0x70] sm:$0xff] %v3257
                  %v3259 = vld [vmem:[%s3247 + $0x28] sm:$0xff]
                  %3260 = vst [vmem:[%s3248 + $0x78] sm:$0xff] %v3259
                  %v3261 = vld [vmem:[%s3247 + $0x30] sm:$0xff]
                  %3262 = vst [vmem:[%s3248 + $0xa8] sm:$0xff] %v3261
                  %v3263 = vld [vmem:[%s3247 + $0x38] sm:$0xff]
                  %3264 = vst [vmem:[%s3248 + $0xb0] sm:$0xff] %v3263
                  %v3265 = vld [vmem:[%s3247 + $0x40] sm:$0xff]
                  %3266 = vst [vmem:[%s3248 + $0xe0] sm:$0xff] %v3265
                  %v3267 = vld [vmem:[%s3247 + $0x48] sm:$0xff]
                  %3268 = vst [vmem:[%s3248 + $0xe8] sm:$0xff] %v3267
                  %v3269 = vld [vmem:[%s3247 + $0x50] sm:$0xff]
                  %3270 = vst [vmem:[%s3248 + $0x118] sm:$0xff] %v3269
                  %v3271 = vld [vmem:[%s3247 + $0x58] sm:$0xff]
                  %3272 = vst [vmem:[%s3248 + $0x120] sm:$0xff] %v3271
                  %v3273 = vld [vmem:[%s3247 + $0x60] sm:$0xff]
                  %3274 = vst [vmem:[%s3248 + $0x150] sm:$0xff] %v3273
                  %v3275 = vld [vmem:[%s3247 + $0x68] sm:$0xff]
                  %3276 = vst [vmem:[%s3248 + $0x158] sm:$0xff] %v3275
                  %v3277 = vld [vmem:[%s3247 + $0x70] sm:$0xff]
                  %3278 = vst [vmem:[%s3248 + $0x188] sm:$0xff] %v3277
                  %v3279 = vld [vmem:[%s3247 + $0x78] sm:$0xff]
                  %3280 = vst [vmem:[%s3248 + $0x190] sm:$0xff] %v3279
                  %v3281 = vld [vmem:[%s3247 + $0x80] sm:$0xff]
                  %3282 = vst [vmem:[%s3248 + $0x1c0] sm:$0xff] %v3281
                  %v3283 = vld [vmem:[%s3247 + $0x88] sm:$0xff]
                  %3284 = vst [vmem:[%s3248 + $0x1c8] sm:$0xff] %v3283
                  %v3285 = vld [vmem:[%s3247 + $0x90] sm:$0xff]
                  %3286 = vst [vmem:[%s3248 + $0x1f8] sm:$0xff] %v3285
                  %v3287 = vld [vmem:[%s3247 + $0x98] sm:$0xff]
                  %3288 = vst [vmem:[%s3248 + $0x200] sm:$0xff] %v3287
                  %v3289 = vld [vmem:[%s3247 + $0xa0] sm:$0xff]
                  %3290 = vst [vmem:[%s3248 + $0x230] sm:$0xff] %v3289
                  %v3291 = vld [vmem:[%s3247 + $0xa8] sm:$0xff]
                  %3292 = vst [vmem:[%s3248 + $0x238] sm:$0xff] %v3291
                  %v3293 = vld [vmem:[%s3247 + $0xb0] sm:$0xff]
                  %3294 = vst [vmem:[%s3248 + $0x268] sm:$0xff] %v3293
                  %v3295 = vld [vmem:[%s3247 + $0xb8] sm:$0xff]
                  %3296 = vst [vmem:[%s3248 + $0x270] sm:$0xff] %v3295
                  %v3297 = vld [vmem:[%s3247 + $0xc0] sm:$0xff]
                  %3298 = vst [vmem:[%s3248 + $0x2a0] sm:$0xff] %v3297
                  %v3299 = vld [vmem:[%s3247 + $0xc8] sm:$0xff]
                  %3300 = vst [vmem:[%s3248 + $0x2a8] sm:$0xff] %v3299
                  %v3301 = vld [vmem:[%s3247 + $0xd0] sm:$0xff]
                  %3302 = vst [vmem:[%s3248 + $0x2d8] sm:$0xff] %v3301
                  %v3303 = vld [vmem:[%s3247 + $0xd8] sm:$0xff]
                  %3304 = vst [vmem:[%s3248 + $0x2e0] sm:$0xff] %v3303
                  %v3305 = vld [vmem:[%s3247 + $0xe0] sm:$0xff]
                  %3306 = vst [vmem:[%s3248 + $0x310] sm:$0xff] %v3305
                  %v3307 = vld [vmem:[%s3247 + $0xe8] sm:$0xff]
                  %3308 = vst [vmem:[%s3248 + $0x318] sm:$0xff] %v3307
                  %v3309 = vld [vmem:[%s3247 + $0xf0] sm:$0xff]
                  %3310 = vst [vmem:[%s3248 + $0x348] sm:$0xff] %v3309
                  %v3311 = vld [vmem:[%s3247 + $0xf8] sm:$0xff]
                  %3312 = vst [vmem:[%s3248 + $0x350] sm:$0xff] %v3311
                  %v3313 = vld [vmem:[%s3247 + $0x100] sm:$0xff]
                  %3314 = vst [vmem:[%s3248 + $0x380] sm:$0xff] %v3313
                  %v3315 = vld [vmem:[%s3247 + $0x108] sm:$0xff]
                  %3316 = vst [vmem:[%s3248 + $0x388] sm:$0xff] %v3315
                  %v3317 = vld [vmem:[%s3247 + $0x110] sm:$0xff]
                  %3318 = vst [vmem:[%s3248 + $0x3b8] sm:$0xff] %v3317
                  %v3319 = vld [vmem:[%s3247 + $0x118] sm:$0xff]
                  %3320 = vst [vmem:[%s3248 + $0x3c0] sm:$0xff] %v3319
                  %v3321 = vld [vmem:[%s3247 + $0x120] sm:$0xff]
                  %3322 = vst [vmem:[%s3248 + $0x3f0] sm:$0xff] %v3321
                  %v3323 = vld [vmem:[%s3247 + $0x128] sm:$0xff]
                  %3324 = vst [vmem:[%s3248 + $0x3f8] sm:$0xff] %v3323
                  %v3325 = vld [vmem:[%s3247 + $0x130] sm:$0xff]
                  %3326 = vst [vmem:[%s3248 + $0x428] sm:$0xff] %v3325
                  %v3327 = vld [vmem:[%s3247 + $0x138] sm:$0xff]
                  %3328 = vst [vmem:[%s3248 + $0x430] sm:$0xff] %v3327
                  %v3329 = vld [vmem:[%s3247 + $0x140] sm:$0xff]
                  %3330 = vst [vmem:[%s3248 + $0x460] sm:$0xff] %v3329
                  %v3331 = vld [vmem:[%s3247 + $0x148] sm:$0xff]
                  %3332 = vst [vmem:[%s3248 + $0x468] sm:$0xff] %v3331
                  %v3333 = vld [vmem:[%s3247 + $0x150] sm:$0xff]
                  %3334 = vst [vmem:[%s3248 + $0x498] sm:$0xff] %v3333
                  %v3335 = vld [vmem:[%s3247 + $0x158] sm:$0xff]
                  %3336 = vst [vmem:[%s3248 + $0x4a0] sm:$0xff] %v3335
                  %v3337 = vld [vmem:[%s3247 + $0x160] sm:$0xff]
                  %3338 = vst [vmem:[%s3248 + $0x4d0] sm:$0xff] %v3337
                  %v3339 = vld [vmem:[%s3247 + $0x168] sm:$0xff]
                  %3340 = vst [vmem:[%s3248 + $0x4d8] sm:$0xff] %v3339
                  %v3341 = vld [vmem:[%s3247 + $0x170] sm:$0xff]
                  %3342 = vst [vmem:[%s3248 + $0x508] sm:$0xff] %v3341
                  %v3343 = vld [vmem:[%s3247 + $0x178] sm:$0xff]
                  %3344 = vst [vmem:[%s3248 + $0x510] sm:$0xff] %v3343
                  %v3345 = vld [vmem:[%s3247 + $0x180] sm:$0xff]
                  %3346 = vst [vmem:[%s3248 + $0x540] sm:$0xff] %v3345
                  %v3347 = vld [vmem:[%s3247 + $0x188] sm:$0xff]
                  %3348 = vst [vmem:[%s3248 + $0x548] sm:$0xff] %v3347
                  %v3349 = vld [vmem:[%s3247 + $0x190] sm:$0xff]
                  %3350 = vst [vmem:[%s3248 + $0x578] sm:$0xff] %v3349
                  %v3351 = vld [vmem:[%s3247 + $0x198] sm:$0xff]
                  %3352 = vst [vmem:[%s3248 + $0x580] sm:$0xff] %v3351
                  %v3353 = vld [vmem:[%s3247 + $0x1a0] sm:$0xff]
                  %3354 = vst [vmem:[%s3248 + $0x5b0] sm:$0xff] %v3353
                  %v3355 = vld [vmem:[%s3247 + $0x1a8] sm:$0xff]
                  %3356 = vst [vmem:[%s3248 + $0x5b8] sm:$0xff] %v3355
                  %v3357 = vld [vmem:[%s3247 + $0x1b0] sm:$0xff]
                  %3358 = vst [vmem:[%s3248 + $0x5e8] sm:$0xff] %v3357
                  %v3359 = vld [vmem:[%s3247 + $0x1b8] sm:$0xff]
                  %3360 = vst [vmem:[%s3248 + $0x5f0] sm:$0xff] %v3359
                  %v3361 = vld [vmem:[%s3247 + $0x1c0] sm:$0xff]
                  %3362 = vst [vmem:[%s3248 + $0x620] sm:$0xff] %v3361
                  %v3363 = vld [vmem:[%s3247 + $0x1c8] sm:$0xff]
                  %3364 = vst [vmem:[%s3248 + $0x628] sm:$0xff] %v3363
                  %v3365 = vld [vmem:[%s3247 + $0x1d0] sm:$0xff]
                  %3366 = vst [vmem:[%s3248 + $0x658] sm:$0xff] %v3365
                  %v3367 = vld [vmem:[%s3247 + $0x1d8] sm:$0xff]
                  %3368 = vst [vmem:[%s3248 + $0x660] sm:$0xff] %v3367
                  %v3369 = vld [vmem:[%s3247 + $0x1e0] sm:$0xff]
                  %3370 = vst [vmem:[%s3248 + $0x690] sm:$0xff] %v3369
                  %v3371 = vld [vmem:[%s3247 + $0x1e8] sm:$0xff]
                  %3372 = vst [vmem:[%s3248 + $0x698] sm:$0xff] %v3371
                  %v3373 = vld [vmem:[%s3247 + $0x1f0] sm:$0xff]
                  %3374 = vst [vmem:[%s3248 + $0x6c8] sm:$0xff] %v3373
                  %v3375 = vld [vmem:[%s3247 + $0x1f8] sm:$0xff]
                  %3376 = vst [vmem:[%s3248 + $0x6d0] sm:$0xff] %v3375
                  %s3377 = sadd.s32 1, %s3246
                  %p3378 = scmp.ge.s32.totalorder %s3377, %s3237
                  %s3379 = scalar_select %p3378, 0, %s3377
                  %s3380 = smul.u32 %s3379, 16
                  %s3381 = smul.u32 %s3379, 16
                  %s3382 = scalar_lea.vmem %s2886, %s3380 [#allocation3]
                  %s3383 = scalar_lea.vmem %s2899, %s3381
                $region130: #{tpu_custom_call.1} parent=124 // loop_footer
                  %s3243 = sadd.s32 %s3241, 1
                $region131: #{tpu_custom_call.1} parent=124 // loop_footer_branch
                  %3240 = sbr.rel target = $region127
                $region132: #{tpu_custom_call.1} parent=124 // loop_exit
                  _
                %s3384 = sshrl.u32 %s3236, 1
                %s3385 = sand.u32 %s3236, 1
                %s3386 = smul.u32 %s3384, 2
                %s3387 = smul.u32 128, %s3386
                %s3388 = sshra.s32 %s3387, 4
                %s3389 = scalar_lea.vmem %s2886, %s3388 [#allocation3]
                %s3390 = smul.u32 128, %s3386
                %s3391 = sshra.s32 %s3390, 4
                %s3392 = scalar_lea.vmem %s2899, %s3391
                // While loop
                $region133: #{tpu_custom_call.1} parent=124 // loop_pre_header
                  _
                $region134: #{tpu_custom_call.1} parent=124 // loop_header
                  %s3396 = sphi 0, %s3398
                  %p3397 = scmp.ge.s32.totalorder %s3396, %s3385
                  %s3401 = sphi 0, %s3470
                  %s3402 = sphi %s3389, %s3473
                  %s3403 = sphi %s3392, %s3474
                $region135: #{tpu_custom_call.1} parent=124 // loop_header_branch
                  %3400 = sbr.rel (%p3397) target = $region139
                $region136: #{tpu_custom_call.1} parent=124 // loop_body
                  %v3404 = vld [vmem:[%s3402] sm:$0xff]
                  %3405 = vst [vmem:[%s3403] sm:$0xff] %v3404
                  %v3406 = vld [vmem:[%s3402 + $0x10] sm:$0xff]
                  %3407 = vst [vmem:[%s3403 + $0x38] sm:$0xff] %v3406
                  %v3408 = vld [vmem:[%s3402 + $0x20] sm:$0xff]
                  %3409 = vst [vmem:[%s3403 + $0x70] sm:$0xff] %v3408
                  %v3410 = vld [vmem:[%s3402 + $0x30] sm:$0xff]
                  %3411 = vst [vmem:[%s3403 + $0xa8] sm:$0xff] %v3410
                  %v3412 = vld [vmem:[%s3402 + $0x40] sm:$0xff]
                  %3413 = vst [vmem:[%s3403 + $0xe0] sm:$0xff] %v3412
                  %v3414 = vld [vmem:[%s3402 + $0x50] sm:$0xff]
                  %3415 = vst [vmem:[%s3403 + $0x118] sm:$0xff] %v3414
                  %v3416 = vld [vmem:[%s3402 + $0x60] sm:$0xff]
                  %3417 = vst [vmem:[%s3403 + $0x150] sm:$0xff] %v3416
                  %v3418 = vld [vmem:[%s3402 + $0x70] sm:$0xff]
                  %3419 = vst [vmem:[%s3403 + $0x188] sm:$0xff] %v3418
                  %v3420 = vld [vmem:[%s3402 + $0x80] sm:$0xff]
                  %3421 = vst [vmem:[%s3403 + $0x1c0] sm:$0xff] %v3420
                  %v3422 = vld [vmem:[%s3402 + $0x90] sm:$0xff]
                  %3423 = vst [vmem:[%s3403 + $0x1f8] sm:$0xff] %v3422
                  %v3424 = vld [vmem:[%s3402 + $0xa0] sm:$0xff]
                  %3425 = vst [vmem:[%s3403 + $0x230] sm:$0xff] %v3424
                  %v3426 = vld [vmem:[%s3402 + $0xb0] sm:$0xff]
                  %3427 = vst [vmem:[%s3403 + $0x268] sm:$0xff] %v3426
                  %v3428 = vld [vmem:[%s3402 + $0xc0] sm:$0xff]
                  %3429 = vst [vmem:[%s3403 + $0x2a0] sm:$0xff] %v3428
                  %v3430 = vld [vmem:[%s3402 + $0xd0] sm:$0xff]
                  %3431 = vst [vmem:[%s3403 + $0x2d8] sm:$0xff] %v3430
                  %v3432 = vld [vmem:[%s3402 + $0xe0] sm:$0xff]
                  %3433 = vst [vmem:[%s3403 + $0x310] sm:$0xff] %v3432
                  %v3434 = vld [vmem:[%s3402 + $0xf0] sm:$0xff]
                  %3435 = vst [vmem:[%s3403 + $0x348] sm:$0xff] %v3434
                  %v3436 = vld [vmem:[%s3402 + $0x100] sm:$0xff]
                  %3437 = vst [vmem:[%s3403 + $0x380] sm:$0xff] %v3436
                  %v3438 = vld [vmem:[%s3402 + $0x110] sm:$0xff]
                  %3439 = vst [vmem:[%s3403 + $0x3b8] sm:$0xff] %v3438
                  %v3440 = vld [vmem:[%s3402 + $0x120] sm:$0xff]
                  %3441 = vst [vmem:[%s3403 + $0x3f0] sm:$0xff] %v3440
                  %v3442 = vld [vmem:[%s3402 + $0x130] sm:$0xff]
                  %3443 = vst [vmem:[%s3403 + $0x428] sm:$0xff] %v3442
                  %v3444 = vld [vmem:[%s3402 + $0x140] sm:$0xff]
                  %3445 = vst [vmem:[%s3403 + $0x460] sm:$0xff] %v3444
                  %v3446 = vld [vmem:[%s3402 + $0x150] sm:$0xff]
                  %3447 = vst [vmem:[%s3403 + $0x498] sm:$0xff] %v3446
                  %v3448 = vld [vmem:[%s3402 + $0x160] sm:$0xff]
                  %3449 = vst [vmem:[%s3403 + $0x4d0] sm:$0xff] %v3448
                  %v3450 = vld [vmem:[%s3402 + $0x170] sm:$0xff]
                  %3451 = vst [vmem:[%s3403 + $0x508] sm:$0xff] %v3450
                  %v3452 = vld [vmem:[%s3402 + $0x180] sm:$0xff]
                  %3453 = vst [vmem:[%s3403 + $0x540] sm:$0xff] %v3452
                  %v3454 = vld [vmem:[%s3402 + $0x190] sm:$0xff]
                  %3455 = vst [vmem:[%s3403 + $0x578] sm:$0xff] %v3454
                  %v3456 = vld [vmem:[%s3402 + $0x1a0] sm:$0xff]
                  %3457 = vst [vmem:[%s3403 + $0x5b0] sm:$0xff] %v3456
                  %v3458 = vld [vmem:[%s3402 + $0x1b0] sm:$0xff]
                  %3459 = vst [vmem:[%s3403 + $0x5e8] sm:$0xff] %v3458
                  %v3460 = vld [vmem:[%s3402 + $0x1c0] sm:$0xff]
                  %3461 = vst [vmem:[%s3403 + $0x620] sm:$0xff] %v3460
                  %v3462 = vld [vmem:[%s3402 + $0x1d0] sm:$0xff]
                  %3463 = vst [vmem:[%s3403 + $0x658] sm:$0xff] %v3462
                  %v3464 = vld [vmem:[%s3402 + $0x1e0] sm:$0xff]
                  %3465 = vst [vmem:[%s3403 + $0x690] sm:$0xff] %v3464
                  %v3466 = vld [vmem:[%s3402 + $0x1f0] sm:$0xff]
                  %3467 = vst [vmem:[%s3403 + $0x6c8] sm:$0xff] %v3466
                  %s3468 = sadd.s32 1, %s3401
                  %p3469 = scmp.ge.s32.totalorder %s3468, %s3385
                  %s3470 = scalar_select %p3469, 0, %s3468
                  %s3471 = smul.u32 %s3470, 8
                  %s3472 = smul.u32 %s3470, 8
                  %s3473 = scalar_lea.vmem %s3389, %s3471 [#allocation3]
                  %s3474 = scalar_lea.vmem %s3392, %s3472
                $region137: #{tpu_custom_call.1} parent=124 // loop_footer
                  %s3398 = sadd.s32 %s3396, 1
                $region138: #{tpu_custom_call.1} parent=124 // loop_footer_branch
                  %3395 = sbr.rel target = $region134
                $region139: #{tpu_custom_call.1} parent=124 // loop_exit
                  _
                %s3475 = sshllo.u32 0, %s3231
                loop: start=0, step=1, limit=1
                $region140: #{tpu_custom_call.1} parent=124 // loop_pre_header
                  _
                $region141: #{tpu_custom_call.1} parent=124 // loop_header
                  %s3477 = sphi 0, %s3481
                  %p3478 = scmp.ge.s32.totalorder %s3477, 1
                  %s3482 = sphi %s3233, %s3233
                  %s3483 = sphi %s3235, %s3235
                $region142: #{tpu_custom_call.1} parent=124 // loop_header_branch
                  %3480 = sbr.rel (%p3478) target = $region146
                $region143: #{tpu_custom_call.1} parent=124 // loop_body
                  %v3484 = vld [vmem:[%s3482] sm:%s3475]
                  %3485 = vst [vmem:[%s3483] sm:%s3475] %v3484
                  %v3486 = vld [vmem:[%s3482 + $0x10] sm:%s3475]
                  %3487 = vst [vmem:[%s3483 + $0x38] sm:%s3475] %v3486
                  %v3488 = vld [vmem:[%s3482 + $0x20] sm:%s3475]
                  %3489 = vst [vmem:[%s3483 + $0x70] sm:%s3475] %v3488
                  %v3490 = vld [vmem:[%s3482 + $0x30] sm:%s3475]
                  %3491 = vst [vmem:[%s3483 + $0xa8] sm:%s3475] %v3490
                  %v3492 = vld [vmem:[%s3482 + $0x40] sm:%s3475]
                  %3493 = vst [vmem:[%s3483 + $0xe0] sm:%s3475] %v3492
                  %v3494 = vld [vmem:[%s3482 + $0x50] sm:%s3475]
                  %3495 = vst [vmem:[%s3483 + $0x118] sm:%s3475] %v3494
                  %v3496 = vld [vmem:[%s3482 + $0x60] sm:%s3475]
                  %3497 = vst [vmem:[%s3483 + $0x150] sm:%s3475] %v3496
                  %v3498 = vld [vmem:[%s3482 + $0x70] sm:%s3475]
                  %3499 = vst [vmem:[%s3483 + $0x188] sm:%s3475] %v3498
                  %v3500 = vld [vmem:[%s3482 + $0x80] sm:%s3475]
                  %3501 = vst [vmem:[%s3483 + $0x1c0] sm:%s3475] %v3500
                  %v3502 = vld [vmem:[%s3482 + $0x90] sm:%s3475]
                  %3503 = vst [vmem:[%s3483 + $0x1f8] sm:%s3475] %v3502
                  %v3504 = vld [vmem:[%s3482 + $0xa0] sm:%s3475]
                  %3505 = vst [vmem:[%s3483 + $0x230] sm:%s3475] %v3504
                  %v3506 = vld [vmem:[%s3482 + $0xb0] sm:%s3475]
                  %3507 = vst [vmem:[%s3483 + $0x268] sm:%s3475] %v3506
                  %v3508 = vld [vmem:[%s3482 + $0xc0] sm:%s3475]
                  %3509 = vst [vmem:[%s3483 + $0x2a0] sm:%s3475] %v3508
                  %v3510 = vld [vmem:[%s3482 + $0xd0] sm:%s3475]
                  %3511 = vst [vmem:[%s3483 + $0x2d8] sm:%s3475] %v3510
                  %v3512 = vld [vmem:[%s3482 + $0xe0] sm:%s3475]
                  %3513 = vst [vmem:[%s3483 + $0x310] sm:%s3475] %v3512
                  %v3514 = vld [vmem:[%s3482 + $0xf0] sm:%s3475]
                  %3515 = vst [vmem:[%s3483 + $0x348] sm:%s3475] %v3514
                  %v3516 = vld [vmem:[%s3482 + $0x100] sm:%s3475]
                  %3517 = vst [vmem:[%s3483 + $0x380] sm:%s3475] %v3516
                  %v3518 = vld [vmem:[%s3482 + $0x110] sm:%s3475]
                  %3519 = vst [vmem:[%s3483 + $0x3b8] sm:%s3475] %v3518
                  %v3520 = vld [vmem:[%s3482 + $0x120] sm:%s3475]
                  %3521 = vst [vmem:[%s3483 + $0x3f0] sm:%s3475] %v3520
                  %v3522 = vld [vmem:[%s3482 + $0x130] sm:%s3475]
                  %3523 = vst [vmem:[%s3483 + $0x428] sm:%s3475] %v3522
                  %v3524 = vld [vmem:[%s3482 + $0x140] sm:%s3475]
                  %3525 = vst [vmem:[%s3483 + $0x460] sm:%s3475] %v3524
                  %v3526 = vld [vmem:[%s3482 + $0x150] sm:%s3475]
                  %3527 = vst [vmem:[%s3483 + $0x498] sm:%s3475] %v3526
                  %v3528 = vld [vmem:[%s3482 + $0x160] sm:%s3475]
                  %3529 = vst [vmem:[%s3483 + $0x4d0] sm:%s3475] %v3528
                  %v3530 = vld [vmem:[%s3482 + $0x170] sm:%s3475]
                  %3531 = vst [vmem:[%s3483 + $0x508] sm:%s3475] %v3530
                  %v3532 = vld [vmem:[%s3482 + $0x180] sm:%s3475]
                  %3533 = vst [vmem:[%s3483 + $0x540] sm:%s3475] %v3532
                  %v3534 = vld [vmem:[%s3482 + $0x190] sm:%s3475]
                  %3535 = vst [vmem:[%s3483 + $0x578] sm:%s3475] %v3534
                  %v3536 = vld [vmem:[%s3482 + $0x1a0] sm:%s3475]
                  %3537 = vst [vmem:[%s3483 + $0x5b0] sm:%s3475] %v3536
                  %v3538 = vld [vmem:[%s3482 + $0x1b0] sm:%s3475]
                  %3539 = vst [vmem:[%s3483 + $0x5e8] sm:%s3475] %v3538
                  %v3540 = vld [vmem:[%s3482 + $0x1c0] sm:%s3475]
                  %3541 = vst [vmem:[%s3483 + $0x620] sm:%s3475] %v3540
                  %v3542 = vld [vmem:[%s3482 + $0x1d0] sm:%s3475]
                  %3543 = vst [vmem:[%s3483 + $0x658] sm:%s3475] %v3542
                  %v3544 = vld [vmem:[%s3482 + $0x1e0] sm:%s3475]
                  %3545 = vst [vmem:[%s3483 + $0x690] sm:%s3475] %v3544
                  %v3546 = vld [vmem:[%s3482 + $0x1f0] sm:%s3475]
                  %3547 = vst [vmem:[%s3483 + $0x6c8] sm:%s3475] %v3546
                $region144: #{tpu_custom_call.1} parent=124 // loop_footer
                  %s3481 = sadd.s32 1, %s3477
                $region145: #{tpu_custom_call.1} parent=124 // loop_footer_branch
                  %3476 = sbr.rel target = $region141
                $region146: #{tpu_custom_call.1} parent=124 // loop_exit
                  _
              $region125: #{tpu_custom_call.1} parent=91 // pred_fallthru
                _
            $region92: #{tpu_custom_call.1} parent=87 // pred_fallthru
              _
            // Predicated region
            $region93: #{tpu_custom_call.1} parent=87 // pred_check
              %p2908 = pneg %p2904
            $region94: #{tpu_custom_call.1} parent=87 // pred_check_branch
              %2910 = sbr.rel (%p2908) target = $region96
            $region95: #{tpu_custom_call.1} parent=87 // pred_region
              %s2911 = sshllo.u32 0, %s2900
              loop: start=0, step=1, limit=1
              $region97: #{tpu_custom_call.1} parent=95 // loop_pre_header
                _
              $region98: #{tpu_custom_call.1} parent=95 // loop_header
                %s2913 = sphi 0, %s2917
                %p2914 = scmp.ge.s32.totalorder %s2913, 1
                %s2918 = sphi %s2886, %s2886
                %s2919 = sphi %s2899, %s2899
              $region99: #{tpu_custom_call.1} parent=95 // loop_header_branch
                %2916 = sbr.rel (%p2914) target = $region103
              $region100: #{tpu_custom_call.1} parent=95 // loop_body
                %v2920 = vld [vmem:[%s2918] sm:%s2911]
                %2921 = vst [vmem:[%s2919] sm:%s2911] %v2920
                %v2922 = vld [vmem:[%s2918 + $0x10] sm:%s2911]
                %2923 = vst [vmem:[%s2919 + $0x38] sm:%s2911] %v2922
                %v2924 = vld [vmem:[%s2918 + $0x20] sm:%s2911]
                %2925 = vst [vmem:[%s2919 + $0x70] sm:%s2911] %v2924
                %v2926 = vld [vmem:[%s2918 + $0x30] sm:%s2911]
                %2927 = vst [vmem:[%s2919 + $0xa8] sm:%s2911] %v2926
                %v2928 = vld [vmem:[%s2918 + $0x40] sm:%s2911]
                %2929 = vst [vmem:[%s2919 + $0xe0] sm:%s2911] %v2928
                %v2930 = vld [vmem:[%s2918 + $0x50] sm:%s2911]
                %2931 = vst [vmem:[%s2919 + $0x118] sm:%s2911] %v2930
                %v2932 = vld [vmem:[%s2918 + $0x60] sm:%s2911]
                %2933 = vst [vmem:[%s2919 + $0x150] sm:%s2911] %v2932
                %v2934 = vld [vmem:[%s2918 + $0x70] sm:%s2911]
                %2935 = vst [vmem:[%s2919 + $0x188] sm:%s2911] %v2934
                %v2936 = vld [vmem:[%s2918 + $0x80] sm:%s2911]
                %2937 = vst [vmem:[%s2919 + $0x1c0] sm:%s2911] %v2936
                %v2938 = vld [vmem:[%s2918 + $0x90] sm:%s2911]
                %2939 = vst [vmem:[%s2919 + $0x1f8] sm:%s2911] %v2938
                %v2940 = vld [vmem:[%s2918 + $0xa0] sm:%s2911]
                %2941 = vst [vmem:[%s2919 + $0x230] sm:%s2911] %v2940
                %v2942 = vld [vmem:[%s2918 + $0xb0] sm:%s2911]
                %2943 = vst [vmem:[%s2919 + $0x268] sm:%s2911] %v2942
                %v2944 = vld [vmem:[%s2918 + $0xc0] sm:%s2911]
                %2945 = vst [vmem:[%s2919 + $0x2a0] sm:%s2911] %v2944
                %v2946 = vld [vmem:[%s2918 + $0xd0] sm:%s2911]
                %2947 = vst [vmem:[%s2919 + $0x2d8] sm:%s2911] %v2946
                %v2948 = vld [vmem:[%s2918 + $0xe0] sm:%s2911]
                %2949 = vst [vmem:[%s2919 + $0x310] sm:%s2911] %v2948
                %v2950 = vld [vmem:[%s2918 + $0xf0] sm:%s2911]
                %2951 = vst [vmem:[%s2919 + $0x348] sm:%s2911] %v2950
                %v2952 = vld [vmem:[%s2918 + $0x100] sm:%s2911]
                %2953 = vst [vmem:[%s2919 + $0x380] sm:%s2911] %v2952
                %v2954 = vld [vmem:[%s2918 + $0x110] sm:%s2911]
                %2955 = vst [vmem:[%s2919 + $0x3b8] sm:%s2911] %v2954
                %v2956 = vld [vmem:[%s2918 + $0x120] sm:%s2911]
                %2957 = vst [vmem:[%s2919 + $0x3f0] sm:%s2911] %v2956
                %v2958 = vld [vmem:[%s2918 + $0x130] sm:%s2911]
                %2959 = vst [vmem:[%s2919 + $0x428] sm:%s2911] %v2958
                %v2960 = vld [vmem:[%s2918 + $0x140] sm:%s2911]
                %2961 = vst [vmem:[%s2919 + $0x460] sm:%s2911] %v2960
                %v2962 = vld [vmem:[%s2918 + $0x150] sm:%s2911]
                %2963 = vst [vmem:[%s2919 + $0x498] sm:%s2911] %v2962
                %v2964 = vld [vmem:[%s2918 + $0x160] sm:%s2911]
                %2965 = vst [vmem:[%s2919 + $0x4d0] sm:%s2911] %v2964
                %v2966 = vld [vmem:[%s2918 + $0x170] sm:%s2911]
                %2967 = vst [vmem:[%s2919 + $0x508] sm:%s2911] %v2966
                %v2968 = vld [vmem:[%s2918 + $0x180] sm:%s2911]
                %2969 = vst [vmem:[%s2919 + $0x540] sm:%s2911] %v2968
                %v2970 = vld [vmem:[%s2918 + $0x190] sm:%s2911]
                %2971 = vst [vmem:[%s2919 + $0x578] sm:%s2911] %v2970
                %v2972 = vld [vmem:[%s2918 + $0x1a0] sm:%s2911]
                %2973 = vst [vmem:[%s2919 + $0x5b0] sm:%s2911] %v2972
                %v2974 = vld [vmem:[%s2918 + $0x1b0] sm:%s2911]
                %2975 = vst [vmem:[%s2919 + $0x5e8] sm:%s2911] %v2974
                %v2976 = vld [vmem:[%s2918 + $0x1c0] sm:%s2911]
                %2977 = vst [vmem:[%s2919 + $0x620] sm:%s2911] %v2976
                %v2978 = vld [vmem:[%s2918 + $0x1d0] sm:%s2911]
                %2979 = vst [vmem:[%s2919 + $0x658] sm:%s2911] %v2978
                %v2980 = vld [vmem:[%s2918 + $0x1e0] sm:%s2911]
                %2981 = vst [vmem:[%s2919 + $0x690] sm:%s2911] %v2980
                %v2982 = vld [vmem:[%s2918 + $0x1f0] sm:%s2911]
                %2983 = vst [vmem:[%s2919 + $0x6c8] sm:%s2911] %v2982
              $region101: #{tpu_custom_call.1} parent=95 // loop_footer
                %s2917 = sadd.s32 1, %s2913
              $region102: #{tpu_custom_call.1} parent=95 // loop_footer_branch
                %2912 = sbr.rel target = $region98
              $region103: #{tpu_custom_call.1} parent=95 // loop_exit
                _
            $region96: #{tpu_custom_call.1} parent=87 // pred_fallthru
              _
          $region88: #{tpu_custom_call.1} parent=83 // pred_fallthru
            _
          %3548 = vnop
        $region84: #{tpu_custom_call.1} parent=75 // pred_fallthru
          _
      $region76: #{tpu_custom_call.1} parent=5 // pred_fallthru
        _
      %p3549 = scmp.le.s32.totalorder 2, %s8
      // Predicated region
      $region147: #{tpu_custom_call.1} parent=5 // pred_check
        %p3550 = pneg %p3549
      $region148: #{tpu_custom_call.1} parent=5 // pred_check_branch
        %3552 = sbr.rel (%p3550) target = $region150
      $region149: #{tpu_custom_call.1} parent=5 // pred_region
        %s3553 = ssub.s32 %s8, 2
        // Predicated region
        $region151: #{tpu_custom_call.1} parent=149 // pred_check
          %p3554 = pneg %p100
        $region152: #{tpu_custom_call.1} parent=149 // pred_check_branch
          %3556 = sbr.rel (%p3554) target = $region154
        $region153: #{tpu_custom_call.1} parent=149 // pred_region
          %s3557 = sand.u32 %s85, 1
          %s3558 = sand.u32 %s85, 1
          %s3559 = smul.addr %s3558, 512
          %s3560 = scalar_lea.vmem [#allocation3], %s3559
        $region154: #{tpu_custom_call.1} parent=149 // pred_fallthru
          _
      $region150: #{tpu_custom_call.1} parent=5 // pred_fallthru
        _
    $region6: #{tpu_custom_call.1} parent=1 // loop_footer
      %s12 = sadd.s32 1, %s8
    $region7: #{tpu_custom_call.1} parent=1 // loop_footer_branch
      %7 = sbr.rel target = $region3
    $region8: #{tpu_custom_call.1} parent=1 // loop_exit
      _

</llo_original>
